<compile_context>
chip_gen: v5e
topology: v5e:2x2
jax: 0.10.0
libtpu: 0.0.40
codegen_flags: <defaults>
</compile_context>

<pallas_src>
import math

import jax
import jax.numpy as jnp
from jax import lax
from jax.experimental import pallas as pl
from jax.experimental.pallas import tpu as pltpu

f32 = jnp.float32
bf16 = jnp.bfloat16


def _round_up(x: int, m: int) -> int:
    return ((x + m - 1) // m) * m


def _pick_time_chunk(T: int, target: int) -> int:
    """Largest divisor of T that is <= target (grid chunk length)."""
    for c in range(min(target, T), 0, -1):
        if T % c == 0:
            return c
    return 1


def _nbytes(shape, dtype) -> int:
    return int(math.prod(shape)) * jnp.dtype(dtype).itemsize


def _sigmoid_eup(x):
    # sigmoid(x) == 0.5 * (tanh(0.5 * x) + 1): tanh goes to the EUP slot,
    # no VALU divide / Newton iterations on the serial recurrent path.
    return 0.5 * (jnp.tanh(0.5 * x) + 1.0)


# --------------------------------------------------------------------------
# Kernel 1: stacked GRU recurrence, gridded over T chunks ("arbitrary" axis)
# --------------------------------------------------------------------------
def _make_gru_kernel(num_layers: int, Tc: int, Bp: int, Einp: int, Hp: int):
    def kernel(*refs):
        idx = 0
        x_ref = refs[idx]; idx += 1            # (Tc*Bp, Einp) bf16   streamed in
        h0_ref = refs[idx]; idx += 1           # (L, Bp, Hp)  f32     loaded once
        layer_w = []
        for _ in range(num_layers):
            # (w_ih_T (in_p,3Hp) bf16, w_hh_T (Hp,3Hp) f32, b_i (1,3Hp) f32,
            #  b_hn (1,Hp) f32)
            layer_w.append(tuple(refs[idx:idx + 4]))
            idx += 4
        hs_ref = refs[idx]; idx += 1           # out (Tc, Bp, Hp) f32 streamed out
        hN_ref = refs[idx]; idx += 1           # out (L, Bp, Hp) f32  resident carry
        gi0_ref = refs[idx]; idx += 1          # scratch (Tc, Bp, 3Hp) f32

        # ---- hidden-state carry: init from h0 on the first grid step --------
        @pl.when(pl.program_id(0) == 0)
        def _init():
            hN_ref[...] = h0_ref[...]

        # ---- hoist bias broadcasts out of the time loop (JAX won't CSE them) -
        b_hn = [jnp.broadcast_to(layer_w[l][3][...], (Bp, Hp))
                for l in range(num_layers)]
        b_i = [None] + [jnp.broadcast_to(layer_w[l][2][...], (Bp, 3 * Hp))
                        for l in range(1, num_layers)]

        # ---- layer-0 input projections for the WHOLE chunk: one bf16 matmul --
        gi0 = jnp.dot(x_ref[...], layer_w[0][0][...],
                      preferred_element_type=jnp.float32) + layer_w[0][2][...]
        gi0_ref[...] = gi0.reshape(Tc, Bp, 3 * Hp)

        def gru_cell(gi, h_prev, w_hh_ref, b_hn_l):
            # gi already carries the (folded) input-side biases. f32 recurrence.
            gh = jnp.dot(h_prev, w_hh_ref[...], preferred_element_type=jnp.float32)
            r = _sigmoid_eup(gi[:, 0:Hp] + gh[:, 0:Hp])
            z = _sigmoid_eup(gi[:, Hp:2 * Hp] + gh[:, Hp:2 * Hp])
            n = jnp.tanh(gi[:, 2 * Hp:] + r * (gh[:, 2 * Hp:] + b_hn_l))
            return (1.0 - z) * n + z * h_prev

        h_init = tuple(hN_ref[l] for l in range(num_layers))

        def body(t, hs):
            new_hs = []
            h_new = gru_cell(gi0_ref[t], hs[0], layer_w[0][1], b_hn[0])
            new_hs.append(h_new)
            inp = h_new
            for l in range(1, num_layers):
                gi_l = jnp.dot(inp.astype(bf16), layer_w[l][0][...],
                               preferred_element_type=jnp.float32) + b_i[l]
                h_new = gru_cell(gi_l, hs[l], layer_w[l][1], b_hn[l])
                new_hs.append(h_new)
                inp = h_new
            hs_ref[t] = inp.astype(hs_ref.dtype)   # head runs in a separate call
            return tuple(new_hs)

        # Chunked unroll: grid axis is the outer loop, Tc steps unrolled here.
        h_final = lax.fori_loop(0, Tc, body, h_init, unroll=True)
        for l in range(num_layers):
            hN_ref[l] = h_final[l]

    return kernel


# --------------------------------------------------------------------------
# Kernel 2: head (Linear -> LeakyReLU -> Linear), gridded over row chunks
# --------------------------------------------------------------------------
def _make_head_kernel(negative_slope: float):
    def kernel(hs_ref, w_lin_ref, b_lin_ref, w_out_ref, b_out_ref, out_ref):
        lin = jnp.dot(hs_ref[...].astype(bf16), w_lin_ref[...],
                      preferred_element_type=jnp.float32) + b_lin_ref[...]
        act = jnp.maximum(lin, negative_slope * lin)     # LeakyReLU, 0<slope<1
        logits = jnp.dot(act.astype(bf16), w_out_ref[...],
                         preferred_element_type=jnp.float32) + b_out_ref[...]
        out_ref[...] = logits                            # lane-dense (Rc, Vp)
    return kernel


# --------------------------------------------------------------------------
# Wrapper
# --------------------------------------------------------------------------
def leaky_net_forward(rnn_input, rnn_state, gru_params_raw, w_lin, b_lin,
                      w_out, b_out, negative_slope=0.01,
                      tc_target=16, head_rows=256):
    """rnn_input: (B, T, Ein) batch_first (already embedded + concatenated);
    rnn_state: (L, B, H); gru_params_raw: per layer PyTorch-layout
    (w_ih (3H,in), w_hh (3H,H), b_ih (3H,), b_hh (3H,)).
    Returns (outputs (B, T, V), h_n (L, B, H))."""
    B, T, Ein = rnn_input.shape
    L, _, H = rnn_state.shape
    V = w_out.shape[0]

    Bp = _round_up(B, 8)          # sublane pad
    Hp = _round_up(H, 128)        # lane pad per gate
    Vp = _round_up(V, 128)        # lane-dense logits
    Einp = _round_up(Ein, 128)
    Tc = _pick_time_chunk(T, tc_target)
    nT = T // Tc

    # Sequence-major, sublane/lane padded bf16 input, flattened to (T*Bp, Einp).
    x_tbe = jnp.transpose(rnn_input, (1, 0, 2)).astype(bf16)
    x_pad = (jnp.zeros((T, Bp, Einp), bf16).at[:, :B, :Ein].set(x_tbe)
             .reshape(T * Bp, Einp))
    h0_pad = jnp.zeros((L, Bp, Hp), f32).at[:, :B, :H].set(rnn_state.astype(f32))

    def pad_gru_layer(w_ih, w_hh, b_ih, b_hh, in_p):
        in_dim = w_ih.shape[1]
        w_ih_T = jnp.zeros((in_p, 3 * Hp), f32)
        w_hh_T = jnp.zeros((Hp, 3 * Hp), f32)
        b_i = jnp.zeros((1, 3 * Hp), f32)
        for g in range(3):  # PyTorch gate order: r, z, n
            w_ih_T = w_ih_T.at[:in_dim, g * Hp:g * Hp + H].set(
                w_ih[g * H:(g + 1) * H, :].T)
            w_hh_T = w_hh_T.at[:H, g * Hp:g * Hp + H].set(
                w_hh[g * H:(g + 1) * H, :].T)
            bias_g = b_ih[g * H:(g + 1) * H]
            if g < 2:  # fold hidden-side r/z biases into the input-side bias
                bias_g = bias_g + b_hh[g * H:(g + 1) * H]
            b_i = b_i.at[0, g * Hp:g * Hp + H].set(bias_g)
        b_hn = jnp.zeros((1, Hp), f32).at[0, :H].set(b_hh[2 * H:3 * H])
        # bf16 for the non-recurrent input projection; f32 recurrent panel.
        return w_ih_T.astype(bf16), w_hh_T, b_i, b_hn

    _const2 = lambda t: (0, 0)

    gru_inputs = [x_pad, h0_pad]
    gru_in_specs = [
        pl.BlockSpec((Tc * Bp, Einp), lambda t: (t, 0)),       # streamed x
        pl.BlockSpec((L, Bp, Hp), lambda t: (0, 0, 0)),        # h0, loaded once
    ]
    gru_resident = (2 * _nbytes((Tc * Bp, Einp), bf16)         # x double-buffer
                    + 2 * _nbytes((Tc, Bp, Hp), f32)           # hs double-buffer
                    + 4 * _nbytes((L, Bp, Hp), f32)            # h0 + hN
                    + _nbytes((Tc, Bp, 3 * Hp), f32))          # gi0 scratch
    for l, (w_ih, w_hh, b_ih, b_hh) in enumerate(gru_params_raw):
        in_p = Einp if l == 0 else Hp
        w_ih_T, w_hh_T, b_i, b_hn = pad_gru_layer(
            w_ih.astype(f32), w_hh.astype(f32), b_ih.astype(f32),
            b_hh.astype(f32), in_p)
        gru_inputs += [w_ih_T, w_hh_T, b_i, b_hn]
        gru_in_specs += [pl.BlockSpec(w_ih_T.shape, _const2),
                         pl.BlockSpec(w_hh_T.shape, _const2),
                         pl.BlockSpec(b_i.shape, _const2),
                         pl.BlockSpec(b_hn.shape, _const2)]
        gru_resident += (_nbytes(w_ih_T.shape, bf16) + _nbytes(w_hh_T.shape, f32)
                         + _nbytes(b_i.shape, f32) + _nbytes(b_hn.shape, f32))
    gru_vmem = int(min(64 << 20, max(32 << 20, 2 * gru_resident + (8 << 20))))

    hs_slab, hN_pad = pl.pallas_call(
        _make_gru_kernel(L, Tc, Bp, Einp, Hp),
        grid=(nT,),
        out_shape=(
            jax.ShapeDtypeStruct((T, Bp, Hp), f32),   # top-layer h_t, streamed
            jax.ShapeDtypeStruct((L, Bp, Hp), f32),   # final rnn_state (padded)
        ),
        in_specs=gru_in_specs,
        out_specs=(
            pl.BlockSpec((Tc, Bp, Hp), lambda t: (t, 0, 0)),
            pl.BlockSpec((L, Bp, Hp), lambda t: (0, 0, 0)),   # resident carry
        ),
        scratch_shapes=[pltpu.VMEM((Tc, Bp, 3 * Hp), f32)],
        compiler_params=pltpu.CompilerParams(
            dimension_semantics=("arbitrary",),
            vmem_limit_bytes=gru_vmem),
    )(*gru_inputs)

    # -------------------- head: separate, parallel pallas_call ---------------
    w_lin_T = jnp.zeros((Hp, Hp), f32).at[:H, :H].set(w_lin.astype(f32).T).astype(bf16)
    b_lin_p = jnp.zeros((1, Hp), f32).at[0, :H].set(b_lin.astype(f32))
    w_out_T = jnp.zeros((Hp, Vp), f32).at[:H, :V].set(w_out.astype(f32).T).astype(bf16)
    b_out_p = jnp.zeros((1, Vp), f32).at[0, :V].set(b_out.astype(f32))

    TB = T * Bp
    Rc = math.gcd(TB, head_rows)   # head_rows power-of-2 >= 8  ->  Rc mult of 8
    head_resident = (2 * _nbytes((Rc, Hp), f32) + 2 * _nbytes((Rc, Vp), f32)
                     + _nbytes((Hp, Hp), bf16) + _nbytes((1, Hp), f32)
                     + _nbytes((Hp, Vp), bf16) + _nbytes((1, Vp), f32))
    head_vmem = int(min(64 << 20, max(32 << 20, 2 * head_resident + (8 << 20))))

    logits_flat = pl.pallas_call(
        _make_head_kernel(negative_slope),
        grid=(TB // Rc,),
        out_shape=jax.ShapeDtypeStruct((TB, Vp), f32),
        in_specs=[
            pl.BlockSpec((Rc, Hp), lambda i: (i, 0)),
            pl.BlockSpec((Hp, Hp), _const2),
            pl.BlockSpec((1, Hp), _const2),
            pl.BlockSpec((Hp, Vp), _const2),
            pl.BlockSpec((1, Vp), _const2),
        ],
        out_specs=pl.BlockSpec((Rc, Vp), lambda i: (i, 0)),
        compiler_params=pltpu.CompilerParams(
            dimension_semantics=("parallel",),
            vmem_limit_bytes=head_vmem),
    )(hs_slab.reshape(TB, Hp), w_lin_T, b_lin_p, w_out_T, b_out_p)

    outputs = jnp.transpose(logits_flat.reshape(T, Bp, Vp)[:, :B, :V], (1, 0, 2))
    h_n = hN_pad[:, :B, :H]
    return outputs, h_n


# --------------------------------------------------------------------------
# Pure-JAX reference (PyTorch GRU / Linear / LeakyReLU semantics, f32)
# --------------------------------------------------------------------------
def _reference_forward(x_bte, h0, gru_params_raw, w_lin, b_lin_v, w_out,
                       b_out_v, H, L):
    B, T, _ = x_bte.shape
    hs = [h0[l] for l in range(L)]
    outs = []
    for t in range(T):
        inp = x_bte[:, t, :]
        for l in range(L):
            w_ih, w_hh, b_ih, b_hh = gru_params_raw[l]
            gi = inp @ w_ih.T + b_ih
            gh = hs[l] @ w_hh.T + b_hh
            i_r, i_z, i_n = gi[:, :H], gi[:, H:2 * H], gi[:, 2 * H:]
            h_r, h_z, h_n = gh[:, :H], gh[:, H:2 * H], gh[:, 2 * H:]
            r = jax.nn.sigmoid(i_r + h_r)
            z = jax.nn.sigmoid(i_z + h_z)
            n = jnp.tanh(i_n + r * h_n)
            hs[l] = (1.0 - z) * n + z * hs[l]
            inp = hs[l]
        lin = inp @ w_lin.T + b_lin_v
        act = jnp.where(lin >= 0.0, lin, 0.01 * lin)
        outs.append(act @ w_out.T + b_out_v)
    return jnp.stack(outs, axis=1), jnp.stack(hs, axis=0)


if __name__ == "__main__":
    key = jax.random.PRNGKey(0)

    # Small config consistent with the module's __init__.
    src_vocab_size = 11
    trg_vocab_size = 13
    src_embed_dim = 32
    trg_embed_dim = 32
    rnn_hid_dim = 32
    rnn_num_layers = 2
    B, T = 2, 8
    Ein = src_embed_dim + trg_embed_dim
    Vout = trg_vocab_size + 2

    ks = jax.random.split(key, 20)

    # Embedding tables
    src_emb_table = jax.random.normal(ks[0], (src_vocab_size, src_embed_dim), f32) * 0.1
    trg_emb_table = jax.random.normal(ks[1], (trg_vocab_size, trg_embed_dim), f32) * 0.1

    # GRU parameters (PyTorch layout: weight_ih (3H, in), weight_hh (3H, H))
    gru_params_raw = []
    kidx = 2
    for l in range(rnn_num_layers):
        in_dim = Ein if l == 0 else rnn_hid_dim
        w_ih = jax.random.normal(ks[kidx], (3 * rnn_hid_dim, in_dim), f32) * 0.1; kidx += 1
        w_hh = jax.random.normal(ks[kidx], (3 * rnn_hid_dim, rnn_hid_dim), f32) * 0.1; kidx += 1
        b_ih = jax.random.normal(ks[kidx], (3 * rnn_hid_dim,), f32) * 0.1; kidx += 1
        b_hh = jax.random.normal(ks[kidx], (3 * rnn_hid_dim,), f32) * 0.1; kidx += 1
        gru_params_raw.append((w_ih, w_hh, b_ih, b_hh))

    # Head parameters
    w_lin = jax.random.normal(ks[kidx], (rnn_hid_dim, rnn_hid_dim), f32) * 0.1; kidx += 1
    b_lin_v = jax.random.normal(ks[kidx], (rnn_hid_dim,), f32) * 0.1; kidx += 1
    w_out = jax.random.normal(ks[kidx], (Vout, rnn_hid_dim), f32) * 0.1; kidx += 1
    b_out_v = jax.random.normal(ks[kidx], (Vout,), f32) * 0.1; kidx += 1

    # Inputs
    src = jax.random.randint(ks[kidx], (B, T), 0, src_vocab_size); kidx += 1
    previous_output = jax.random.randint(ks[kidx], (B, T), 0, trg_vocab_size); kidx += 1
    rnn_state = jax.random.normal(ks[kidx], (rnn_num_layers, B, rnn_hid_dim), f32) * 0.1

    # Glue: embedding lookups + concat (embedding_dropout is identity in eval).
    src_embedded = src_emb_table[src]                      # (B, T, 32)
    trg_embedded = trg_emb_table[previous_output]          # (B, T, 32)
    rnn_input = jnp.concatenate([src_embedded, trg_embedded], axis=2)  # (B, T, 64)

    # tc_target=4 / head_rows=32 so both grids have >1 step at this tiny size
    # (exercises the cross-chunk hidden-state carry and the parallel head grid).
    fwd = jax.jit(lambda *a: leaky_net_forward(*a, tc_target=4, head_rows=32))
    outputs, h_n = fwd(rnn_input, rnn_state, gru_params_raw, w_lin, b_lin_v,
                       w_out, b_out_v)
    jax.block_until_ready((outputs, h_n))

    # Correctness vs an f32 reference of the PyTorch semantics.  Tolerance is
    # 1e-2 because non-recurrent MXU operands are bf16 (f32 accumulation).
    ref_out, ref_h = _reference_forward(
        rnn_input, rnn_state, gru_params_raw, w_lin, b_lin_v, w_out, b_out_v,
        rnn_hid_dim, rnn_num_layers)
    assert outputs.shape == (B, T, Vout)
    assert h_n.shape == (rnn_num_layers, B, rnn_hid_dim)
    assert jnp.allclose(outputs, ref_out, atol=1e-2, rtol=1e-2)
    assert jnp.allclose(h_n, ref_h, atol=1e-2, rtol=1e-2)

    print("KERNEL_OK")
</pallas_src>

<mosaic_0001>
module attributes {stable_mosaic.version = 11 : i64} {
  func.func @kernel(%arg0: i32, %arg1: memref<32x128xbf16, #tpu.memory_space<vmem>>, %arg2: memref<2x8x128xf32, #tpu.memory_space<vmem>>, %arg3: memref<128x384xbf16, #tpu.memory_space<vmem>>, %arg4: memref<128x384xf32, #tpu.memory_space<vmem>>, %arg5: memref<1x384xf32, #tpu.memory_space<vmem>>, %arg6: memref<1x128xf32, #tpu.memory_space<vmem>>, %arg7: memref<128x384xbf16, #tpu.memory_space<vmem>>, %arg8: memref<128x384xf32, #tpu.memory_space<vmem>>, %arg9: memref<1x384xf32, #tpu.memory_space<vmem>>, %arg10: memref<1x128xf32, #tpu.memory_space<vmem>>, %arg11: memref<4x8x128xf32, #tpu.memory_space<vmem>>, %arg12: memref<2x8x128xf32, #tpu.memory_space<vmem>>, %arg13: memref<4x8x384xf32, #tpu.memory_space<vmem>>) attributes {dimension_semantics = [#tpu.dimension_semantics<arbitrary>], iteration_bounds = array<i64: 2>, scalar_prefetch = 0 : i64, scratch_operands = 1 : i64, tpu.core_type = #tpu.core_type<tc>, window_params = [{transform_indices = @transform_0, window_bounds = array<i64: 32, 128>}, {pipeline_mode = #tpu.pipeline_mode<synchronous>, transform_indices = @transform_1, window_bounds = array<i64: 2, 8, 128>}, {pipeline_mode = #tpu.pipeline_mode<synchronous>, transform_indices = @transform_2, window_bounds = array<i64: 128, 384>}, {pipeline_mode = #tpu.pipeline_mode<synchronous>, transform_indices = @transform_3, window_bounds = array<i64: 128, 384>}, {pipeline_mode = #tpu.pipeline_mode<synchronous>, transform_indices = @transform_4, window_bounds = array<i64: 1, 384>}, {pipeline_mode = #tpu.pipeline_mode<synchronous>, transform_indices = @transform_5, window_bounds = array<i64: 1, 128>}, {pipeline_mode = #tpu.pipeline_mode<synchronous>, transform_indices = @transform_6, window_bounds = array<i64: 128, 384>}, {pipeline_mode = #tpu.pipeline_mode<synchronous>, transform_indices = @transform_7, window_bounds = array<i64: 128, 384>}, {pipeline_mode = #tpu.pipeline_mode<synchronous>, transform_indices = @transform_8, window_bounds = array<i64: 1, 384>}, {pipeline_mode = #tpu.pipeline_mode<synchronous>, transform_indices = @transform_9, window_bounds = array<i64: 1, 128>}, {transform_indices = @transform_10, window_bounds = array<i64: 4, 8, 128>}, {pipeline_mode = #tpu.pipeline_mode<synchronous>, transform_indices = @transform_11, window_bounds = array<i64: 2, 8, 128>}]} {
    %c0_i32 = arith.constant 0 : i32
    %0 = arith.cmpi eq, %arg0, %c0_i32 : i32
    %1 = arith.extui %0 : i1 to i32
    %c0_i32_0 = arith.constant 0 : i32
    %2 = arith.cmpi ne, %1, %c0_i32_0 : i32
    scf.if %2 {
      %c0_135 = arith.constant 0 : index
      %c0_136 = arith.constant 0 : index
      %c0_137 = arith.constant 0 : index
      %338 = vector.load %arg2[%c0_135, %c0_136, %c0_137] : memref<2x8x128xf32, #tpu.memory_space<vmem>>, vector<2x8x128xf32>
      %c0_138 = arith.constant 0 : index
      %c0_139 = arith.constant 0 : index
      %c0_140 = arith.constant 0 : index
      %339 = vector.load %arg12[%c0_138, %c0_139, %c0_140] : memref<2x8x128xf32, #tpu.memory_space<vmem>>, vector<2x8x128xf32>
      tpu.vector_store %arg12[%c0_138, %c0_139, %c0_140], %338 {strides = array<i32>} : memref<2x8x128xf32, #tpu.memory_space<vmem>>, vector<2x8x128xf32>,
    } else {
    }
    %c0 = arith.constant 0 : index
    %c0_1 = arith.constant 0 : index
    %3 = vector.load %arg6[%c0, %c0_1] : memref<1x128xf32, #tpu.memory_space<vmem>>, vector<1x128xf32>
    %4 = vector.shape_cast %3 : vector<1x128xf32> to vector<1x128xf32>
    %5 = vector.broadcast %4 : vector<1x128xf32> to vector<8x128xf32>
    %c0_2 = arith.constant 0 : index
    %c0_3 = arith.constant 0 : index
    %6 = vector.load %arg10[%c0_2, %c0_3] : memref<1x128xf32, #tpu.memory_space<vmem>>, vector<1x128xf32>
    %7 = vector.shape_cast %6 : vector<1x128xf32> to vector<1x128xf32>
    %8 = vector.broadcast %7 : vector<1x128xf32> to vector<8x128xf32>
    %c0_4 = arith.constant 0 : index
    %c0_5 = arith.constant 0 : index
    %9 = vector.load %arg9[%c0_4, %c0_5] : memref<1x384xf32, #tpu.memory_space<vmem>>, vector<1x384xf32>
    %10 = vector.shape_cast %9 : vector<1x384xf32> to vector<1x384xf32>
    %11 = vector.broadcast %10 : vector<1x384xf32> to vector<8x384xf32>
    %c0_6 = arith.constant 0 : index
    %c0_7 = arith.constant 0 : index
    %12 = vector.load %arg1[%c0_6, %c0_7] : memref<32x128xbf16, #tpu.memory_space<vmem>>, vector<32x128xbf16>
    %c0_8 = arith.constant 0 : index
    %c0_9 = arith.constant 0 : index
    %13 = vector.load %arg3[%c0_8, %c0_9] : memref<128x384xbf16, #tpu.memory_space<vmem>>, vector<128x384xbf16>
    %cst = arith.constant dense<0.000000e+00> : vector<32x384xf32>
    %14 = tpu.matmul %12, %13, %cst {dimension_numbers = #tpu.dot_dimension_numbers<[1], [0], [0], [1], [0, 0, 1, 1], [], []>} : vector<32x128xbf16>, vector<128x384xbf16>, vector<32x384xf32> -> vector<32x384xf32>
    %c0_10 = arith.constant 0 : index
    %c0_11 = arith.constant 0 : index
    %15 = vector.load %arg5[%c0_10, %c0_11] : memref<1x384xf32, #tpu.memory_space<vmem>>, vector<1x384xf32>
    %16 = vector.broadcast %15 : vector<1x384xf32> to vector<32x384xf32>
    %17 = arith.addf %14, %16 : vector<32x384xf32>
    %18 = vector.shape_cast %17 : vector<32x384xf32> to vector<4x8x384xf32>
    %c0_12 = arith.constant 0 : index
    %c0_13 = arith.constant 0 : index
    %c0_14 = arith.constant 0 : index
    %19 = vector.load %arg13[%c0_12, %c0_13, %c0_14] : memref<4x8x384xf32, #tpu.memory_space<vmem>>, vector<4x8x384xf32>
    tpu.vector_store %arg13[%c0_12, %c0_13, %c0_14], %18 {strides = array<i32>} : memref<4x8x384xf32, #tpu.memory_space<vmem>>, vector<4x8x384xf32>,
    %c0_15 = arith.constant 0 : index
    %c0_16 = arith.constant 0 : index
    %c0_17 = arith.constant 0 : index
    %20 = vector.load %arg12[%c0_15, %c0_16, %c0_17] : memref<2x8x128xf32, #tpu.memory_space<vmem>>, vector<1x8x128xf32>
    %21 = vector.shape_cast %20 : vector<1x8x128xf32> to vector<8x128xf32>
    %c1 = arith.constant 1 : index
    %c0_18 = arith.constant 0 : index
    %c0_19 = arith.constant 0 : index
    %22 = vector.load %arg12[%c1, %c0_18, %c0_19] : memref<2x8x128xf32, #tpu.memory_space<vmem>>, vector<1x8x128xf32>
    %23 = vector.shape_cast %22 : vector<1x8x128xf32> to vector<8x128xf32>
    %c0_i32_20 = arith.constant 0 : i32
    %24 = arith.index_cast %c0_i32_20 : i32 to index
    %c0_21 = arith.constant 0 : index
    %c0_22 = arith.constant 0 : index
    %25 = vector.load %arg13[%24, %c0_21, %c0_22] : memref<4x8x384xf32, #tpu.memory_space<vmem>>, vector<1x8x384xf32>
    %26 = vector.shape_cast %25 : vector<1x8x384xf32> to vector<8x384xf32>
    %c0_23 = arith.constant 0 : index
    %c0_24 = arith.constant 0 : index
    %27 = vector.load %arg4[%c0_23, %c0_24] : memref<128x384xf32, #tpu.memory_space<vmem>>, vector<128x384xf32>
    %cst_25 = arith.constant dense<0.000000e+00> : vector<8x384xf32>
    %28 = tpu.matmul %21, %27, %cst_25 {dimension_numbers = #tpu.dot_dimension_numbers<[1], [0], [0], [1], [0, 0, 1, 1], [], []>} : vector<8x128xf32>, vector<128x384xf32>, vector<8x384xf32> -> vector<8x384xf32>
    %29 = vector.extract_strided_slice %26 {offsets = [0, 0], sizes = [8, 128], strides = [1, 1]} : vector<8x384xf32> to vector<8x128xf32>
    %30 = vector.extract_strided_slice %28 {offsets = [0, 0], sizes = [8, 128], strides = [1, 1]} : vector<8x384xf32> to vector<8x128xf32>
    %31 = arith.addf %29, %30 : vector<8x128xf32>
    %cst_26 = arith.constant 5.000000e-01 : f32
    %32 = vector.broadcast %cst_26 : f32 to vector<8x128xf32>
    %33 = arith.mulf %32, %31 : vector<8x128xf32>
    %34 = math.tanh %33 : vector<8x128xf32>
    %cst_27 = arith.constant 1.000000e+00 : f32
    %35 = vector.broadcast %cst_27 : f32 to vector<8x128xf32>
    %36 = arith.addf %34, %35 : vector<8x128xf32>
    %cst_28 = arith.constant 5.000000e-01 : f32
    %37 = vector.broadcast %cst_28 : f32 to vector<8x128xf32>
    %38 = arith.mulf %37, %36 : vector<8x128xf32>
    %39 = vector.extract_strided_slice %26 {offsets = [0, 128], sizes = [8, 128], strides = [1, 1]} : vector<8x384xf32> to vector<8x128xf32>
    %40 = vector.extract_strided_slice %28 {offsets = [0, 128], sizes = [8, 128], strides = [1, 1]} : vector<8x384xf32> to vector<8x128xf32>
    %41 = arith.addf %39, %40 : vector<8x128xf32>
    %cst_29 = arith.constant 5.000000e-01 : f32
    %42 = vector.broadcast %cst_29 : f32 to vector<8x128xf32>
    %43 = arith.mulf %42, %41 : vector<8x128xf32>
    %44 = math.tanh %43 : vector<8x128xf32>
    %cst_30 = arith.constant 1.000000e+00 : f32
    %45 = vector.broadcast %cst_30 : f32 to vector<8x128xf32>
    %46 = arith.addf %44, %45 : vector<8x128xf32>
    %cst_31 = arith.constant 5.000000e-01 : f32
    %47 = vector.broadcast %cst_31 : f32 to vector<8x128xf32>
    %48 = arith.mulf %47, %46 : vector<8x128xf32>
    %49 = vector.extract_strided_slice %26 {offsets = [0, 256], sizes = [8, 128], strides = [1, 1]} : vector<8x384xf32> to vector<8x128xf32>
    %50 = vector.extract_strided_slice %28 {offsets = [0, 256], sizes = [8, 128], strides = [1, 1]} : vector<8x384xf32> to vector<8x128xf32>
    %51 = arith.addf %50, %5 : vector<8x128xf32>
    %52 = arith.mulf %38, %51 : vector<8x128xf32>
    %53 = arith.addf %49, %52 : vector<8x128xf32>
    %54 = math.tanh %53 : vector<8x128xf32>
    %cst_32 = arith.constant 1.000000e+00 : f32
    %55 = vector.broadcast %cst_32 : f32 to vector<8x128xf32>
    %56 = arith.subf %55, %48 : vector<8x128xf32>
    %57 = arith.mulf %56, %54 : vector<8x128xf32>
    %58 = arith.mulf %48, %21 : vector<8x128xf32>
    %59 = arith.addf %57, %58 : vector<8x128xf32>
    %60 = arith.truncf %59 : vector<8x128xf32> to vector<8x128xbf16>
    %c0_33 = arith.constant 0 : index
    %c0_34 = arith.constant 0 : index
    %61 = vector.load %arg7[%c0_33, %c0_34] : memref<128x384xbf16, #tpu.memory_space<vmem>>, vector<128x384xbf16>
    %cst_35 = arith.constant dense<0.000000e+00> : vector<8x384xf32>
    %62 = tpu.matmul %60, %61, %cst_35 {dimension_numbers = #tpu.dot_dimension_numbers<[1], [0], [0], [1], [0, 0, 1, 1], [], []>} : vector<8x128xbf16>, vector<128x384xbf16>, vector<8x384xf32> -> vector<8x384xf32>
    %63 = arith.addf %62, %11 : vector<8x384xf32>
    %c0_36 = arith.constant 0 : index
    %c0_37 = arith.constant 0 : index
    %64 = vector.load %arg8[%c0_36, %c0_37] : memref<128x384xf32, #tpu.memory_space<vmem>>, vector<128x384xf32>
    %cst_38 = arith.constant dense<0.000000e+00> : vector<8x384xf32>
    %65 = tpu.matmul %23, %64, %cst_38 {dimension_numbers = #tpu.dot_dimension_numbers<[1], [0], [0], [1], [0, 0, 1, 1], [], []>} : vector<8x128xf32>, vector<128x384xf32>, vector<8x384xf32> -> vector<8x384xf32>
    %66 = vector.extract_strided_slice %63 {offsets = [0, 0], sizes = [8, 128], strides = [1, 1]} : vector<8x384xf32> to vector<8x128xf32>
    %67 = vector.extract_strided_slice %65 {offsets = [0, 0], sizes = [8, 128], strides = [1, 1]} : vector<8x384xf32> to vector<8x128xf32>
    %68 = arith.addf %66, %67 : vector<8x128xf32>
    %cst_39 = arith.constant 5.000000e-01 : f32
    %69 = vector.broadcast %cst_39 : f32 to vector<8x128xf32>
    %70 = arith.mulf %69, %68 : vector<8x128xf32>
    %71 = math.tanh %70 : vector<8x128xf32>
    %cst_40 = arith.constant 1.000000e+00 : f32
    %72 = vector.broadcast %cst_40 : f32 to vector<8x128xf32>
    %73 = arith.addf %71, %72 : vector<8x128xf32>
    %cst_41 = arith.constant 5.000000e-01 : f32
    %74 = vector.broadcast %cst_41 : f32 to vector<8x128xf32>
    %75 = arith.mulf %74, %73 : vector<8x128xf32>
    %76 = vector.extract_strided_slice %63 {offsets = [0, 128], sizes = [8, 128], strides = [1, 1]} : vector<8x384xf32> to vector<8x128xf32>
    %77 = vector.extract_strided_slice %65 {offsets = [0, 128], sizes = [8, 128], strides = [1, 1]} : vector<8x384xf32> to vector<8x128xf32>
    %78 = arith.addf %76, %77 : vector<8x128xf32>
    %cst_42 = arith.constant 5.000000e-01 : f32
    %79 = vector.broadcast %cst_42 : f32 to vector<8x128xf32>
    %80 = arith.mulf %79, %78 : vector<8x128xf32>
    %81 = math.tanh %80 : vector<8x128xf32>
    %cst_43 = arith.constant 1.000000e+00 : f32
    %82 = vector.broadcast %cst_43 : f32 to vector<8x128xf32>
    %83 = arith.addf %81, %82 : vector<8x128xf32>
    %cst_44 = arith.constant 5.000000e-01 : f32
    %84 = vector.broadcast %cst_44 : f32 to vector<8x128xf32>
    %85 = arith.mulf %84, %83 : vector<8x128xf32>
    %86 = vector.extract_strided_slice %63 {offsets = [0, 256], sizes = [8, 128], strides = [1, 1]} : vector<8x384xf32> to vector<8x128xf32>
    %87 = vector.extract_strided_slice %65 {offsets = [0, 256], sizes = [8, 128], strides = [1, 1]} : vector<8x384xf32> to vector<8x128xf32>
    %88 = arith.addf %87, %8 : vector<8x128xf32>
    %89 = arith.mulf %75, %88 : vector<8x128xf32>
    %90 = arith.addf %86, %89 : vector<8x128xf32>
    %91 = math.tanh %90 : vector<8x128xf32>
    %cst_45 = arith.constant 1.000000e+00 : f32
    %92 = vector.broadcast %cst_45 : f32 to vector<8x128xf32>
    %93 = arith.subf %92, %85 : vector<8x128xf32>
    %94 = arith.mulf %93, %91 : vector<8x128xf32>
    %95 = arith.mulf %85, %23 : vector<8x128xf32>
    %96 = arith.addf %94, %95 : vector<8x128xf32>
    %97 = arith.index_cast %c0_i32_20 : i32 to index
    %c0_46 = arith.constant 0 : index
    %c0_47 = arith.constant 0 : index
    %98 = vector.load %arg11[%97, %c0_46, %c0_47] : memref<4x8x128xf32, #tpu.memory_space<vmem>>, vector<1x8x128xf32>
    %99 = vector.shape_cast %98 : vector<1x8x128xf32> to vector<8x128xf32>
    %100 = vector.shape_cast %96 : vector<8x128xf32> to vector<1x8x128xf32>
    tpu.vector_store %arg11[%97, %c0_46, %c0_47], %100 {strides = array<i32>} : memref<4x8x128xf32, #tpu.memory_space<vmem>>, vector<1x8x128xf32>,
    %c1_i32 = arith.constant 1 : i32
    %101 = arith.index_cast %c1_i32 : i32 to index
    %c0_48 = arith.constant 0 : index
    %c0_49 = arith.constant 0 : index
    %102 = vector.load %arg13[%101, %c0_48, %c0_49] : memref<4x8x384xf32, #tpu.memory_space<vmem>>, vector<1x8x384xf32>
    %103 = vector.shape_cast %102 : vector<1x8x384xf32> to vector<8x384xf32>
    %c0_50 = arith.constant 0 : index
    %c0_51 = arith.constant 0 : index
    %104 = vector.load %arg4[%c0_50, %c0_51] : memref<128x384xf32, #tpu.memory_space<vmem>>, vector<128x384xf32>
    %cst_52 = arith.constant dense<0.000000e+00> : vector<8x384xf32>
    %105 = tpu.matmul %59, %104, %cst_52 {dimension_numbers = #tpu.dot_dimension_numbers<[1], [0], [0], [1], [0, 0, 1, 1], [], []>} : vector<8x128xf32>, vector<128x384xf32>, vector<8x384xf32> -> vector<8x384xf32>
    %106 = vector.extract_strided_slice %103 {offsets = [0, 0], sizes = [8, 128], strides = [1, 1]} : vector<8x384xf32> to vector<8x128xf32>
    %107 = vector.extract_strided_slice %105 {offsets = [0, 0], sizes = [8, 128], strides = [1, 1]} : vector<8x384xf32> to vector<8x128xf32>
    %108 = arith.addf %106, %107 : vector<8x128xf32>
    %cst_53 = arith.constant 5.000000e-01 : f32
    %109 = vector.broadcast %cst_53 : f32 to vector<8x128xf32>
    %110 = arith.mulf %109, %108 : vector<8x128xf32>
    %111 = math.tanh %110 : vector<8x128xf32>
    %cst_54 = arith.constant 1.000000e+00 : f32
    %112 = vector.broadcast %cst_54 : f32 to vector<8x128xf32>
    %113 = arith.addf %111, %112 : vector<8x128xf32>
    %cst_55 = arith.constant 5.000000e-01 : f32
    %114 = vector.broadcast %cst_55 : f32 to vector<8x128xf32>
    %115 = arith.mulf %114, %113 : vector<8x128xf32>
    %116 = vector.extract_strided_slice %103 {offsets = [0, 128], sizes = [8, 128], strides = [1, 1]} : vector<8x384xf32> to vector<8x128xf32>
    %117 = vector.extract_strided_slice %105 {offsets = [0, 128], sizes = [8, 128], strides = [1, 1]} : vector<8x384xf32> to vector<8x128xf32>
    %118 = arith.addf %116, %117 : vector<8x128xf32>
    %cst_56 = arith.constant 5.000000e-01 : f32
    %119 = vector.broadcast %cst_56 : f32 to vector<8x128xf32>
    %120 = arith.mulf %119, %118 : vector<8x128xf32>
    %121 = math.tanh %120 : vector<8x128xf32>
    %cst_57 = arith.constant 1.000000e+00 : f32
    %122 = vector.broadcast %cst_57 : f32 to vector<8x128xf32>
    %123 = arith.addf %121, %122 : vector<8x128xf32>
    %cst_58 = arith.constant 5.000000e-01 : f32
    %124 = vector.broadcast %cst_58 : f32 to vector<8x128xf32>
    %125 = arith.mulf %124, %123 : vector<8x128xf32>
    %126 = vector.extract_strided_slice %103 {offsets = [0, 256], sizes = [8, 128], strides = [1, 1]} : vector<8x384xf32> to vector<8x128xf32>
    %127 = vector.extract_strided_slice %105 {offsets = [0, 256], sizes = [8, 128], strides = [1, 1]} : vector<8x384xf32> to vector<8x128xf32>
    %128 = arith.addf %127, %5 : vector<8x128xf32>
    %129 = arith.mulf %115, %128 : vector<8x128xf32>
    %130 = arith.addf %126, %129 : vector<8x128xf32>
    %131 = math.tanh %130 : vector<8x128xf32>
    %cst_59 = arith.constant 1.000000e+00 : f32
    %132 = vector.broadcast %cst_59 : f32 to vector<8x128xf32>
    %133 = arith.subf %132, %125 : vector<8x128xf32>
    %134 = arith.mulf %133, %131 : vector<8x128xf32>
    %135 = arith.mulf %125, %59 : vector<8x128xf32>
    %136 = arith.addf %134, %135 : vector<8x128xf32>
    %137 = arith.truncf %136 : vector<8x128xf32> to vector<8x128xbf16>
    %c0_60 = arith.constant 0 : index
    %c0_61 = arith.constant 0 : index
    %138 = vector.load %arg7[%c0_60, %c0_61] : memref<128x384xbf16, #tpu.memory_space<vmem>>, vector<128x384xbf16>
    %cst_62 = arith.constant dense<0.000000e+00> : vector<8x384xf32>
    %139 = tpu.matmul %137, %138, %cst_62 {dimension_numbers = #tpu.dot_dimension_numbers<[1], [0], [0], [1], [0, 0, 1, 1], [], []>} : vector<8x128xbf16>, vector<128x384xbf16>, vector<8x384xf32> -> vector<8x384xf32>
    %140 = arith.addf %139, %11 : vector<8x384xf32>
    %c0_63 = arith.constant 0 : index
    %c0_64 = arith.constant 0 : index
    %141 = vector.load %arg8[%c0_63, %c0_64] : memref<128x384xf32, #tpu.memory_space<vmem>>, vector<128x384xf32>
    %cst_65 = arith.constant dense<0.000000e+00> : vector<8x384xf32>
    %142 = tpu.matmul %96, %141, %cst_65 {dimension_numbers = #tpu.dot_dimension_numbers<[1], [0], [0], [1], [0, 0, 1, 1], [], []>} : vector<8x128xf32>, vector<128x384xf32>, vector<8x384xf32> -> vector<8x384xf32>
    %143 = vector.extract_strided_slice %140 {offsets = [0, 0], sizes = [8, 128], strides = [1, 1]} : vector<8x384xf32> to vector<8x128xf32>
    %144 = vector.extract_strided_slice %142 {offsets = [0, 0], sizes = [8, 128], strides = [1, 1]} : vector<8x384xf32> to vector<8x128xf32>
    %145 = arith.addf %143, %144 : vector<8x128xf32>
    %cst_66 = arith.constant 5.000000e-01 : f32
    %146 = vector.broadcast %cst_66 : f32 to vector<8x128xf32>
    %147 = arith.mulf %146, %145 : vector<8x128xf32>
    %148 = math.tanh %147 : vector<8x128xf32>
    %cst_67 = arith.constant 1.000000e+00 : f32
    %149 = vector.broadcast %cst_67 : f32 to vector<8x128xf32>
    %150 = arith.addf %148, %149 : vector<8x128xf32>
    %cst_68 = arith.constant 5.000000e-01 : f32
    %151 = vector.broadcast %cst_68 : f32 to vector<8x128xf32>
    %152 = arith.mulf %151, %150 : vector<8x128xf32>
    %153 = vector.extract_strided_slice %140 {offsets = [0, 128], sizes = [8, 128], strides = [1, 1]} : vector<8x384xf32> to vector<8x128xf32>
    %154 = vector.extract_strided_slice %142 {offsets = [0, 128], sizes = [8, 128], strides = [1, 1]} : vector<8x384xf32> to vector<8x128xf32>
    %155 = arith.addf %153, %154 : vector<8x128xf32>
    %cst_69 = arith.constant 5.000000e-01 : f32
    %156 = vector.broadcast %cst_69 : f32 to vector<8x128xf32>
    %157 = arith.mulf %156, %155 : vector<8x128xf32>
    %158 = math.tanh %157 : vector<8x128xf32>
    %cst_70 = arith.constant 1.000000e+00 : f32
    %159 = vector.broadcast %cst_70 : f32 to vector<8x128xf32>
    %160 = arith.addf %158, %159 : vector<8x128xf32>
    %cst_71 = arith.constant 5.000000e-01 : f32
    %161 = vector.broadcast %cst_71 : f32 to vector<8x128xf32>
    %162 = arith.mulf %161, %160 : vector<8x128xf32>
    %163 = vector.extract_strided_slice %140 {offsets = [0, 256], sizes = [8, 128], strides = [1, 1]} : vector<8x384xf32> to vector<8x128xf32>
    %164 = vector.extract_strided_slice %142 {offsets = [0, 256], sizes = [8, 128], strides = [1, 1]} : vector<8x384xf32> to vector<8x128xf32>
    %165 = arith.addf %164, %8 : vector<8x128xf32>
    %166 = arith.mulf %152, %165 : vector<8x128xf32>
    %167 = arith.addf %163, %166 : vector<8x128xf32>
    %168 = math.tanh %167 : vector<8x128xf32>
    %cst_72 = arith.constant 1.000000e+00 : f32
    %169 = vector.broadcast %cst_72 : f32 to vector<8x128xf32>
    %170 = arith.subf %169, %162 : vector<8x128xf32>
    %171 = arith.mulf %170, %168 : vector<8x128xf32>
    %172 = arith.mulf %162, %96 : vector<8x128xf32>
    %173 = arith.addf %171, %172 : vector<8x128xf32>
    %174 = arith.index_cast %c1_i32 : i32 to index
    %c0_73 = arith.constant 0 : index
    %c0_74 = arith.constant 0 : index
    %175 = vector.load %arg11[%174, %c0_73, %c0_74] : memref<4x8x128xf32, #tpu.memory_space<vmem>>, vector<1x8x128xf32>
    %176 = vector.shape_cast %175 : vector<1x8x128xf32> to vector<8x128xf32>
    %177 = vector.shape_cast %173 : vector<8x128xf32> to vector<1x8x128xf32>
    tpu.vector_store %arg11[%174, %c0_73, %c0_74], %177 {strides = array<i32>} : memref<4x8x128xf32, #tpu.memory_space<vmem>>, vector<1x8x128xf32>,
    %c2_i32 = arith.constant 2 : i32
    %178 = arith.index_cast %c2_i32 : i32 to index
    %c0_75 = arith.constant 0 : index
    %c0_76 = arith.constant 0 : index
    %179 = vector.load %arg13[%178, %c0_75, %c0_76] : memref<4x8x384xf32, #tpu.memory_space<vmem>>, vector<1x8x384xf32>
    %180 = vector.shape_cast %179 : vector<1x8x384xf32> to vector<8x384xf32>
    %c0_77 = arith.constant 0 : index
    %c0_78 = arith.constant 0 : index
    %181 = vector.load %arg4[%c0_77, %c0_78] : memref<128x384xf32, #tpu.memory_space<vmem>>, vector<128x384xf32>
    %cst_79 = arith.constant dense<0.000000e+00> : vector<8x384xf32>
    %182 = tpu.matmul %136, %181, %cst_79 {dimension_numbers = #tpu.dot_dimension_numbers<[1], [0], [0], [1], [0, 0, 1, 1], [], []>} : vector<8x128xf32>, vector<128x384xf32>, vector<8x384xf32> -> vector<8x384xf32>
    %183 = vector.extract_strided_slice %180 {offsets = [0, 0], sizes = [8, 128], strides = [1, 1]} : vector<8x384xf32> to vector<8x128xf32>
    %184 = vector.extract_strided_slice %182 {offsets = [0, 0], sizes = [8, 128], strides = [1, 1]} : vector<8x384xf32> to vector<8x128xf32>
    %185 = arith.addf %183, %184 : vector<8x128xf32>
    %cst_80 = arith.constant 5.000000e-01 : f32
    %186 = vector.broadcast %cst_80 : f32 to vector<8x128xf32>
    %187 = arith.mulf %186, %185 : vector<8x128xf32>
    %188 = math.tanh %187 : vector<8x128xf32>
    %cst_81 = arith.constant 1.000000e+00 : f32
    %189 = vector.broadcast %cst_81 : f32 to vector<8x128xf32>
    %190 = arith.addf %188, %189 : vector<8x128xf32>
    %cst_82 = arith.constant 5.000000e-01 : f32
    %191 = vector.broadcast %cst_82 : f32 to vector<8x128xf32>
    %192 = arith.mulf %191, %190 : vector<8x128xf32>
    %193 = vector.extract_strided_slice %180 {offsets = [0, 128], sizes = [8, 128], strides = [1, 1]} : vector<8x384xf32> to vector<8x128xf32>
    %194 = vector.extract_strided_slice %182 {offsets = [0, 128], sizes = [8, 128], strides = [1, 1]} : vector<8x384xf32> to vector<8x128xf32>
    %195 = arith.addf %193, %194 : vector<8x128xf32>
    %cst_83 = arith.constant 5.000000e-01 : f32
    %196 = vector.broadcast %cst_83 : f32 to vector<8x128xf32>
    %197 = arith.mulf %196, %195 : vector<8x128xf32>
    %198 = math.tanh %197 : vector<8x128xf32>
    %cst_84 = arith.constant 1.000000e+00 : f32
    %199 = vector.broadcast %cst_84 : f32 to vector<8x128xf32>
    %200 = arith.addf %198, %199 : vector<8x128xf32>
    %cst_85 = arith.constant 5.000000e-01 : f32
    %201 = vector.broadcast %cst_85 : f32 to vector<8x128xf32>
    %202 = arith.mulf %201, %200 : vector<8x128xf32>
    %203 = vector.extract_strided_slice %180 {offsets = [0, 256], sizes = [8, 128], strides = [1, 1]} : vector<8x384xf32> to vector<8x128xf32>
    %204 = vector.extract_strided_slice %182 {offsets = [0, 256], sizes = [8, 128], strides = [1, 1]} : vector<8x384xf32> to vector<8x128xf32>
    %205 = arith.addf %204, %5 : vector<8x128xf32>
    %206 = arith.mulf %192, %205 : vector<8x128xf32>
    %207 = arith.addf %203, %206 : vector<8x128xf32>
    %208 = math.tanh %207 : vector<8x128xf32>
    %cst_86 = arith.constant 1.000000e+00 : f32
    %209 = vector.broadcast %cst_86 : f32 to vector<8x128xf32>
    %210 = arith.subf %209, %202 : vector<8x128xf32>
    %211 = arith.mulf %210, %208 : vector<8x128xf32>
    %212 = arith.mulf %202, %136 : vector<8x128xf32>
    %213 = arith.addf %211, %212 : vector<8x128xf32>
    %214 = arith.truncf %213 : vector<8x128xf32> to vector<8x128xbf16>
    %c0_87 = arith.constant 0 : index
    %c0_88 = arith.constant 0 : index
    %215 = vector.load %arg7[%c0_87, %c0_88] : memref<128x384xbf16, #tpu.memory_space<vmem>>, vector<128x384xbf16>
    %cst_89 = arith.constant dense<0.000000e+00> : vector<8x384xf32>
    %216 = tpu.matmul %214, %215, %cst_89 {dimension_numbers = #tpu.dot_dimension_numbers<[1], [0], [0], [1], [0, 0, 1, 1], [], []>} : vector<8x128xbf16>, vector<128x384xbf16>, vector<8x384xf32> -> vector<8x384xf32>
    %217 = arith.addf %216, %11 : vector<8x384xf32>
    %c0_90 = arith.constant 0 : index
    %c0_91 = arith.constant 0 : index
    %218 = vector.load %arg8[%c0_90, %c0_91] : memref<128x384xf32, #tpu.memory_space<vmem>>, vector<128x384xf32>
    %cst_92 = arith.constant dense<0.000000e+00> : vector<8x384xf32>
    %219 = tpu.matmul %173, %218, %cst_92 {dimension_numbers = #tpu.dot_dimension_numbers<[1], [0], [0], [1], [0, 0, 1, 1], [], []>} : vector<8x128xf32>, vector<128x384xf32>, vector<8x384xf32> -> vector<8x384xf32>
    %220 = vector.extract_strided_slice %217 {offsets = [0, 0], sizes = [8, 128], strides = [1, 1]} : vector<8x384xf32> to vector<8x128xf32>
    %221 = vector.extract_strided_slice %219 {offsets = [0, 0], sizes = [8, 128], strides = [1, 1]} : vector<8x384xf32> to vector<8x128xf32>
    %222 = arith.addf %220, %221 : vector<8x128xf32>
    %cst_93 = arith.constant 5.000000e-01 : f32
    %223 = vector.broadcast %cst_93 : f32 to vector<8x128xf32>
    %224 = arith.mulf %223, %222 : vector<8x128xf32>
    %225 = math.tanh %224 : vector<8x128xf32>
    %cst_94 = arith.constant 1.000000e+00 : f32
    %226 = vector.broadcast %cst_94 : f32 to vector<8x128xf32>
    %227 = arith.addf %225, %226 : vector<8x128xf32>
    %cst_95 = arith.constant 5.000000e-01 : f32
    %228 = vector.broadcast %cst_95 : f32 to vector<8x128xf32>
    %229 = arith.mulf %228, %227 : vector<8x128xf32>
    %230 = vector.extract_strided_slice %217 {offsets = [0, 128], sizes = [8, 128], strides = [1, 1]} : vector<8x384xf32> to vector<8x128xf32>
    %231 = vector.extract_strided_slice %219 {offsets = [0, 128], sizes = [8, 128], strides = [1, 1]} : vector<8x384xf32> to vector<8x128xf32>
    %232 = arith.addf %230, %231 : vector<8x128xf32>
    %cst_96 = arith.constant 5.000000e-01 : f32
    %233 = vector.broadcast %cst_96 : f32 to vector<8x128xf32>
    %234 = arith.mulf %233, %232 : vector<8x128xf32>
    %235 = math.tanh %234 : vector<8x128xf32>
    %cst_97 = arith.constant 1.000000e+00 : f32
    %236 = vector.broadcast %cst_97 : f32 to vector<8x128xf32>
    %237 = arith.addf %235, %236 : vector<8x128xf32>
    %cst_98 = arith.constant 5.000000e-01 : f32
    %238 = vector.broadcast %cst_98 : f32 to vector<8x128xf32>
    %239 = arith.mulf %238, %237 : vector<8x128xf32>
    %240 = vector.extract_strided_slice %217 {offsets = [0, 256], sizes = [8, 128], strides = [1, 1]} : vector<8x384xf32> to vector<8x128xf32>
    %241 = vector.extract_strided_slice %219 {offsets = [0, 256], sizes = [8, 128], strides = [1, 1]} : vector<8x384xf32> to vector<8x128xf32>
    %242 = arith.addf %241, %8 : vector<8x128xf32>
    %243 = arith.mulf %229, %242 : vector<8x128xf32>
    %244 = arith.addf %240, %243 : vector<8x128xf32>
    %245 = math.tanh %244 : vector<8x128xf32>
    %cst_99 = arith.constant 1.000000e+00 : f32
    %246 = vector.broadcast %cst_99 : f32 to vector<8x128xf32>
    %247 = arith.subf %246, %239 : vector<8x128xf32>
    %248 = arith.mulf %247, %245 : vector<8x128xf32>
    %249 = arith.mulf %239, %173 : vector<8x128xf32>
    %250 = arith.addf %248, %249 : vector<8x128xf32>
    %251 = arith.index_cast %c2_i32 : i32 to index
    %c0_100 = arith.constant 0 : index
    %c0_101 = arith.constant 0 : index
    %252 = vector.load %arg11[%251, %c0_100, %c0_101] : memref<4x8x128xf32, #tpu.memory_space<vmem>>, vector<1x8x128xf32>
    %253 = vector.shape_cast %252 : vector<1x8x128xf32> to vector<8x128xf32>
    %254 = vector.shape_cast %250 : vector<8x128xf32> to vector<1x8x128xf32>
    tpu.vector_store %arg11[%251, %c0_100, %c0_101], %254 {strides = array<i32>} : memref<4x8x128xf32, #tpu.memory_space<vmem>>, vector<1x8x128xf32>,
    %c3_i32 = arith.constant 3 : i32
    %255 = arith.index_cast %c3_i32 : i32 to index
    %c0_102 = arith.constant 0 : index
    %c0_103 = arith.constant 0 : index
    %256 = vector.load %arg13[%255, %c0_102, %c0_103] : memref<4x8x384xf32, #tpu.memory_space<vmem>>, vector<1x8x384xf32>
    %257 = vector.shape_cast %256 : vector<1x8x384xf32> to vector<8x384xf32>
    %c0_104 = arith.constant 0 : index
    %c0_105 = arith.constant 0 : index
    %258 = vector.load %arg4[%c0_104, %c0_105] : memref<128x384xf32, #tpu.memory_space<vmem>>, vector<128x384xf32>
    %cst_106 = arith.constant dense<0.000000e+00> : vector<8x384xf32>
    %259 = tpu.matmul %213, %258, %cst_106 {dimension_numbers = #tpu.dot_dimension_numbers<[1], [0], [0], [1], [0, 0, 1, 1], [], []>} : vector<8x128xf32>, vector<128x384xf32>, vector<8x384xf32> -> vector<8x384xf32>
    %260 = vector.extract_strided_slice %257 {offsets = [0, 0], sizes = [8, 128], strides = [1, 1]} : vector<8x384xf32> to vector<8x128xf32>
    %261 = vector.extract_strided_slice %259 {offsets = [0, 0], sizes = [8, 128], strides = [1, 1]} : vector<8x384xf32> to vector<8x128xf32>
    %262 = arith.addf %260, %261 : vector<8x128xf32>
    %cst_107 = arith.constant 5.000000e-01 : f32
    %263 = vector.broadcast %cst_107 : f32 to vector<8x128xf32>
    %264 = arith.mulf %263, %262 : vector<8x128xf32>
    %265 = math.tanh %264 : vector<8x128xf32>
    %cst_108 = arith.constant 1.000000e+00 : f32
    %266 = vector.broadcast %cst_108 : f32 to vector<8x128xf32>
    %267 = arith.addf %265, %266 : vector<8x128xf32>
    %cst_109 = arith.constant 5.000000e-01 : f32
    %268 = vector.broadcast %cst_109 : f32 to vector<8x128xf32>
    %269 = arith.mulf %268, %267 : vector<8x128xf32>
    %270 = vector.extract_strided_slice %257 {offsets = [0, 128], sizes = [8, 128], strides = [1, 1]} : vector<8x384xf32> to vector<8x128xf32>
    %271 = vector.extract_strided_slice %259 {offsets = [0, 128], sizes = [8, 128], strides = [1, 1]} : vector<8x384xf32> to vector<8x128xf32>
    %272 = arith.addf %270, %271 : vector<8x128xf32>
    %cst_110 = arith.constant 5.000000e-01 : f32
    %273 = vector.broadcast %cst_110 : f32 to vector<8x128xf32>
    %274 = arith.mulf %273, %272 : vector<8x128xf32>
    %275 = math.tanh %274 : vector<8x128xf32>
    %cst_111 = arith.constant 1.000000e+00 : f32
    %276 = vector.broadcast %cst_111 : f32 to vector<8x128xf32>
    %277 = arith.addf %275, %276 : vector<8x128xf32>
    %cst_112 = arith.constant 5.000000e-01 : f32
    %278 = vector.broadcast %cst_112 : f32 to vector<8x128xf32>
    %279 = arith.mulf %278, %277 : vector<8x128xf32>
    %280 = vector.extract_strided_slice %257 {offsets = [0, 256], sizes = [8, 128], strides = [1, 1]} : vector<8x384xf32> to vector<8x128xf32>
    %281 = vector.extract_strided_slice %259 {offsets = [0, 256], sizes = [8, 128], strides = [1, 1]} : vector<8x384xf32> to vector<8x128xf32>
    %282 = arith.addf %281, %5 : vector<8x128xf32>
    %283 = arith.mulf %269, %282 : vector<8x128xf32>
    %284 = arith.addf %280, %283 : vector<8x128xf32>
    %285 = math.tanh %284 : vector<8x128xf32>
    %cst_113 = arith.constant 1.000000e+00 : f32
    %286 = vector.broadcast %cst_113 : f32 to vector<8x128xf32>
    %287 = arith.subf %286, %279 : vector<8x128xf32>
    %288 = arith.mulf %287, %285 : vector<8x128xf32>
    %289 = arith.mulf %279, %213 : vector<8x128xf32>
    %290 = arith.addf %288, %289 : vector<8x128xf32>
    %291 = arith.truncf %290 : vector<8x128xf32> to vector<8x128xbf16>
    %c0_114 = arith.constant 0 : index
    %c0_115 = arith.constant 0 : index
    %292 = vector.load %arg7[%c0_114, %c0_115] : memref<128x384xbf16, #tpu.memory_space<vmem>>, vector<128x384xbf16>
    %cst_116 = arith.constant dense<0.000000e+00> : vector<8x384xf32>
    %293 = tpu.matmul %291, %292, %cst_116 {dimension_numbers = #tpu.dot_dimension_numbers<[1], [0], [0], [1], [0, 0, 1, 1], [], []>} : vector<8x128xbf16>, vector<128x384xbf16>, vector<8x384xf32> -> vector<8x384xf32>
    %294 = arith.addf %293, %11 : vector<8x384xf32>
    %c0_117 = arith.constant 0 : index
    %c0_118 = arith.constant 0 : index
    %295 = vector.load %arg8[%c0_117, %c0_118] : memref<128x384xf32, #tpu.memory_space<vmem>>, vector<128x384xf32>
    %cst_119 = arith.constant dense<0.000000e+00> : vector<8x384xf32>
    %296 = tpu.matmul %250, %295, %cst_119 {dimension_numbers = #tpu.dot_dimension_numbers<[1], [0], [0], [1], [0, 0, 1, 1], [], []>} : vector<8x128xf32>, vector<128x384xf32>, vector<8x384xf32> -> vector<8x384xf32>
    %297 = vector.extract_strided_slice %294 {offsets = [0, 0], sizes = [8, 128], strides = [1, 1]} : vector<8x384xf32> to vector<8x128xf32>
    %298 = vector.extract_strided_slice %296 {offsets = [0, 0], sizes = [8, 128], strides = [1, 1]} : vector<8x384xf32> to vector<8x128xf32>
    %299 = arith.addf %297, %298 : vector<8x128xf32>
    %cst_120 = arith.constant 5.000000e-01 : f32
    %300 = vector.broadcast %cst_120 : f32 to vector<8x128xf32>
    %301 = arith.mulf %300, %299 : vector<8x128xf32>
    %302 = math.tanh %301 : vector<8x128xf32>
    %cst_121 = arith.constant 1.000000e+00 : f32
    %303 = vector.broadcast %cst_121 : f32 to vector<8x128xf32>
    %304 = arith.addf %302, %303 : vector<8x128xf32>
    %cst_122 = arith.constant 5.000000e-01 : f32
    %305 = vector.broadcast %cst_122 : f32 to vector<8x128xf32>
    %306 = arith.mulf %305, %304 : vector<8x128xf32>
    %307 = vector.extract_strided_slice %294 {offsets = [0, 128], sizes = [8, 128], strides = [1, 1]} : vector<8x384xf32> to vector<8x128xf32>
    %308 = vector.extract_strided_slice %296 {offsets = [0, 128], sizes = [8, 128], strides = [1, 1]} : vector<8x384xf32> to vector<8x128xf32>
    %309 = arith.addf %307, %308 : vector<8x128xf32>
    %cst_123 = arith.constant 5.000000e-01 : f32
    %310 = vector.broadcast %cst_123 : f32 to vector<8x128xf32>
    %311 = arith.mulf %310, %309 : vector<8x128xf32>
    %312 = math.tanh %311 : vector<8x128xf32>
    %cst_124 = arith.constant 1.000000e+00 : f32
    %313 = vector.broadcast %cst_124 : f32 to vector<8x128xf32>
    %314 = arith.addf %312, %313 : vector<8x128xf32>
    %cst_125 = arith.constant 5.000000e-01 : f32
    %315 = vector.broadcast %cst_125 : f32 to vector<8x128xf32>
    %316 = arith.mulf %315, %314 : vector<8x128xf32>
    %317 = vector.extract_strided_slice %294 {offsets = [0, 256], sizes = [8, 128], strides = [1, 1]} : vector<8x384xf32> to vector<8x128xf32>
    %318 = vector.extract_strided_slice %296 {offsets = [0, 256], sizes = [8, 128], strides = [1, 1]} : vector<8x384xf32> to vector<8x128xf32>
    %319 = arith.addf %318, %8 : vector<8x128xf32>
    %320 = arith.mulf %306, %319 : vector<8x128xf32>
    %321 = arith.addf %317, %320 : vector<8x128xf32>
    %322 = math.tanh %321 : vector<8x128xf32>
    %cst_126 = arith.constant 1.000000e+00 : f32
    %323 = vector.broadcast %cst_126 : f32 to vector<8x128xf32>
    %324 = arith.subf %323, %316 : vector<8x128xf32>
    %325 = arith.mulf %324, %322 : vector<8x128xf32>
    %326 = arith.mulf %316, %250 : vector<8x128xf32>
    %327 = arith.addf %325, %326 : vector<8x128xf32>
    %328 = arith.index_cast %c3_i32 : i32 to index
    %c0_127 = arith.constant 0 : index
    %c0_128 = arith.constant 0 : index
    %329 = vector.load %arg11[%328, %c0_127, %c0_128] : memref<4x8x128xf32, #tpu.memory_space<vmem>>, vector<1x8x128xf32>
    %330 = vector.shape_cast %329 : vector<1x8x128xf32> to vector<8x128xf32>
    %331 = vector.shape_cast %327 : vector<8x128xf32> to vector<1x8x128xf32>
    tpu.vector_store %arg11[%328, %c0_127, %c0_128], %331 {strides = array<i32>} : memref<4x8x128xf32, #tpu.memory_space<vmem>>, vector<1x8x128xf32>,
    %c4_i32 = arith.constant 4 : i32
    %c0_129 = arith.constant 0 : index
    %c0_130 = arith.constant 0 : index
    %c0_131 = arith.constant 0 : index
    %332 = vector.load %arg12[%c0_129, %c0_130, %c0_131] : memref<2x8x128xf32, #tpu.memory_space<vmem>>, vector<1x8x128xf32>
    %333 = vector.shape_cast %332 : vector<1x8x128xf32> to vector<8x128xf32>
    %334 = vector.shape_cast %290 : vector<8x128xf32> to vector<1x8x128xf32>
    tpu.vector_store %arg12[%c0_129, %c0_130, %c0_131], %334 {strides = array<i32>} : memref<2x8x128xf32, #tpu.memory_space<vmem>>, vector<1x8x128xf32>,
    %c1_132 = arith.constant 1 : index
    %c0_133 = arith.constant 0 : index
    %c0_134 = arith.constant 0 : index
    %335 = vector.load %arg12[%c1_132, %c0_133, %c0_134] : memref<2x8x128xf32, #tpu.memory_space<vmem>>, vector<1x8x128xf32>
    %336 = vector.shape_cast %335 : vector<1x8x128xf32> to vector<8x128xf32>
    %337 = vector.shape_cast %327 : vector<8x128xf32> to vector<1x8x128xf32>
    tpu.vector_store %arg12[%c1_132, %c0_133, %c0_134], %337 {strides = array<i32>} : memref<2x8x128xf32, #tpu.memory_space<vmem>>, vector<1x8x128xf32>,
    return
  }
  func.func @transform_0(%arg0: i32) -> (i32, i32) {
    %c0_i32 = arith.constant 0 : i32
    %c0_i32_0 = arith.constant 0 : i32
    return %arg0, %c0_i32 : i32, i32
  }
  func.func @transform_1(%arg0: i32) -> (i32, i32, i32) {
    %c0_i32 = arith.constant 0 : i32
    %c0_i32_0 = arith.constant 0 : i32
    %c0_i32_1 = arith.constant 0 : i32
    %c0_i32_2 = arith.constant 0 : i32
    return %c0_i32, %c0_i32_0, %c0_i32_1 : i32, i32, i32
  }
  func.func @transform_2(%arg0: i32) -> (i32, i32) {
    %c0_i32 = arith.constant 0 : i32
    %c0_i32_0 = arith.constant 0 : i32
    %c0_i32_1 = arith.constant 0 : i32
    return %c0_i32, %c0_i32_0 : i32, i32
  }
  func.func @transform_3(%arg0: i32) -> (i32, i32) {
    %c0_i32 = arith.constant 0 : i32
    %c0_i32_0 = arith.constant 0 : i32
    %c0_i32_1 = arith.constant 0 : i32
    return %c0_i32, %c0_i32_0 : i32, i32
  }
  func.func @transform_4(%arg0: i32) -> (i32, i32) {
    %c0_i32 = arith.constant 0 : i32
    %c0_i32_0 = arith.constant 0 : i32
    %c0_i32_1 = arith.constant 0 : i32
    return %c0_i32, %c0_i32_0 : i32, i32
  }
  func.func @transform_5(%arg0: i32) -> (i32, i32) {
    %c0_i32 = arith.constant 0 : i32
    %c0_i32_0 = arith.constant 0 : i32
    %c0_i32_1 = arith.constant 0 : i32
    return %c0_i32, %c0_i32_0 : i32, i32
  }
  func.func @transform_6(%arg0: i32) -> (i32, i32) {
    %c0_i32 = arith.constant 0 : i32
    %c0_i32_0 = arith.constant 0 : i32
    %c0_i32_1 = arith.constant 0 : i32
    return %c0_i32, %c0_i32_0 : i32, i32
  }
  func.func @transform_7(%arg0: i32) -> (i32, i32) {
    %c0_i32 = arith.constant 0 : i32
    %c0_i32_0 = arith.constant 0 : i32
    %c0_i32_1 = arith.constant 0 : i32
    return %c0_i32, %c0_i32_0 : i32, i32
  }
  func.func @transform_8(%arg0: i32) -> (i32, i32) {
    %c0_i32 = arith.constant 0 : i32
    %c0_i32_0 = arith.constant 0 : i32
    %c0_i32_1 = arith.constant 0 : i32
    return %c0_i32, %c0_i32_0 : i32, i32
  }
  func.func @transform_9(%arg0: i32) -> (i32, i32) {
    %c0_i32 = arith.constant 0 : i32
    %c0_i32_0 = arith.constant 0 : i32
    %c0_i32_1 = arith.constant 0 : i32
    return %c0_i32, %c0_i32_0 : i32, i32
  }
  func.func @transform_10(%arg0: i32) -> (i32, i32, i32) {
    %c0_i32 = arith.constant 0 : i32
    %c0_i32_0 = arith.constant 0 : i32
    %c0_i32_1 = arith.constant 0 : i32
    return %arg0, %c0_i32, %c0_i32_0 : i32, i32, i32
  }
  func.func @transform_11(%arg0: i32) -> (i32, i32, i32) {
    %c0_i32 = arith.constant 0 : i32
    %c0_i32_0 = arith.constant 0 : i32
    %c0_i32_1 = arith.constant 0 : i32
    %c0_i32_2 = arith.constant 0 : i32
    return %c0_i32, %c0_i32_0, %c0_i32_1 : i32, i32, i32
  }
}

module attributes {stable_mosaic.version = 11 : i64} {
  func.func @kernel(%arg0: i32, %arg1: memref<32x128xf32, #tpu.memory_space<vmem>>, %arg2: memref<128x128xbf16, #tpu.memory_space<vmem>>, %arg3: memref<1x128xf32, #tpu.memory_space<vmem>>, %arg4: memref<128x128xbf16, #tpu.memory_space<vmem>>, %arg5: memref<1x128xf32, #tpu.memory_space<vmem>>, %arg6: memref<32x128xf32, #tpu.memory_space<vmem>>) attributes {dimension_semantics = [#tpu.dimension_semantics<parallel>], iteration_bounds = array<i64: 2>, scalar_prefetch = 0 : i64, scratch_operands = 0 : i64, tpu.core_type = #tpu.core_type<tc>, window_params = [{transform_indices = @transform_0, window_bounds = array<i64: 32, 128>}, {pipeline_mode = #tpu.pipeline_mode<synchronous>, transform_indices = @transform_1, window_bounds = array<i64: 128, 128>}, {pipeline_mode = #tpu.pipeline_mode<synchronous>, transform_indices = @transform_2, window_bounds = array<i64: 1, 128>}, {pipeline_mode = #tpu.pipeline_mode<synchronous>, transform_indices = @transform_3, window_bounds = array<i64: 128, 128>}, {pipeline_mode = #tpu.pipeline_mode<synchronous>, transform_indices = @transform_4, window_bounds = array<i64: 1, 128>}, {transform_indices = @transform_5, window_bounds = array<i64: 32, 128>}]} {
    %c0 = arith.constant 0 : index
    %c0_0 = arith.constant 0 : index
    %0 = vector.load %arg1[%c0, %c0_0] : memref<32x128xf32, #tpu.memory_space<vmem>>, vector<32x128xf32>
    %1 = arith.truncf %0 : vector<32x128xf32> to vector<32x128xbf16>
    %c0_1 = arith.constant 0 : index
    %c0_2 = arith.constant 0 : index
    %2 = vector.load %arg2[%c0_1, %c0_2] : memref<128x128xbf16, #tpu.memory_space<vmem>>, vector<128x128xbf16>
    %cst = arith.constant dense<0.000000e+00> : vector<32x128xf32>
    %3 = tpu.matmul %1, %2, %cst {dimension_numbers = #tpu.dot_dimension_numbers<[1], [0], [0], [1], [0, 0, 1, 1], [], []>} : vector<32x128xbf16>, vector<128x128xbf16>, vector<32x128xf32> -> vector<32x128xf32>
    %c0_3 = arith.constant 0 : index
    %c0_4 = arith.constant 0 : index
    %4 = vector.load %arg3[%c0_3, %c0_4] : memref<1x128xf32, #tpu.memory_space<vmem>>, vector<1x128xf32>
    %5 = vector.broadcast %4 : vector<1x128xf32> to vector<32x128xf32>
    %6 = arith.addf %3, %5 : vector<32x128xf32>
    %cst_5 = arith.constant 0.00999999977 : f32
    %7 = vector.broadcast %cst_5 : f32 to vector<32x128xf32>
    %8 = arith.mulf %7, %6 : vector<32x128xf32>
    %9 = arith.maximumf %6, %8 : vector<32x128xf32>
    %10 = arith.truncf %9 : vector<32x128xf32> to vector<32x128xbf16>
    %c0_6 = arith.constant 0 : index
    %c0_7 = arith.constant 0 : index
    %11 = vector.load %arg4[%c0_6, %c0_7] : memref<128x128xbf16, #tpu.memory_space<vmem>>, vector<128x128xbf16>
    %cst_8 = arith.constant dense<0.000000e+00> : vector<32x128xf32>
    %12 = tpu.matmul %10, %11, %cst_8 {dimension_numbers = #tpu.dot_dimension_numbers<[1], [0], [0], [1], [0, 0, 1, 1], [], []>} : vector<32x128xbf16>, vector<128x128xbf16>, vector<32x128xf32> -> vector<32x128xf32>
    %c0_9 = arith.constant 0 : index
    %c0_10 = arith.constant 0 : index
    %13 = vector.load %arg5[%c0_9, %c0_10] : memref<1x128xf32, #tpu.memory_space<vmem>>, vector<1x128xf32>
    %14 = vector.broadcast %13 : vector<1x128xf32> to vector<32x128xf32>
    %15 = arith.addf %12, %14 : vector<32x128xf32>
    %c0_11 = arith.constant 0 : index
    %c0_12 = arith.constant 0 : index
    %16 = vector.load %arg6[%c0_11, %c0_12] : memref<32x128xf32, #tpu.memory_space<vmem>>, vector<32x128xf32>
    tpu.vector_store %arg6[%c0_11, %c0_12], %15 {strides = array<i32>} : memref<32x128xf32, #tpu.memory_space<vmem>>, vector<32x128xf32>,
    return
  }
  func.func @transform_0(%arg0: i32) -> (i32, i32) {
    %c0_i32 = arith.constant 0 : i32
    %c0_i32_0 = arith.constant 0 : i32
    return %arg0, %c0_i32 : i32, i32
  }
  func.func @transform_1(%arg0: i32) -> (i32, i32) {
    %c0_i32 = arith.constant 0 : i32
    %c0_i32_0 = arith.constant 0 : i32
    %c0_i32_1 = arith.constant 0 : i32
    return %c0_i32, %c0_i32_0 : i32, i32
  }
  func.func @transform_2(%arg0: i32) -> (i32, i32) {
    %c0_i32 = arith.constant 0 : i32
    %c0_i32_0 = arith.constant 0 : i32
    %c0_i32_1 = arith.constant 0 : i32
    return %c0_i32, %c0_i32_0 : i32, i32
  }
  func.func @transform_3(%arg0: i32) -> (i32, i32) {
    %c0_i32 = arith.constant 0 : i32
    %c0_i32_0 = arith.constant 0 : i32
    %c0_i32_1 = arith.constant 0 : i32
    return %c0_i32, %c0_i32_0 : i32, i32
  }
  func.func @transform_4(%arg0: i32) -> (i32, i32) {
    %c0_i32 = arith.constant 0 : i32
    %c0_i32_0 = arith.constant 0 : i32
    %c0_i32_1 = arith.constant 0 : i32
    return %c0_i32, %c0_i32_0 : i32, i32
  }
  func.func @transform_5(%arg0: i32) -> (i32, i32) {
    %c0_i32 = arith.constant 0 : i32
    %c0_i32_0 = arith.constant 0 : i32
    return %arg0, %c0_i32 : i32, i32
  }
}

</mosaic_0001>

<llo_original>
// kernel: _lambda_.3
$region0: #{_lambda_.3}
  #allocation0 [shape = 'u32[]', space=smem, size = 0x4, offset = 0x4, fixed_abs, tag = 'smem constant byte address 0x4 - core index']
  #allocation1 [shape = 'u32[72,128]{1,0:T(1,128)}', space=vmem, size = 0x9000, scoped, tag = 'internal scratch']
  %s0 = inlined_call_operand.vmem [shape: f32[64,128], index: 0, kind: input, shape index: {}]
  %s1 = inlined_call_operand.vmem [shape: bf16[128,128], index: 1, kind: input, shape index: {}]
  %s2 = inlined_call_operand.vmem [shape: f32[1,128], index: 2, kind: input, shape index: {}]
  %s3 = inlined_call_operand.vmem [shape: bf16[128,128], index: 3, kind: input, shape index: {}]
  %s4 = inlined_call_operand.vmem [shape: f32[1,128], index: 4, kind: input, shape index: {}]
  %s5 = inlined_call_operand.vmem [shape: f32[64,128], index: 5, kind: output, shape index: {}]
  %s6 = sld [smem:[#allocation0]]
  $region53: #{_lambda_.3} parent=0
    _
  %s8 = ssub.s32 1, %s6
  %s9 = scalar_select 0, %s8, %s6
  loop: start=0, step=1, limit=4
  $region2: #{_lambda_.3} parent=0 // loop_pre_header
    _
  $region3: #{_lambda_.3} parent=0 // loop_header
    %s11 = sphi 0, %s15
    %p12 = scmp.ge.s32.totalorder %s11, 4
    %s21 = sphi 0, %s23
    %s24 = sphi 0, %s21
    %s25 = sphi 0, %s24
    %s41 = sphi 0, %s25
    %s45 = sphi 0, %s45
    %s47 = sphi 0, %s45
    %s48 = sphi 0, %s47
    %s62 = sphi 0, %s48
    %s66 = sphi 0, %s66
    %s68 = sphi 0, %s66
    %s69 = sphi 0, %s68
    %s83 = sphi 0, %s69
    %s87 = sphi 0, %s87
    %s89 = sphi 0, %s87
    %s90 = sphi 0, %s89
    %s104 = sphi 0, %s90
    %s108 = sphi 0, %s108
    %s110 = sphi 0, %s108
    %s111 = sphi 0, %s110
    %s125 = sphi 0, %s111
    %s131 = sphi 0, %s133
    %s134 = sphi 0, %s131
    %s135 = sphi 0, %s134
    %s151 = sphi 0, %s135
  $region4: #{_lambda_.3} parent=0 // loop_header_branch
    %14 = sbr.rel (%p12) target = $region8
  $region5: #{_lambda_.3} parent=0 // loop_body
    %s16 = ssub.s32 %s11, 1
    %s17 = ssub.s32 %s11, 2
    %s18 = sadd.s32 %s11, 1
    %s19 = ssub.s32 %s11, %s18
    %p20 = scmp.eq.s32.totalorder %s19, 0
    %s22 = sadd.s32 %s21, 1
    %s23 = scalar_select %p20, %s21, %s22
    %p26 = pneg %p20
    %p27 = scmp.eq.s32.totalorder %s11, 1
    %p28 = por %p26, %p27
    %p29 = scmp.ne.s32.totalorder %s21, %s24
    %p30 = scmp.eq.s32.totalorder %s11, 0
    %p31 = por %p29, %p30
    %p32 = scmp.ne.s32.totalorder %s21, %s24
    %p33 = scmp.eq.s32.totalorder %s16, 1
    %p34 = por %p32, %p33
    %p35 = scmp.ne.s32.totalorder %s24, %s25
    %p36 = scmp.eq.s32.totalorder %s16, 0
    %p37 = por %p35, %p36
    %p38 = scmp.ne.s32.totalorder %s24, %s25
    %p39 = scmp.eq.s32.totalorder %s17, 1
    %p40 = por %p38, %p39
    %p42 = scmp.ne.s32.totalorder %s25, %s41
    %p43 = scmp.eq.s32.totalorder %s17, 0
    %p44 = por %p42, %p43
    %s46 = sadd.s32 %s45, 1
    %p49 = scmp.eq.s32.totalorder %s11, 1
    %p50 = scmp.ne.s32.totalorder %s45, %s47
    %p51 = scmp.eq.s32.totalorder %s11, 0
    %p52 = por %p50, %p51
    %p53 = scmp.ne.s32.totalorder %s45, %s47
    %p54 = scmp.eq.s32.totalorder %s16, 1
    %p55 = por %p53, %p54
    %p56 = scmp.ne.s32.totalorder %s47, %s48
    %p57 = scmp.eq.s32.totalorder %s16, 0
    %p58 = por %p56, %p57
    %p59 = scmp.ne.s32.totalorder %s47, %s48
    %p60 = scmp.eq.s32.totalorder %s17, 1
    %p61 = por %p59, %p60
    %p63 = scmp.ne.s32.totalorder %s48, %s62
    %p64 = scmp.eq.s32.totalorder %s17, 0
    %p65 = por %p63, %p64
    %s67 = sadd.s32 %s66, 1
    %p70 = scmp.eq.s32.totalorder %s11, 1
    %p71 = scmp.ne.s32.totalorder %s66, %s68
    %p72 = scmp.eq.s32.totalorder %s11, 0
    %p73 = por %p71, %p72
    %p74 = scmp.ne.s32.totalorder %s66, %s68
    %p75 = scmp.eq.s32.totalorder %s16, 1
    %p76 = por %p74, %p75
    %p77 = scmp.ne.s32.totalorder %s68, %s69
    %p78 = scmp.eq.s32.totalorder %s16, 0
    %p79 = por %p77, %p78
    %p80 = scmp.ne.s32.totalorder %s68, %s69
    %p81 = scmp.eq.s32.totalorder %s17, 1
    %p82 = por %p80, %p81
    %p84 = scmp.ne.s32.totalorder %s69, %s83
    %p85 = scmp.eq.s32.totalorder %s17, 0
    %p86 = por %p84, %p85
    %s88 = sadd.s32 %s87, 1
    %p91 = scmp.eq.s32.totalorder %s11, 1
    %p92 = scmp.ne.s32.totalorder %s87, %s89
    %p93 = scmp.eq.s32.totalorder %s11, 0
    %p94 = por %p92, %p93
    %p95 = scmp.ne.s32.totalorder %s87, %s89
    %p96 = scmp.eq.s32.totalorder %s16, 1
    %p97 = por %p95, %p96
    %p98 = scmp.ne.s32.totalorder %s89, %s90
    %p99 = scmp.eq.s32.totalorder %s16, 0
    %p100 = por %p98, %p99
    %p101 = scmp.ne.s32.totalorder %s89, %s90
    %p102 = scmp.eq.s32.totalorder %s17, 1
    %p103 = por %p101, %p102
    %p105 = scmp.ne.s32.totalorder %s90, %s104
    %p106 = scmp.eq.s32.totalorder %s17, 0
    %p107 = por %p105, %p106
    %s109 = sadd.s32 %s108, 1
    %p112 = scmp.eq.s32.totalorder %s11, 1
    %p113 = scmp.ne.s32.totalorder %s108, %s110
    %p114 = scmp.eq.s32.totalorder %s11, 0
    %p115 = por %p113, %p114
    %p116 = scmp.ne.s32.totalorder %s108, %s110
    %p117 = scmp.eq.s32.totalorder %s16, 1
    %p118 = por %p116, %p117
    %p119 = scmp.ne.s32.totalorder %s110, %s111
    %p120 = scmp.eq.s32.totalorder %s16, 0
    %p121 = por %p119, %p120
    %p122 = scmp.ne.s32.totalorder %s110, %s111
    %p123 = scmp.eq.s32.totalorder %s17, 1
    %p124 = por %p122, %p123
    %p126 = scmp.ne.s32.totalorder %s111, %s125
    %p127 = scmp.eq.s32.totalorder %s17, 0
    %p128 = por %p126, %p127
    %s129 = ssub.s32 %s11, %s18
    %p130 = scmp.eq.s32.totalorder %s129, 0
    %s132 = sadd.s32 %s131, 1
    %s133 = scalar_select %p130, %s131, %s132
    %p136 = pneg %p130
    %p137 = scmp.eq.s32.totalorder %s11, 1
    %p138 = por %p136, %p137
    %p139 = scmp.ne.s32.totalorder %s131, %s134
    %p140 = scmp.eq.s32.totalorder %s11, 0
    %p141 = por %p139, %p140
    %p142 = scmp.ne.s32.totalorder %s131, %s134
    %p143 = scmp.eq.s32.totalorder %s16, 1
    %p144 = por %p142, %p143
    %p145 = scmp.ne.s32.totalorder %s134, %s135
    %p146 = scmp.eq.s32.totalorder %s16, 0
    %p147 = por %p145, %p146
    %p148 = scmp.ne.s32.totalorder %s134, %s135
    %p149 = scmp.eq.s32.totalorder %s17, 1
    %p150 = por %p148, %p149
    %p152 = scmp.ne.s32.totalorder %s135, %s151
    %p153 = scmp.eq.s32.totalorder %s17, 0
    %p154 = por %p152, %p153
    %p155 = scmp.le.s32.totalorder 1, %s11
    %p156 = scmp.lt.s32.totalorder %s11, 3
    %p157 = pnand %p155, %p156
    %p158 = pneg %p157
    // Predicated region
    $region9: #{_lambda_.3} parent=5 // pred_check
      _
    $region10: #{_lambda_.3} parent=5 // pred_check_branch
      %160 = sbr.rel (%p157) target = $region12
    $region11: #{_lambda_.3} parent=5 // pred_region
      %s161 = ssub.s32 %s11, 1
      // Predicated region
      $region13: #{_lambda_.3} parent=11 // pred_check
        %p162 = pneg %p58
      $region14: #{_lambda_.3} parent=11 // pred_check_branch
        %164 = sbr.rel (%p162) target = $region16
      $region15: #{_lambda_.3} parent=11 // pred_region
        _
      $region16: #{_lambda_.3} parent=11 // pred_fallthru
        _
      // Predicated region
      $region17: #{_lambda_.3} parent=11 // pred_check
        %p165 = pneg %p79
      $region18: #{_lambda_.3} parent=11 // pred_check_branch
        %167 = sbr.rel (%p165) target = $region20
      $region19: #{_lambda_.3} parent=11 // pred_region
        _
      $region20: #{_lambda_.3} parent=11 // pred_fallthru
        _
      // Predicated region
      $region21: #{_lambda_.3} parent=11 // pred_check
        %p168 = pneg %p100
      $region22: #{_lambda_.3} parent=11 // pred_check_branch
        %170 = sbr.rel (%p168) target = $region24
      $region23: #{_lambda_.3} parent=11 // pred_region
        _
      $region24: #{_lambda_.3} parent=11 // pred_fallthru
        _
      // Predicated region
      $region25: #{_lambda_.3} parent=11 // pred_check
        %p171 = pneg %p121
      $region26: #{_lambda_.3} parent=11 // pred_check_branch
        %173 = sbr.rel (%p171) target = $region28
      $region27: #{_lambda_.3} parent=11 // pred_region
        _
      $region28: #{_lambda_.3} parent=11 // pred_fallthru
        _
    $region12: #{_lambda_.3} parent=5 // pred_fallthru
      _
    %p174 = scmp.lt.s32.totalorder %s11, 2
    // Predicated region
    $region29: #{_lambda_.3} parent=5 // pred_check
      %p175 = pneg %p174
    $region30: #{_lambda_.3} parent=5 // pred_check_branch
      %177 = sbr.rel (%p175) target = $region32
    $region31: #{_lambda_.3} parent=5 // pred_region
      // Predicated region
      $region33: #{_lambda_.3} parent=31 // pred_check
        %p178 = pneg %p31
      $region34: #{_lambda_.3} parent=31 // pred_check_branch
        %180 = sbr.rel (%p178) target = $region36
      $region35: #{_lambda_.3} parent=31 // pred_region
        %s181 = smul.u32 4, %s11
        %p182 = scmp.lt.s32.totalorder %s181, 7
        %s183 = scalar_select %p182, %s181, 7
        %s184 = smul.addr %s183, 8
        %s185 = scalar_lea.vmem %s0, %s184
        %s186 = smul.u32 4, %s11
      $region36: #{_lambda_.3} parent=31 // pred_fallthru
        _
    $region32: #{_lambda_.3} parent=5 // pred_fallthru
      _
    %p187 = scmp.le.s32.totalorder 1, %s11
    %p188 = scmp.lt.s32.totalorder %s11, 3
    %p189 = pnand %p187, %p188
    %p190 = pneg %p189
    // Predicated region
    $region37: #{_lambda_.3} parent=5 // pred_check
      _
    $region38: #{_lambda_.3} parent=5 // pred_check_branch
      %192 = sbr.rel (%p189) target = $region40
    $region39: #{_lambda_.3} parent=5 // pred_region
      %s193 = ssub.s32 %s11, 1
      %s194 = smul.u32 4, %s16
      %p195 = scmp.lt.s32.totalorder %s194, 7
      %s196 = scalar_select %p195, %s194, 7
      %s197 = smul.addr %s196, 8
      %s198 = scalar_lea.vmem %s0, %s197
      %p199 = pneg %p37
      %p200 = pneg %p34
      %p201 = pneg %p58
      %p202 = pneg %p55
      %p203 = pneg %p79
      %p204 = pneg %p76
      %p205 = pneg %p100
      %p206 = pneg %p97
      %p207 = pneg %p121
      %p208 = pneg %p118
      %p209 = pneg %p147
      %p210 = pneg %p144
      %s211 = smul.u32 4, %s16
      %p212 = scmp.lt.s32.totalorder %s211, 7
      %s213 = scalar_select %p212, %s211, 7
      %s214 = smul.addr %s213, 8
      %s215 = scalar_lea.vmem %s5, %s214
      %s216 = smul.u32 4, %s16
      %p217 = scmp.lt.s32.totalorder %s216, 7
      %s218 = scalar_select %p217, %s216, 7
      %s219 = smul.addr %s218, 8
      %s220 = scalar_lea.vmem %s0, %s219
      %s221 = smul.u32 4, %s16
      %s222 = smul.u32 4, %s16
      %p223 = scmp.lt.s32.totalorder %s222, 7
      %s224 = scalar_select %p223, %s222, 7
      %s225 = smul.addr %s224, 8
      %s226 = scalar_lea.vmem %s5, %s225
      %s227 = smul.u32 4, %s16
      %v228 = vld [vmem:[%s220] sm:$0xff]
      %v229 = vld [vmem:[%s220 + $0x8] sm:$0xff]
      %v230 = vld [vmem:[%s220 + $0x10] sm:$0xff]
      %v231 = vld [vmem:[%s220 + $0x18] sm:$0xff]
      %v232 = vpack.c.bf16 %v229, %v228
      %v233 = vpack.c.bf16 %v231, %v230
      %v234 = vld [vmem:[%s1] sm:$0xf]
      %v235 = vld [vmem:[%s1 + $0x4] sm:$0xf]
      %v236 = vld [vmem:[%s1 + $0x8] sm:$0xf]
      %v237 = vld [vmem:[%s1 + $0xc] sm:$0xf]
      %v238 = vld [vmem:[%s1 + $0x10] sm:$0xf]
      %v239 = vld [vmem:[%s1 + $0x14] sm:$0xf]
      %v240 = vld [vmem:[%s1 + $0x18] sm:$0xf]
      %v241 = vld [vmem:[%s1 + $0x1c] sm:$0xf]
      %v242 = vld [vmem:[%s1 + $0x20] sm:$0xf]
      %v243 = vld [vmem:[%s1 + $0x24] sm:$0xf]
      %v244 = vld [vmem:[%s1 + $0x28] sm:$0xf]
      %v245 = vld [vmem:[%s1 + $0x2c] sm:$0xf]
      %v246 = vld [vmem:[%s1 + $0x30] sm:$0xf]
      %v247 = vld [vmem:[%s1 + $0x34] sm:$0xf]
      %v248 = vld [vmem:[%s1 + $0x38] sm:$0xf]
      %v249 = vld [vmem:[%s1 + $0x3c] sm:$0xf]
      %v250 = vld [vmem:[%s2] sm:$0x1]
      %v252 = vperm.slane %v250, 0
      %v270 = vunpack.c.l.b16 %v234
      %v271 = vunpack.c.l.b16 %v235
      %v272 = vunpack.c.l.b16 %v236
      %v273 = vunpack.c.l.b16 %v237
      %v274 = vunpack.c.l.b16 %v238
      %v275 = vunpack.c.l.b16 %v239
      %v276 = vunpack.c.l.b16 %v240
      %v277 = vunpack.c.l.b16 %v241
      %v278 = vunpack.c.l.b16 %v242
      %v279 = vunpack.c.l.b16 %v243
      %v280 = vunpack.c.l.b16 %v244
      %v281 = vunpack.c.l.b16 %v245
      %v282 = vunpack.c.l.b16 %v246
      %v283 = vunpack.c.l.b16 %v247
      %v284 = vunpack.c.l.b16 %v248
      %v285 = vunpack.c.l.b16 %v249
      %v286 = vpack.c.b16 %v271, %v270
      %v287 = vpack.c.b16 %v273, %v272
      %v288 = vpack.c.b16 %v275, %v274
      %v289 = vpack.c.b16 %v277, %v276
      %v290 = vpack.c.b16 %v279, %v278
      %v291 = vpack.c.b16 %v281, %v280
      %v292 = vpack.c.b16 %v283, %v282
      %v293 = vpack.c.b16 %v285, %v284
      %302 = vmatpush.bf16.msra.mxu0 %v293
      %303 = vmatpush.bf16.msra.mxu0 %v292
      %304 = vmatpush.bf16.msra.mxu0 %v291
      %305 = vmatpush.bf16.msra.mxu0 %v290
      %306 = vmatpush.bf16.msra.mxu0 %v289
      %307 = vmatpush.bf16.msra.mxu0 %v288
      %308 = vmatpush.bf16.msra.mxu0 %v287
      %309 = vmatpush.bf16.msra.mxu0 %v286
      %310 = vmatmul.bf16.gmra.mxu0 %v232
      %v311 = vpop.f32.mrf.mxu0
      %v312 = vadd.f32 %v252, %v311
      %v313 = vpop.f32.mrf.mxu0
      %v314 = vadd.f32 %v252, %v313
      %315 = vmatmul.bf16.gmra.mxu0 %v233
      %v316 = vpop.f32.mrf.mxu0
      %v317 = vadd.f32 %v252, %v316
      %v318 = vpop.f32.mrf.mxu0
      %v319 = vadd.f32 %v252, %v318
      %320 = vdwg.mxu0
      %v321 = vmul.f32 %v312, 0.01
      %v322 = vmul.f32 %v314, 0.01
      %v323 = vmul.f32 %v317, 0.01
      %v324 = vmul.f32 %v319, 0.01
      %v325 = vmax.f32 %v312, %v321
      %v326 = vmax.f32 %v314, %v322
      %v327 = vmax.f32 %v317, %v323
      %v328 = vmax.f32 %v319, %v324
      %v329 = vpack.c.bf16 %v326, %v325
      %v330 = vpack.c.bf16 %v328, %v327
      %v331 = vld [vmem:[%s3] sm:$0xf]
      %v332 = vld [vmem:[%s3 + $0x4] sm:$0xf]
      %v333 = vld [vmem:[%s3 + $0x8] sm:$0xf]
      %v334 = vld [vmem:[%s3 + $0xc] sm:$0xf]
      %v335 = vld [vmem:[%s3 + $0x10] sm:$0xf]
      %v336 = vld [vmem:[%s3 + $0x14] sm:$0xf]
      %v337 = vld [vmem:[%s3 + $0x18] sm:$0xf]
      %v338 = vld [vmem:[%s3 + $0x1c] sm:$0xf]
      %v339 = vld [vmem:[%s3 + $0x20] sm:$0xf]
      %v340 = vld [vmem:[%s3 + $0x24] sm:$0xf]
      %v341 = vld [vmem:[%s3 + $0x28] sm:$0xf]
      %v342 = vld [vmem:[%s3 + $0x2c] sm:$0xf]
      %v343 = vld [vmem:[%s3 + $0x30] sm:$0xf]
      %v344 = vld [vmem:[%s3 + $0x34] sm:$0xf]
      %v345 = vld [vmem:[%s3 + $0x38] sm:$0xf]
      %v346 = vld [vmem:[%s3 + $0x3c] sm:$0xf]
      %v347 = vld [vmem:[%s4] sm:$0x1]
      %v349 = vperm.slane %v347, 0
      %v367 = vunpack.c.l.b16 %v331
      %v368 = vunpack.c.l.b16 %v332
      %v369 = vunpack.c.l.b16 %v333
      %v370 = vunpack.c.l.b16 %v334
      %v371 = vunpack.c.l.b16 %v335
      %v372 = vunpack.c.l.b16 %v336
      %v373 = vunpack.c.l.b16 %v337
      %v374 = vunpack.c.l.b16 %v338
      %v375 = vunpack.c.l.b16 %v339
      %v376 = vunpack.c.l.b16 %v340
      %v377 = vunpack.c.l.b16 %v341
      %v378 = vunpack.c.l.b16 %v342
      %v379 = vunpack.c.l.b16 %v343
      %v380 = vunpack.c.l.b16 %v344
      %v381 = vunpack.c.l.b16 %v345
      %v382 = vunpack.c.l.b16 %v346
      %v383 = vpack.c.b16 %v368, %v367
      %v384 = vpack.c.b16 %v370, %v369
      %v385 = vpack.c.b16 %v372, %v371
      %v386 = vpack.c.b16 %v374, %v373
      %v387 = vpack.c.b16 %v376, %v375
      %v388 = vpack.c.b16 %v378, %v377
      %v389 = vpack.c.b16 %v380, %v379
      %v390 = vpack.c.b16 %v382, %v381
      %399 = vmatpush.bf16.msra.mxu0 %v390
      %400 = vmatpush.bf16.msra.mxu0 %v389
      %401 = vmatpush.bf16.msra.mxu0 %v388
      %402 = vmatpush.bf16.msra.mxu0 %v387
      %403 = vmatpush.bf16.msra.mxu0 %v386
      %404 = vmatpush.bf16.msra.mxu0 %v385
      %405 = vmatpush.bf16.msra.mxu0 %v384
      %406 = vmatpush.bf16.msra.mxu0 %v383
      %407 = vmatmul.bf16.gmra.mxu0 %v329
      %v408 = vpop.f32.mrf.mxu0
      %v409 = vadd.f32 %v349, %v408
      %v410 = vpop.f32.mrf.mxu0
      %v411 = vadd.f32 %v349, %v410
      %412 = vmatmul.bf16.gmra.mxu0 %v330
      %v413 = vpop.f32.mrf.mxu0
      %v414 = vadd.f32 %v349, %v413
      %v415 = vpop.f32.mrf.mxu0
      %v416 = vadd.f32 %v349, %v415
      %417 = vdwg.mxu0
      %418 = vst [vmem:[%s226] sm:$0xff] %v409
      %419 = vst [vmem:[%s226 + $0x8] sm:$0xff] %v411
      %420 = vst [vmem:[%s226 + $0x10] sm:$0xff] %v414
      %421 = vst [vmem:[%s226 + $0x18] sm:$0xff] %v416
      %s422 = smul.u32 4, %s16
      %p423 = scmp.lt.s32.totalorder %s422, 7
      %s424 = scalar_select %p423, %s422, 7
      %s425 = smul.addr %s424, 8
      %s426 = scalar_lea.vmem %s5, %s425
      // Predicated region
      $region41: #{_lambda_.3} parent=39 // pred_check
        %p427 = pneg %p144
      $region42: #{_lambda_.3} parent=39 // pred_check_branch
        %429 = sbr.rel (%p427) target = $region44
      $region43: #{_lambda_.3} parent=39 // pred_region
        %s430 = smul.u32 4, %s16
      $region44: #{_lambda_.3} parent=39 // pred_fallthru
        _
    $region40: #{_lambda_.3} parent=5 // pred_fallthru
      _
    %p431 = scmp.le.s32.totalorder 2, %s11
    // Predicated region
    $region45: #{_lambda_.3} parent=5 // pred_check
      %p432 = pneg %p431
    $region46: #{_lambda_.3} parent=5 // pred_check_branch
      %434 = sbr.rel (%p432) target = $region48
    $region47: #{_lambda_.3} parent=5 // pred_region
      %s435 = ssub.s32 %s11, 2
      // Predicated region
      $region49: #{_lambda_.3} parent=47 // pred_check
        %p436 = pneg %p150
      $region50: #{_lambda_.3} parent=47 // pred_check_branch
        %438 = sbr.rel (%p436) target = $region52
      $region51: #{_lambda_.3} parent=47 // pred_region
        %s439 = smul.u32 4, %s17
        %p440 = scmp.lt.s32.totalorder %s439, 7
        %s441 = scalar_select %p440, %s439, 7
        %s442 = smul.addr %s441, 8
        %s443 = scalar_lea.vmem %s5, %s442
      $region52: #{_lambda_.3} parent=47 // pred_fallthru
        _
    $region48: #{_lambda_.3} parent=5 // pred_fallthru
      _
  $region6: #{_lambda_.3} parent=0 // loop_footer
    %s15 = sadd.s32 1, %s11
  $region7: #{_lambda_.3} parent=0 // loop_footer_branch
    %10 = sbr.rel target = $region3
  $region8: #{_lambda_.3} parent=0 // loop_exit
    _

// kernel: _lambda_.2
$region0: #{_lambda_.2}
  #allocation0 [shape = 'u32[]', space=smem, size = 0x4, offset = 0x4, fixed_abs, tag = 'smem constant byte address 0x4 - core index']
  #allocation1 [shape = 'u32[72,128]{1,0:T(1,128)}', space=vmem, size = 0x9000, scoped, tag = 'internal scratch']
  #allocation2 [shape = 'f32[4,8,384]{2,1,0:T(8,128)}', space=vmem, size = 0xc000, scoped, tag = 'scratch operand']
  %s0 = inlined_call_operand.vmem [shape: bf16[64,128], index: 0, kind: input, shape index: {}]
  %s1 = inlined_call_operand.vmem [shape: f32[2,8,128], index: 1, kind: input, shape index: {}]
  %s2 = inlined_call_operand.vmem [shape: bf16[128,384], index: 2, kind: input, shape index: {}]
  %s3 = inlined_call_operand.vmem [shape: f32[128,384], index: 3, kind: input, shape index: {}]
  %s4 = inlined_call_operand.vmem [shape: f32[1,384], index: 4, kind: input, shape index: {}]
  %s5 = inlined_call_operand.vmem [shape: f32[1,128], index: 5, kind: input, shape index: {}]
  %s6 = inlined_call_operand.vmem [shape: bf16[128,384], index: 6, kind: input, shape index: {}]
  %s7 = inlined_call_operand.vmem [shape: f32[128,384], index: 7, kind: input, shape index: {}]
  %s8 = inlined_call_operand.vmem [shape: f32[1,384], index: 8, kind: input, shape index: {}]
  %s9 = inlined_call_operand.vmem [shape: f32[1,128], index: 9, kind: input, shape index: {}]
  %s10 = inlined_call_operand.vmem [shape: f32[8,8,128], index: 10, kind: output, shape index: {0}]
  %s11 = inlined_call_operand.vmem [shape: f32[2,8,128], index: 11, kind: output, shape index: {1}]
  %12 = xla_tuple %s10, %s11
  %s13 = sld [smem:[#allocation0]]
  $region85: #{_lambda_.2} parent=0
    _
  %s15 = ssub.s32 1, %s13
  %s16 = scalar_select 0, %s15, %s13
  loop: start=0, step=1, limit=4
  $region2: #{_lambda_.2} parent=0 // loop_pre_header
    _
  $region3: #{_lambda_.2} parent=0 // loop_header
    %s18 = sphi 0, %s22
    %p19 = scmp.ge.s32.totalorder %s18, 4
    %s28 = sphi 0, %s30
    %s31 = sphi 0, %s28
    %s32 = sphi 0, %s31
    %s48 = sphi 0, %s32
    %s52 = sphi 0, %s52
    %s54 = sphi 0, %s52
    %s55 = sphi 0, %s54
    %s69 = sphi 0, %s55
    %s73 = sphi 0, %s73
    %s75 = sphi 0, %s73
    %s76 = sphi 0, %s75
    %s90 = sphi 0, %s76
    %s94 = sphi 0, %s94
    %s96 = sphi 0, %s94
    %s97 = sphi 0, %s96
    %s111 = sphi 0, %s97
    %s115 = sphi 0, %s115
    %s117 = sphi 0, %s115
    %s118 = sphi 0, %s117
    %s132 = sphi 0, %s118
    %s136 = sphi 0, %s136
    %s138 = sphi 0, %s136
    %s139 = sphi 0, %s138
    %s153 = sphi 0, %s139
    %s157 = sphi 0, %s157
    %s159 = sphi 0, %s157
    %s160 = sphi 0, %s159
    %s174 = sphi 0, %s160
    %s178 = sphi 0, %s178
    %s180 = sphi 0, %s178
    %s181 = sphi 0, %s180
    %s195 = sphi 0, %s181
    %s199 = sphi 0, %s199
    %s201 = sphi 0, %s199
    %s202 = sphi 0, %s201
    %s216 = sphi 0, %s202
    %s220 = sphi 0, %s220
    %s222 = sphi 0, %s220
    %s223 = sphi 0, %s222
    %s237 = sphi 0, %s223
    %s243 = sphi 0, %s245
    %s246 = sphi 0, %s243
    %s247 = sphi 0, %s246
    %s263 = sphi 0, %s247
    %s267 = sphi 0, %s267
    %s269 = sphi 0, %s267
    %s270 = sphi 0, %s269
    %s284 = sphi 0, %s270
  $region4: #{_lambda_.2} parent=0 // loop_header_branch
    %21 = sbr.rel (%p19) target = $region8
  $region5: #{_lambda_.2} parent=0 // loop_body
    %s23 = ssub.s32 %s18, 1
    %s24 = ssub.s32 %s18, 2
    %s25 = sadd.s32 %s18, 1
    %s26 = ssub.s32 %s18, %s25
    %p27 = scmp.eq.s32.totalorder %s26, 0
    %s29 = sadd.s32 %s28, 1
    %s30 = scalar_select %p27, %s28, %s29
    %p33 = pneg %p27
    %p34 = scmp.eq.s32.totalorder %s18, 1
    %p35 = por %p33, %p34
    %p36 = scmp.ne.s32.totalorder %s28, %s31
    %p37 = scmp.eq.s32.totalorder %s18, 0
    %p38 = por %p36, %p37
    %p39 = scmp.ne.s32.totalorder %s28, %s31
    %p40 = scmp.eq.s32.totalorder %s23, 1
    %p41 = por %p39, %p40
    %p42 = scmp.ne.s32.totalorder %s31, %s32
    %p43 = scmp.eq.s32.totalorder %s23, 0
    %p44 = por %p42, %p43
    %p45 = scmp.ne.s32.totalorder %s31, %s32
    %p46 = scmp.eq.s32.totalorder %s24, 1
    %p47 = por %p45, %p46
    %p49 = scmp.ne.s32.totalorder %s32, %s48
    %p50 = scmp.eq.s32.totalorder %s24, 0
    %p51 = por %p49, %p50
    %s53 = sadd.s32 %s52, 1
    %p56 = scmp.eq.s32.totalorder %s18, 1
    %p57 = scmp.ne.s32.totalorder %s52, %s54
    %p58 = scmp.eq.s32.totalorder %s18, 0
    %p59 = por %p57, %p58
    %p60 = scmp.ne.s32.totalorder %s52, %s54
    %p61 = scmp.eq.s32.totalorder %s23, 1
    %p62 = por %p60, %p61
    %p63 = scmp.ne.s32.totalorder %s54, %s55
    %p64 = scmp.eq.s32.totalorder %s23, 0
    %p65 = por %p63, %p64
    %p66 = scmp.ne.s32.totalorder %s54, %s55
    %p67 = scmp.eq.s32.totalorder %s24, 1
    %p68 = por %p66, %p67
    %p70 = scmp.ne.s32.totalorder %s55, %s69
    %p71 = scmp.eq.s32.totalorder %s24, 0
    %p72 = por %p70, %p71
    %s74 = sadd.s32 %s73, 1
    %p77 = scmp.eq.s32.totalorder %s18, 1
    %p78 = scmp.ne.s32.totalorder %s73, %s75
    %p79 = scmp.eq.s32.totalorder %s18, 0
    %p80 = por %p78, %p79
    %p81 = scmp.ne.s32.totalorder %s73, %s75
    %p82 = scmp.eq.s32.totalorder %s23, 1
    %p83 = por %p81, %p82
    %p84 = scmp.ne.s32.totalorder %s75, %s76
    %p85 = scmp.eq.s32.totalorder %s23, 0
    %p86 = por %p84, %p85
    %p87 = scmp.ne.s32.totalorder %s75, %s76
    %p88 = scmp.eq.s32.totalorder %s24, 1
    %p89 = por %p87, %p88
    %p91 = scmp.ne.s32.totalorder %s76, %s90
    %p92 = scmp.eq.s32.totalorder %s24, 0
    %p93 = por %p91, %p92
    %s95 = sadd.s32 %s94, 1
    %p98 = scmp.eq.s32.totalorder %s18, 1
    %p99 = scmp.ne.s32.totalorder %s94, %s96
    %p100 = scmp.eq.s32.totalorder %s18, 0
    %p101 = por %p99, %p100
    %p102 = scmp.ne.s32.totalorder %s94, %s96
    %p103 = scmp.eq.s32.totalorder %s23, 1
    %p104 = por %p102, %p103
    %p105 = scmp.ne.s32.totalorder %s96, %s97
    %p106 = scmp.eq.s32.totalorder %s23, 0
    %p107 = por %p105, %p106
    %p108 = scmp.ne.s32.totalorder %s96, %s97
    %p109 = scmp.eq.s32.totalorder %s24, 1
    %p110 = por %p108, %p109
    %p112 = scmp.ne.s32.totalorder %s97, %s111
    %p113 = scmp.eq.s32.totalorder %s24, 0
    %p114 = por %p112, %p113
    %s116 = sadd.s32 %s115, 1
    %p119 = scmp.eq.s32.totalorder %s18, 1
    %p120 = scmp.ne.s32.totalorder %s115, %s117
    %p121 = scmp.eq.s32.totalorder %s18, 0
    %p122 = por %p120, %p121
    %p123 = scmp.ne.s32.totalorder %s115, %s117
    %p124 = scmp.eq.s32.totalorder %s23, 1
    %p125 = por %p123, %p124
    %p126 = scmp.ne.s32.totalorder %s117, %s118
    %p127 = scmp.eq.s32.totalorder %s23, 0
    %p128 = por %p126, %p127
    %p129 = scmp.ne.s32.totalorder %s117, %s118
    %p130 = scmp.eq.s32.totalorder %s24, 1
    %p131 = por %p129, %p130
    %p133 = scmp.ne.s32.totalorder %s118, %s132
    %p134 = scmp.eq.s32.totalorder %s24, 0
    %p135 = por %p133, %p134
    %s137 = sadd.s32 %s136, 1
    %p140 = scmp.eq.s32.totalorder %s18, 1
    %p141 = scmp.ne.s32.totalorder %s136, %s138
    %p142 = scmp.eq.s32.totalorder %s18, 0
    %p143 = por %p141, %p142
    %p144 = scmp.ne.s32.totalorder %s136, %s138
    %p145 = scmp.eq.s32.totalorder %s23, 1
    %p146 = por %p144, %p145
    %p147 = scmp.ne.s32.totalorder %s138, %s139
    %p148 = scmp.eq.s32.totalorder %s23, 0
    %p149 = por %p147, %p148
    %p150 = scmp.ne.s32.totalorder %s138, %s139
    %p151 = scmp.eq.s32.totalorder %s24, 1
    %p152 = por %p150, %p151
    %p154 = scmp.ne.s32.totalorder %s139, %s153
    %p155 = scmp.eq.s32.totalorder %s24, 0
    %p156 = por %p154, %p155
    %s158 = sadd.s32 %s157, 1
    %p161 = scmp.eq.s32.totalorder %s18, 1
    %p162 = scmp.ne.s32.totalorder %s157, %s159
    %p163 = scmp.eq.s32.totalorder %s18, 0
    %p164 = por %p162, %p163
    %p165 = scmp.ne.s32.totalorder %s157, %s159
    %p166 = scmp.eq.s32.totalorder %s23, 1
    %p167 = por %p165, %p166
    %p168 = scmp.ne.s32.totalorder %s159, %s160
    %p169 = scmp.eq.s32.totalorder %s23, 0
    %p170 = por %p168, %p169
    %p171 = scmp.ne.s32.totalorder %s159, %s160
    %p172 = scmp.eq.s32.totalorder %s24, 1
    %p173 = por %p171, %p172
    %p175 = scmp.ne.s32.totalorder %s160, %s174
    %p176 = scmp.eq.s32.totalorder %s24, 0
    %p177 = por %p175, %p176
    %s179 = sadd.s32 %s178, 1
    %p182 = scmp.eq.s32.totalorder %s18, 1
    %p183 = scmp.ne.s32.totalorder %s178, %s180
    %p184 = scmp.eq.s32.totalorder %s18, 0
    %p185 = por %p183, %p184
    %p186 = scmp.ne.s32.totalorder %s178, %s180
    %p187 = scmp.eq.s32.totalorder %s23, 1
    %p188 = por %p186, %p187
    %p189 = scmp.ne.s32.totalorder %s180, %s181
    %p190 = scmp.eq.s32.totalorder %s23, 0
    %p191 = por %p189, %p190
    %p192 = scmp.ne.s32.totalorder %s180, %s181
    %p193 = scmp.eq.s32.totalorder %s24, 1
    %p194 = por %p192, %p193
    %p196 = scmp.ne.s32.totalorder %s181, %s195
    %p197 = scmp.eq.s32.totalorder %s24, 0
    %p198 = por %p196, %p197
    %s200 = sadd.s32 %s199, 1
    %p203 = scmp.eq.s32.totalorder %s18, 1
    %p204 = scmp.ne.s32.totalorder %s199, %s201
    %p205 = scmp.eq.s32.totalorder %s18, 0
    %p206 = por %p204, %p205
    %p207 = scmp.ne.s32.totalorder %s199, %s201
    %p208 = scmp.eq.s32.totalorder %s23, 1
    %p209 = por %p207, %p208
    %p210 = scmp.ne.s32.totalorder %s201, %s202
    %p211 = scmp.eq.s32.totalorder %s23, 0
    %p212 = por %p210, %p211
    %p213 = scmp.ne.s32.totalorder %s201, %s202
    %p214 = scmp.eq.s32.totalorder %s24, 1
    %p215 = por %p213, %p214
    %p217 = scmp.ne.s32.totalorder %s202, %s216
    %p218 = scmp.eq.s32.totalorder %s24, 0
    %p219 = por %p217, %p218
    %s221 = sadd.s32 %s220, 1
    %p224 = scmp.eq.s32.totalorder %s18, 1
    %p225 = scmp.ne.s32.totalorder %s220, %s222
    %p226 = scmp.eq.s32.totalorder %s18, 0
    %p227 = por %p225, %p226
    %p228 = scmp.ne.s32.totalorder %s220, %s222
    %p229 = scmp.eq.s32.totalorder %s23, 1
    %p230 = por %p228, %p229
    %p231 = scmp.ne.s32.totalorder %s222, %s223
    %p232 = scmp.eq.s32.totalorder %s23, 0
    %p233 = por %p231, %p232
    %p234 = scmp.ne.s32.totalorder %s222, %s223
    %p235 = scmp.eq.s32.totalorder %s24, 1
    %p236 = por %p234, %p235
    %p238 = scmp.ne.s32.totalorder %s223, %s237
    %p239 = scmp.eq.s32.totalorder %s24, 0
    %p240 = por %p238, %p239
    %s241 = ssub.s32 %s18, %s25
    %p242 = scmp.eq.s32.totalorder %s241, 0
    %s244 = sadd.s32 %s243, 1
    %s245 = scalar_select %p242, %s243, %s244
    %p248 = pneg %p242
    %p249 = scmp.eq.s32.totalorder %s18, 1
    %p250 = por %p248, %p249
    %p251 = scmp.ne.s32.totalorder %s243, %s246
    %p252 = scmp.eq.s32.totalorder %s18, 0
    %p253 = por %p251, %p252
    %p254 = scmp.ne.s32.totalorder %s243, %s246
    %p255 = scmp.eq.s32.totalorder %s23, 1
    %p256 = por %p254, %p255
    %p257 = scmp.ne.s32.totalorder %s246, %s247
    %p258 = scmp.eq.s32.totalorder %s23, 0
    %p259 = por %p257, %p258
    %p260 = scmp.ne.s32.totalorder %s246, %s247
    %p261 = scmp.eq.s32.totalorder %s24, 1
    %p262 = por %p260, %p261
    %p264 = scmp.ne.s32.totalorder %s247, %s263
    %p265 = scmp.eq.s32.totalorder %s24, 0
    %p266 = por %p264, %p265
    %s268 = sadd.s32 %s267, 1
    %p271 = scmp.eq.s32.totalorder %s18, 1
    %p272 = scmp.ne.s32.totalorder %s267, %s269
    %p273 = scmp.eq.s32.totalorder %s18, 0
    %p274 = por %p272, %p273
    %p275 = scmp.ne.s32.totalorder %s267, %s269
    %p276 = scmp.eq.s32.totalorder %s23, 1
    %p277 = por %p275, %p276
    %p278 = scmp.ne.s32.totalorder %s269, %s270
    %p279 = scmp.eq.s32.totalorder %s23, 0
    %p280 = por %p278, %p279
    %p281 = scmp.ne.s32.totalorder %s269, %s270
    %p282 = scmp.eq.s32.totalorder %s24, 1
    %p283 = por %p281, %p282
    %p285 = scmp.ne.s32.totalorder %s270, %s284
    %p286 = scmp.eq.s32.totalorder %s24, 0
    %p287 = por %p285, %p286
    %p288 = scmp.le.s32.totalorder 1, %s18
    %p289 = scmp.lt.s32.totalorder %s18, 3
    %p290 = pnand %p288, %p289
    %p291 = pneg %p290
    // Predicated region
    $region9: #{_lambda_.2} parent=5 // pred_check
      _
    $region10: #{_lambda_.2} parent=5 // pred_check_branch
      %293 = sbr.rel (%p290) target = $region12
    $region11: #{_lambda_.2} parent=5 // pred_region
      %s294 = ssub.s32 %s18, 1
      // Predicated region
      $region13: #{_lambda_.2} parent=11 // pred_check
        %p295 = pneg %p65
      $region14: #{_lambda_.2} parent=11 // pred_check_branch
        %297 = sbr.rel (%p295) target = $region16
      $region15: #{_lambda_.2} parent=11 // pred_region
        _
      $region16: #{_lambda_.2} parent=11 // pred_fallthru
        _
      // Predicated region
      $region17: #{_lambda_.2} parent=11 // pred_check
        %p298 = pneg %p86
      $region18: #{_lambda_.2} parent=11 // pred_check_branch
        %300 = sbr.rel (%p298) target = $region20
      $region19: #{_lambda_.2} parent=11 // pred_region
        _
      $region20: #{_lambda_.2} parent=11 // pred_fallthru
        _
      // Predicated region
      $region21: #{_lambda_.2} parent=11 // pred_check
        %p301 = pneg %p107
      $region22: #{_lambda_.2} parent=11 // pred_check_branch
        %303 = sbr.rel (%p301) target = $region24
      $region23: #{_lambda_.2} parent=11 // pred_region
        _
      $region24: #{_lambda_.2} parent=11 // pred_fallthru
        _
      // Predicated region
      $region25: #{_lambda_.2} parent=11 // pred_check
        %p304 = pneg %p128
      $region26: #{_lambda_.2} parent=11 // pred_check_branch
        %306 = sbr.rel (%p304) target = $region28
      $region27: #{_lambda_.2} parent=11 // pred_region
        _
      $region28: #{_lambda_.2} parent=11 // pred_fallthru
        _
      // Predicated region
      $region29: #{_lambda_.2} parent=11 // pred_check
        %p307 = pneg %p149
      $region30: #{_lambda_.2} parent=11 // pred_check_branch
        %309 = sbr.rel (%p307) target = $region32
      $region31: #{_lambda_.2} parent=11 // pred_region
        _
      $region32: #{_lambda_.2} parent=11 // pred_fallthru
        _
      // Predicated region
      $region33: #{_lambda_.2} parent=11 // pred_check
        %p310 = pneg %p170
      $region34: #{_lambda_.2} parent=11 // pred_check_branch
        %312 = sbr.rel (%p310) target = $region36
      $region35: #{_lambda_.2} parent=11 // pred_region
        _
      $region36: #{_lambda_.2} parent=11 // pred_fallthru
        _
      // Predicated region
      $region37: #{_lambda_.2} parent=11 // pred_check
        %p313 = pneg %p191
      $region38: #{_lambda_.2} parent=11 // pred_check_branch
        %315 = sbr.rel (%p313) target = $region40
      $region39: #{_lambda_.2} parent=11 // pred_region
        _
      $region40: #{_lambda_.2} parent=11 // pred_fallthru
        _
      // Predicated region
      $region41: #{_lambda_.2} parent=11 // pred_check
        %p316 = pneg %p212
      $region42: #{_lambda_.2} parent=11 // pred_check_branch
        %318 = sbr.rel (%p316) target = $region44
      $region43: #{_lambda_.2} parent=11 // pred_region
        _
      $region44: #{_lambda_.2} parent=11 // pred_fallthru
        _
      // Predicated region
      $region45: #{_lambda_.2} parent=11 // pred_check
        %p319 = pneg %p233
      $region46: #{_lambda_.2} parent=11 // pred_check_branch
        %321 = sbr.rel (%p319) target = $region48
      $region47: #{_lambda_.2} parent=11 // pred_region
        _
      $region48: #{_lambda_.2} parent=11 // pred_fallthru
        _
    $region12: #{_lambda_.2} parent=5 // pred_fallthru
      _
    %p322 = scmp.lt.s32.totalorder %s18, 2
    // Predicated region
    $region49: #{_lambda_.2} parent=5 // pred_check
      %p323 = pneg %p322
    $region50: #{_lambda_.2} parent=5 // pred_check_branch
      %325 = sbr.rel (%p323) target = $region52
    $region51: #{_lambda_.2} parent=5 // pred_region
      // Predicated region
      $region53: #{_lambda_.2} parent=51 // pred_check
        %p326 = pneg %p38
      $region54: #{_lambda_.2} parent=51 // pred_check_branch
        %328 = sbr.rel (%p326) target = $region56
      $region55: #{_lambda_.2} parent=51 // pred_region
        %s329 = smul.u32 4, %s18
        %p330 = scmp.lt.s32.totalorder %s329, 7
        %s331 = scalar_select %p330, %s329, 7
        %s332 = smul.addr %s331, 4
        %s333 = scalar_lea.vmem %s0, %s332
        %s334 = smul.u32 4, %s18
      $region56: #{_lambda_.2} parent=51 // pred_fallthru
        _
    $region52: #{_lambda_.2} parent=5 // pred_fallthru
      _
    %p335 = scmp.le.s32.totalorder 1, %s18
    %p336 = scmp.lt.s32.totalorder %s18, 3
    %p337 = pnand %p335, %p336
    %p338 = pneg %p337
    // Predicated region
    $region57: #{_lambda_.2} parent=5 // pred_check
      _
    $region58: #{_lambda_.2} parent=5 // pred_check_branch
      %340 = sbr.rel (%p337) target = $region60
    $region59: #{_lambda_.2} parent=5 // pred_region
      %s341 = ssub.s32 %s18, 1
      %s342 = smul.u32 4, %s23
      %p343 = scmp.lt.s32.totalorder %s342, 7
      %s344 = scalar_select %p343, %s342, 7
      %s345 = smul.addr %s344, 4
      %s346 = scalar_lea.vmem %s0, %s345
      %p347 = pneg %p44
      %p348 = pneg %p41
      %p349 = pneg %p65
      %p350 = pneg %p62
      %p351 = pneg %p86
      %p352 = pneg %p83
      %p353 = pneg %p107
      %p354 = pneg %p104
      %p355 = pneg %p128
      %p356 = pneg %p125
      %p357 = pneg %p149
      %p358 = pneg %p146
      %p359 = pneg %p170
      %p360 = pneg %p167
      %p361 = pneg %p191
      %p362 = pneg %p188
      %p363 = pneg %p212
      %p364 = pneg %p209
      %p365 = pneg %p233
      %p366 = pneg %p230
      %p367 = pneg %p259
      %p368 = pneg %p256
      %s369 = smul.u32 4, %s23
      %p370 = scmp.lt.s32.totalorder %s369, 7
      %s371 = scalar_select %p370, %s369, 7
      %s372 = smul.addr %s371, 8
      %s373 = scalar_lea.vmem %s10, %s372
      %p374 = pneg %p280
      %p375 = pneg %p277
      %s376 = smul.u32 4, %s23
      %p377 = scmp.lt.s32.totalorder %s376, 7
      %s378 = scalar_select %p377, %s376, 7
      %s379 = smul.addr %s378, 4
      %s380 = scalar_lea.vmem %s0, %s379
      %s381 = smul.u32 4, %s23
      %s382 = smul.u32 4, %s23
      %p383 = scmp.lt.s32.totalorder %s382, 7
      %s384 = scalar_select %p383, %s382, 7
      %s385 = smul.addr %s384, 8
      %s386 = scalar_lea.vmem %s10, %s385
      %s387 = smul.u32 4, %s23
      %p388 = scmp.eq.s32.totalorder %s23, 0
      // Predicated region
      $region61: #{_lambda_.2} parent=59 // pred_check
        %p389 = pneg %p388
      $region62: #{_lambda_.2} parent=59 // pred_check_branch
        %391 = sbr.rel (%p389) target = $region64
      $region63: #{_lambda_.2} parent=59 // pred_region
        %v392 = vld [vmem:[%s1] sm:$0xff]
        %v393 = vld [vmem:[%s1 + $0x8] sm:$0xff]
        %394 = vst [vmem:[%s11] sm:$0xff] %v392
        %395 = vst [vmem:[%s11 + $0x8] sm:$0xff] %v393
      $region64: #{_lambda_.2} parent=59 // pred_fallthru
        _
      %v396 = vld [vmem:[%s5] sm:$0x1]
      %v398 = vperm.slane %v396, 0
      %v400 = vld [vmem:[%s9] sm:$0x1]
      %v402 = vperm.slane %v400, 0
      %v404 = vld [vmem:[%s8] sm:$0x7]
      %v406 = vperm.slane %v404, 0
      %v407 = vperm.slane %v404, 1
      %v408 = vperm.slane %v404, 2
      %v412 = vld [vmem:[%s380] sm:$0xf]
      %v413 = vld [vmem:[%s380 + $0x4] sm:$0xf]
      %v414 = vld [vmem:[%s380 + $0x8] sm:$0xf]
      %v415 = vld [vmem:[%s380 + $0xc] sm:$0xf]
      %v416 = vld [vmem:[%s2] sm:$0xff]
      %v417 = vld [vmem:[%s2 + $0x8] sm:$0xf]
      %v418 = vld [vmem:[%s2 + $0xc] sm:$0xff]
      %v419 = vld [vmem:[%s2 + $0x14] sm:$0xf]
      %v420 = vld [vmem:[%s2 + $0x18] sm:$0xff]
      %v421 = vld [vmem:[%s2 + $0x20] sm:$0xf]
      %v422 = vld [vmem:[%s2 + $0x24] sm:$0xff]
      %v423 = vld [vmem:[%s2 + $0x2c] sm:$0xf]
      %v424 = vld [vmem:[%s2 + $0x30] sm:$0xff]
      %v425 = vld [vmem:[%s2 + $0x38] sm:$0xf]
      %v426 = vld [vmem:[%s2 + $0x3c] sm:$0xff]
      %v427 = vld [vmem:[%s2 + $0x44] sm:$0xf]
      %v428 = vld [vmem:[%s2 + $0x48] sm:$0xff]
      %v429 = vld [vmem:[%s2 + $0x50] sm:$0xf]
      %v430 = vld [vmem:[%s2 + $0x54] sm:$0xff]
      %v431 = vld [vmem:[%s2 + $0x5c] sm:$0xf]
      %v432 = vld [vmem:[%s2 + $0x60] sm:$0xff]
      %v433 = vld [vmem:[%s2 + $0x68] sm:$0xf]
      %v434 = vld [vmem:[%s2 + $0x6c] sm:$0xff]
      %v435 = vld [vmem:[%s2 + $0x74] sm:$0xf]
      %v436 = vld [vmem:[%s2 + $0x78] sm:$0xff]
      %v437 = vld [vmem:[%s2 + $0x80] sm:$0xf]
      %v438 = vld [vmem:[%s2 + $0x84] sm:$0xff]
      %v439 = vld [vmem:[%s2 + $0x8c] sm:$0xf]
      %v440 = vld [vmem:[%s2 + $0x90] sm:$0xff]
      %v441 = vld [vmem:[%s2 + $0x98] sm:$0xf]
      %v442 = vld [vmem:[%s2 + $0x9c] sm:$0xff]
      %v443 = vld [vmem:[%s2 + $0xa4] sm:$0xf]
      %v444 = vld [vmem:[%s2 + $0xa8] sm:$0xff]
      %v445 = vld [vmem:[%s2 + $0xb0] sm:$0xf]
      %v446 = vld [vmem:[%s2 + $0xb4] sm:$0xff]
      %v447 = vld [vmem:[%s2 + $0xbc] sm:$0xf]
      %v448 = vld [vmem:[%s4] sm:$0x7]
      %v450 = vperm.slane %v448, 0
      %v451 = vperm.slane %v448, 1
      %v452 = vperm.slane %v448, 2
      %v460 = vunpack.c.l.b16 %v412
      %v461 = vunpack.c.l.b16 %v413
      %v462 = vunpack.c.l.b16 %v414
      %v463 = vunpack.c.l.b16 %v415
      %v464 = vpack.c.b16 %v461, %v460
      %v465 = vpack.c.b16 %v463, %v462
      %v500 = vunpack.c.l.b16 %v416
      %v501 = vunpack.c.h.b16 %v416
      %v502 = vunpack.c.l.b16 %v417
      %v503 = vunpack.c.l.b16 %v418
      %v504 = vunpack.c.h.b16 %v418
      %v505 = vunpack.c.l.b16 %v419
      %v506 = vunpack.c.l.b16 %v420
      %v507 = vunpack.c.h.b16 %v420
      %v508 = vunpack.c.l.b16 %v421
      %v509 = vunpack.c.l.b16 %v422
      %v510 = vunpack.c.h.b16 %v422
      %v511 = vunpack.c.l.b16 %v423
      %v512 = vunpack.c.l.b16 %v424
      %v513 = vunpack.c.h.b16 %v424
      %v514 = vunpack.c.l.b16 %v425
      %v515 = vunpack.c.l.b16 %v426
      %v516 = vunpack.c.h.b16 %v426
      %v517 = vunpack.c.l.b16 %v427
      %v518 = vunpack.c.l.b16 %v428
      %v519 = vunpack.c.h.b16 %v428
      %v520 = vunpack.c.l.b16 %v429
      %v521 = vunpack.c.l.b16 %v430
      %v522 = vunpack.c.h.b16 %v430
      %v523 = vunpack.c.l.b16 %v431
      %v524 = vunpack.c.l.b16 %v432
      %v525 = vunpack.c.h.b16 %v432
      %v526 = vunpack.c.l.b16 %v433
      %v527 = vunpack.c.l.b16 %v434
      %v528 = vunpack.c.h.b16 %v434
      %v529 = vunpack.c.l.b16 %v435
      %v530 = vunpack.c.l.b16 %v436
      %v531 = vunpack.c.h.b16 %v436
      %v532 = vunpack.c.l.b16 %v437
      %v533 = vunpack.c.l.b16 %v438
      %v534 = vunpack.c.h.b16 %v438
      %v535 = vunpack.c.l.b16 %v439
      %v536 = vunpack.c.l.b16 %v440
      %v537 = vunpack.c.h.b16 %v440
      %v538 = vunpack.c.l.b16 %v441
      %v539 = vunpack.c.l.b16 %v442
      %v540 = vunpack.c.h.b16 %v442
      %v541 = vunpack.c.l.b16 %v443
      %v542 = vunpack.c.l.b16 %v444
      %v543 = vunpack.c.h.b16 %v444
      %v544 = vunpack.c.l.b16 %v445
      %v545 = vunpack.c.l.b16 %v446
      %v546 = vunpack.c.h.b16 %v446
      %v547 = vunpack.c.l.b16 %v447
      %v548 = vpack.c.b16 %v503, %v500
      %v549 = vpack.c.b16 %v504, %v501
      %v550 = vpack.c.b16 %v505, %v502
      %v551 = vpack.c.b16 %v509, %v506
      %v552 = vpack.c.b16 %v510, %v507
      %v553 = vpack.c.b16 %v511, %v508
      %v554 = vpack.c.b16 %v515, %v512
      %v555 = vpack.c.b16 %v516, %v513
      %v556 = vpack.c.b16 %v517, %v514
      %v557 = vpack.c.b16 %v521, %v518
      %v558 = vpack.c.b16 %v522, %v519
      %v559 = vpack.c.b16 %v523, %v520
      %v560 = vpack.c.b16 %v527, %v524
      %v561 = vpack.c.b16 %v528, %v525
      %v562 = vpack.c.b16 %v529, %v526
      %v563 = vpack.c.b16 %v533, %v530
      %v564 = vpack.c.b16 %v534, %v531
      %v565 = vpack.c.b16 %v535, %v532
      %v566 = vpack.c.b16 %v539, %v536
      %v567 = vpack.c.b16 %v540, %v537
      %v568 = vpack.c.b16 %v541, %v538
      %v569 = vpack.c.b16 %v545, %v542
      %v570 = vpack.c.b16 %v546, %v543
      %v571 = vpack.c.b16 %v547, %v544
      %596 = vmatpush.bf16.msra.mxu0 %v569
      %597 = vmatpush.bf16.msra.mxu0 %v566
      %598 = vmatpush.bf16.msra.mxu0 %v563
      %599 = vmatpush.bf16.msra.mxu0 %v560
      %600 = vmatpush.bf16.msra.mxu0 %v557
      %601 = vmatpush.bf16.msra.mxu0 %v554
      %602 = vmatpush.bf16.msra.mxu0 %v551
      %603 = vmatpush.bf16.msra.mxu0 %v548
      %604 = vmatmul.bf16.gmra.mxu0 %v464
      %v605 = vpop.f32.mrf.mxu0
      %v606 = vadd.f32 %v450, %v605
      %v607 = vpop.f32.mrf.mxu0
      %v608 = vadd.f32 %v450, %v607
      %609 = vmatmul.bf16.gmra.mxu0 %v465
      %v610 = vpop.f32.mrf.mxu0
      %v611 = vadd.f32 %v450, %v610
      %v612 = vpop.f32.mrf.mxu0
      %v613 = vadd.f32 %v450, %v612
      %614 = vdwg.mxu0
      %615 = vmatpush.bf16.msra.mxu0 %v570
      %616 = vmatpush.bf16.msra.mxu0 %v567
      %617 = vmatpush.bf16.msra.mxu0 %v564
      %618 = vmatpush.bf16.msra.mxu0 %v561
      %619 = vmatpush.bf16.msra.mxu0 %v558
      %620 = vmatpush.bf16.msra.mxu0 %v555
      %621 = vmatpush.bf16.msra.mxu0 %v552
      %622 = vmatpush.bf16.msra.mxu0 %v549
      %623 = vmatmul.bf16.gmra.mxu0 %v464
      %v624 = vpop.f32.mrf.mxu0
      %v625 = vadd.f32 %v451, %v624
      %v626 = vpop.f32.mrf.mxu0
      %v627 = vadd.f32 %v451, %v626
      %628 = vmatmul.bf16.gmra.mxu0 %v465
      %v629 = vpop.f32.mrf.mxu0
      %v630 = vadd.f32 %v451, %v629
      %v631 = vpop.f32.mrf.mxu0
      %v632 = vadd.f32 %v451, %v631
      %633 = vdwg.mxu0
      %634 = vmatpush.bf16.msra.mxu0 %v571
      %635 = vmatpush.bf16.msra.mxu0 %v568
      %636 = vmatpush.bf16.msra.mxu0 %v565
      %637 = vmatpush.bf16.msra.mxu0 %v562
      %638 = vmatpush.bf16.msra.mxu0 %v559
      %639 = vmatpush.bf16.msra.mxu0 %v556
      %640 = vmatpush.bf16.msra.mxu0 %v553
      %641 = vmatpush.bf16.msra.mxu0 %v550
      %642 = vmatmul.bf16.gmra.mxu0 %v464
      %v643 = vpop.f32.mrf.mxu0
      %v644 = vadd.f32 %v452, %v643
      %v645 = vpop.f32.mrf.mxu0
      %v646 = vadd.f32 %v452, %v645
      %647 = vmatmul.bf16.gmra.mxu0 %v465
      %v648 = vpop.f32.mrf.mxu0
      %v649 = vadd.f32 %v452, %v648
      %v650 = vpop.f32.mrf.mxu0
      %v651 = vadd.f32 %v452, %v650
      %652 = vdwg.mxu0
      %653 = vst [vmem:[#allocation2] sm:$0xff] %v606
      %654 = vst [vmem:[#allocation2 + $0x8] sm:$0xff] %v625
      %655 = vst [vmem:[#allocation2 + $0x10] sm:$0xff] %v644
      %656 = vst [vmem:[#allocation2 + $0x18] sm:$0xff] %v608
      %657 = vst [vmem:[#allocation2 + $0x20] sm:$0xff] %v627
      %658 = vst [vmem:[#allocation2 + $0x28] sm:$0xff] %v646
      %659 = vst [vmem:[#allocation2 + $0x30] sm:$0xff] %v611
      %660 = vst [vmem:[#allocation2 + $0x38] sm:$0xff] %v630
      %661 = vst [vmem:[#allocation2 + $0x40] sm:$0xff] %v649
      %662 = vst [vmem:[#allocation2 + $0x48] sm:$0xff] %v613
      %663 = vst [vmem:[#allocation2 + $0x50] sm:$0xff] %v632
      %664 = vst [vmem:[#allocation2 + $0x58] sm:$0xff] %v651
      %v665 = vld [vmem:[%s11] sm:$0xff]
      %s666 = scalar_lea.vmem %s11, 8
      %v667 = vld [vmem:[%s666] sm:$0xff]
      %v668 = vld [vmem:[#allocation2] sm:$0xff]
      %v669 = vld [vmem:[#allocation2 + $0x8] sm:$0xff]
      %v670 = vld [vmem:[#allocation2 + $0x10] sm:$0xff]
      %v671 = vld [vmem:[%s3] sm:$0xff]
      %v672 = vld [vmem:[%s3 + $0x8] sm:$0xff]
      %v673 = vld [vmem:[%s3 + $0x10] sm:$0xff]
      %v674 = vld [vmem:[%s3 + $0x18] sm:$0xff]
      %v675 = vld [vmem:[%s3 + $0x20] sm:$0xff]
      %v676 = vld [vmem:[%s3 + $0x28] sm:$0xff]
      %v677 = vld [vmem:[%s3 + $0x30] sm:$0xff]
      %v678 = vld [vmem:[%s3 + $0x38] sm:$0xff]
      %v679 = vld [vmem:[%s3 + $0x40] sm:$0xff]
      %v680 = vld [vmem:[%s3 + $0x48] sm:$0xff]
      %v681 = vld [vmem:[%s3 + $0x50] sm:$0xff]
      %v682 = vld [vmem:[%s3 + $0x58] sm:$0xff]
      %v683 = vld [vmem:[%s3 + $0x60] sm:$0xff]
      %v684 = vld [vmem:[%s3 + $0x68] sm:$0xff]
      %v685 = vld [vmem:[%s3 + $0x70] sm:$0xff]
      %v686 = vld [vmem:[%s3 + $0x78] sm:$0xff]
      %v687 = vld [vmem:[%s3 + $0x80] sm:$0xff]
      %v688 = vld [vmem:[%s3 + $0x88] sm:$0xff]
      %v689 = vld [vmem:[%s3 + $0x90] sm:$0xff]
      %v690 = vld [vmem:[%s3 + $0x98] sm:$0xff]
      %v691 = vld [vmem:[%s3 + $0xa0] sm:$0xff]
      %v692 = vld [vmem:[%s3 + $0xa8] sm:$0xff]
      %v693 = vld [vmem:[%s3 + $0xb0] sm:$0xff]
      %v694 = vld [vmem:[%s3 + $0xb8] sm:$0xff]
      %v695 = vld [vmem:[%s3 + $0xc0] sm:$0xff]
      %v696 = vld [vmem:[%s3 + $0xc8] sm:$0xff]
      %v697 = vld [vmem:[%s3 + $0xd0] sm:$0xff]
      %v698 = vld [vmem:[%s3 + $0xd8] sm:$0xff]
      %v699 = vld [vmem:[%s3 + $0xe0] sm:$0xff]
      %v700 = vld [vmem:[%s3 + $0xe8] sm:$0xff]
      %v701 = vld [vmem:[%s3 + $0xf0] sm:$0xff]
      %v702 = vld [vmem:[%s3 + $0xf8] sm:$0xff]
      %v703 = vld [vmem:[%s3 + $0x100] sm:$0xff]
      %v704 = vld [vmem:[%s3 + $0x108] sm:$0xff]
      %v705 = vld [vmem:[%s3 + $0x110] sm:$0xff]
      %v706 = vld [vmem:[%s3 + $0x118] sm:$0xff]
      %v707 = vld [vmem:[%s3 + $0x120] sm:$0xff]
      %v708 = vld [vmem:[%s3 + $0x128] sm:$0xff]
      %v709 = vld [vmem:[%s3 + $0x130] sm:$0xff]
      %v710 = vld [vmem:[%s3 + $0x138] sm:$0xff]
      %v711 = vld [vmem:[%s3 + $0x140] sm:$0xff]
      %v712 = vld [vmem:[%s3 + $0x148] sm:$0xff]
      %v713 = vld [vmem:[%s3 + $0x150] sm:$0xff]
      %v714 = vld [vmem:[%s3 + $0x158] sm:$0xff]
      %v715 = vld [vmem:[%s3 + $0x160] sm:$0xff]
      %v716 = vld [vmem:[%s3 + $0x168] sm:$0xff]
      %v717 = vld [vmem:[%s3 + $0x170] sm:$0xff]
      %v718 = vld [vmem:[%s3 + $0x178] sm:$0xff]
      %719 = vmatpush.msra.mxu0 %v716
      %720 = vmatpush.msra.mxu0 %v713
      %721 = vmatpush.msra.mxu0 %v710
      %722 = vmatpush.msra.mxu0 %v707
      %723 = vmatpush.msra.mxu0 %v704
      %724 = vmatpush.msra.mxu0 %v701
      %725 = vmatpush.msra.mxu0 %v698
      %726 = vmatpush.msra.mxu0 %v695
      %727 = vmatpush.msra.mxu0 %v692
      %728 = vmatpush.msra.mxu0 %v689
      %729 = vmatpush.msra.mxu0 %v686
      %730 = vmatpush.msra.mxu0 %v683
      %731 = vmatpush.msra.mxu0 %v680
      %732 = vmatpush.msra.mxu0 %v677
      %733 = vmatpush.msra.mxu0 %v674
      %734 = vmatpush.msra.mxu0 %v671
      %735 = vmatmul.f32.gmra.mxu0 %v665
      %v736 = vpop.f32.mrf.mxu0
      %v737 = vadd.f32 0.0, %v736
      %738 = vdwg.mxu0
      %739 = vmatpush.msra.mxu0 %v717
      %740 = vmatpush.msra.mxu0 %v714
      %741 = vmatpush.msra.mxu0 %v711
      %742 = vmatpush.msra.mxu0 %v708
      %743 = vmatpush.msra.mxu0 %v705
      %744 = vmatpush.msra.mxu0 %v702
      %745 = vmatpush.msra.mxu0 %v699
      %746 = vmatpush.msra.mxu0 %v696
      %747 = vmatpush.msra.mxu0 %v693
      %748 = vmatpush.msra.mxu0 %v690
      %749 = vmatpush.msra.mxu0 %v687
      %750 = vmatpush.msra.mxu0 %v684
      %751 = vmatpush.msra.mxu0 %v681
      %752 = vmatpush.msra.mxu0 %v678
      %753 = vmatpush.msra.mxu0 %v675
      %754 = vmatpush.msra.mxu0 %v672
      %755 = vmatmul.f32.gmra.mxu0 %v665
      %v756 = vpop.f32.mrf.mxu0
      %v757 = vadd.f32 0.0, %v756
      %758 = vdwg.mxu0
      %759 = vmatpush.msra.mxu0 %v718
      %760 = vmatpush.msra.mxu0 %v715
      %761 = vmatpush.msra.mxu0 %v712
      %762 = vmatpush.msra.mxu0 %v709
      %763 = vmatpush.msra.mxu0 %v706
      %764 = vmatpush.msra.mxu0 %v703
      %765 = vmatpush.msra.mxu0 %v700
      %766 = vmatpush.msra.mxu0 %v697
      %767 = vmatpush.msra.mxu0 %v694
      %768 = vmatpush.msra.mxu0 %v691
      %769 = vmatpush.msra.mxu0 %v688
      %770 = vmatpush.msra.mxu0 %v685
      %771 = vmatpush.msra.mxu0 %v682
      %772 = vmatpush.msra.mxu0 %v679
      %773 = vmatpush.msra.mxu0 %v676
      %774 = vmatpush.msra.mxu0 %v673
      %775 = vmatmul.f32.gmra.mxu0 %v665
      %v776 = vpop.f32.mrf.mxu0
      %v777 = vadd.f32 0.0, %v776
      %778 = vdwg.mxu0
      %v779 = vadd.f32 %v668, %v737
      %v780 = vmul.f32 %v779, 0.5
      %v781 = vtanh.pop %v780
      %v782 = vadd.f32 %v781, 1.0
      %v783 = vmul.f32 %v782, 0.5
      %v784 = vadd.f32 %v669, %v757
      %v785 = vmul.f32 %v784, 0.5
      %v786 = vtanh.pop %v785
      %v787 = vadd.f32 %v786, 1.0
      %v788 = vmul.f32 %v787, 0.5
      %v789 = vadd.f32 %v777, %v398
      %v790 = vmul.f32 %v783, %v789
      %v791 = vadd.f32 %v670, %v790
      %v792 = vtanh.pop %v791
      %v793 = vsub.f32 1.0, %v788
      %v794 = vmul.f32 %v793, %v792
      %v795 = vmul.f32 %v788, %v665
      %v796 = vadd.f32 %v794, %v795
      %v797 = vpack.c.bf16 %v796, %v796
      %v798 = vld [vmem:[%s6] sm:$0xff]
      %v799 = vld [vmem:[%s6 + $0x8] sm:$0xf]
      %v800 = vld [vmem:[%s6 + $0xc] sm:$0xff]
      %v801 = vld [vmem:[%s6 + $0x14] sm:$0xf]
      %v802 = vld [vmem:[%s6 + $0x18] sm:$0xff]
      %v803 = vld [vmem:[%s6 + $0x20] sm:$0xf]
      %v804 = vld [vmem:[%s6 + $0x24] sm:$0xff]
      %v805 = vld [vmem:[%s6 + $0x2c] sm:$0xf]
      %v806 = vld [vmem:[%s6 + $0x30] sm:$0xff]
      %v807 = vld [vmem:[%s6 + $0x38] sm:$0xf]
      %v808 = vld [vmem:[%s6 + $0x3c] sm:$0xff]
      %v809 = vld [vmem:[%s6 + $0x44] sm:$0xf]
      %v810 = vld [vmem:[%s6 + $0x48] sm:$0xff]
      %v811 = vld [vmem:[%s6 + $0x50] sm:$0xf]
      %v812 = vld [vmem:[%s6 + $0x54] sm:$0xff]
      %v813 = vld [vmem:[%s6 + $0x5c] sm:$0xf]
      %v814 = vld [vmem:[%s6 + $0x60] sm:$0xff]
      %v815 = vld [vmem:[%s6 + $0x68] sm:$0xf]
      %v816 = vld [vmem:[%s6 + $0x6c] sm:$0xff]
      %v817 = vld [vmem:[%s6 + $0x74] sm:$0xf]
      %v818 = vld [vmem:[%s6 + $0x78] sm:$0xff]
      %v819 = vld [vmem:[%s6 + $0x80] sm:$0xf]
      %v820 = vld [vmem:[%s6 + $0x84] sm:$0xff]
      %v821 = vld [vmem:[%s6 + $0x8c] sm:$0xf]
      %v822 = vld [vmem:[%s6 + $0x90] sm:$0xff]
      %v823 = vld [vmem:[%s6 + $0x98] sm:$0xf]
      %v824 = vld [vmem:[%s6 + $0x9c] sm:$0xff]
      %v825 = vld [vmem:[%s6 + $0xa4] sm:$0xf]
      %v826 = vld [vmem:[%s6 + $0xa8] sm:$0xff]
      %v827 = vld [vmem:[%s6 + $0xb0] sm:$0xf]
      %v828 = vld [vmem:[%s6 + $0xb4] sm:$0xff]
      %v829 = vld [vmem:[%s6 + $0xbc] sm:$0xf]
      %v862 = vunpack.c.l.b16 %v798
      %v863 = vunpack.c.h.b16 %v798
      %v864 = vunpack.c.l.b16 %v799
      %v865 = vunpack.c.l.b16 %v800
      %v866 = vunpack.c.h.b16 %v800
      %v867 = vunpack.c.l.b16 %v801
      %v868 = vunpack.c.l.b16 %v802
      %v869 = vunpack.c.h.b16 %v802
      %v870 = vunpack.c.l.b16 %v803
      %v871 = vunpack.c.l.b16 %v804
      %v872 = vunpack.c.h.b16 %v804
      %v873 = vunpack.c.l.b16 %v805
      %v874 = vunpack.c.l.b16 %v806
      %v875 = vunpack.c.h.b16 %v806
      %v876 = vunpack.c.l.b16 %v807
      %v877 = vunpack.c.l.b16 %v808
      %v878 = vunpack.c.h.b16 %v808
      %v879 = vunpack.c.l.b16 %v809
      %v880 = vunpack.c.l.b16 %v810
      %v881 = vunpack.c.h.b16 %v810
      %v882 = vunpack.c.l.b16 %v811
      %v883 = vunpack.c.l.b16 %v812
      %v884 = vunpack.c.h.b16 %v812
      %v885 = vunpack.c.l.b16 %v813
      %v886 = vunpack.c.l.b16 %v814
      %v887 = vunpack.c.h.b16 %v814
      %v888 = vunpack.c.l.b16 %v815
      %v889 = vunpack.c.l.b16 %v816
      %v890 = vunpack.c.h.b16 %v816
      %v891 = vunpack.c.l.b16 %v817
      %v892 = vunpack.c.l.b16 %v818
      %v893 = vunpack.c.h.b16 %v818
      %v894 = vunpack.c.l.b16 %v819
      %v895 = vunpack.c.l.b16 %v820
      %v896 = vunpack.c.h.b16 %v820
      %v897 = vunpack.c.l.b16 %v821
      %v898 = vunpack.c.l.b16 %v822
      %v899 = vunpack.c.h.b16 %v822
      %v900 = vunpack.c.l.b16 %v823
      %v901 = vunpack.c.l.b16 %v824
      %v902 = vunpack.c.h.b16 %v824
      %v903 = vunpack.c.l.b16 %v825
      %v904 = vunpack.c.l.b16 %v826
      %v905 = vunpack.c.h.b16 %v826
      %v906 = vunpack.c.l.b16 %v827
      %v907 = vunpack.c.l.b16 %v828
      %v908 = vunpack.c.h.b16 %v828
      %v909 = vunpack.c.l.b16 %v829
      %v910 = vpack.c.b16 %v865, %v862
      %v911 = vpack.c.b16 %v866, %v863
      %v912 = vpack.c.b16 %v867, %v864
      %v913 = vpack.c.b16 %v871, %v868
      %v914 = vpack.c.b16 %v872, %v869
      %v915 = vpack.c.b16 %v873, %v870
      %v916 = vpack.c.b16 %v877, %v874
      %v917 = vpack.c.b16 %v878, %v875
      %v918 = vpack.c.b16 %v879, %v876
      %v919 = vpack.c.b16 %v883, %v880
      %v920 = vpack.c.b16 %v884, %v881
      %v921 = vpack.c.b16 %v885, %v882
      %v922 = vpack.c.b16 %v889, %v886
      %v923 = vpack.c.b16 %v890, %v887
      %v924 = vpack.c.b16 %v891, %v888
      %v925 = vpack.c.b16 %v895, %v892
      %v926 = vpack.c.b16 %v896, %v893
      %v927 = vpack.c.b16 %v897, %v894
      %v928 = vpack.c.b16 %v901, %v898
      %v929 = vpack.c.b16 %v902, %v899
      %v930 = vpack.c.b16 %v903, %v900
      %v931 = vpack.c.b16 %v907, %v904
      %v932 = vpack.c.b16 %v908, %v905
      %v933 = vpack.c.b16 %v909, %v906
      %958 = vmatpush.bf16.msra.mxu0 %v931
      %959 = vmatpush.bf16.msra.mxu0 %v928
      %960 = vmatpush.bf16.msra.mxu0 %v925
      %961 = vmatpush.bf16.msra.mxu0 %v922
      %962 = vmatpush.bf16.msra.mxu0 %v919
      %963 = vmatpush.bf16.msra.mxu0 %v916
      %964 = vmatpush.bf16.msra.mxu0 %v913
      %965 = vmatpush.bf16.msra.mxu0 %v910
      %966 = vmatmul.bf16.gmra.mxu0 %v797
      %v967 = vpop.f32.mrf.mxu0
      %v968 = vadd.f32 %v406, %v967
      %v969 = vpop.f32.mrf.mxu0
      %970 = vdwg.mxu0
      %971 = vmatpush.bf16.msra.mxu0 %v932
      %972 = vmatpush.bf16.msra.mxu0 %v929
      %973 = vmatpush.bf16.msra.mxu0 %v926
      %974 = vmatpush.bf16.msra.mxu0 %v923
      %975 = vmatpush.bf16.msra.mxu0 %v920
      %976 = vmatpush.bf16.msra.mxu0 %v917
      %977 = vmatpush.bf16.msra.mxu0 %v914
      %978 = vmatpush.bf16.msra.mxu0 %v911
      %979 = vmatmul.bf16.gmra.mxu0 %v797
      %v980 = vpop.f32.mrf.mxu0
      %v981 = vadd.f32 %v407, %v980
      %v982 = vpop.f32.mrf.mxu0
      %983 = vdwg.mxu0
      %984 = vmatpush.bf16.msra.mxu0 %v933
      %985 = vmatpush.bf16.msra.mxu0 %v930
      %986 = vmatpush.bf16.msra.mxu0 %v927
      %987 = vmatpush.bf16.msra.mxu0 %v924
      %988 = vmatpush.bf16.msra.mxu0 %v921
      %989 = vmatpush.bf16.msra.mxu0 %v918
      %990 = vmatpush.bf16.msra.mxu0 %v915
      %991 = vmatpush.bf16.msra.mxu0 %v912
      %992 = vmatmul.bf16.gmra.mxu0 %v797
      %v993 = vpop.f32.mrf.mxu0
      %v994 = vadd.f32 %v408, %v993
      %v995 = vpop.f32.mrf.mxu0
      %996 = vdwg.mxu0
      %v997 = vld [vmem:[%s7] sm:$0xff]
      %v998 = vld [vmem:[%s7 + $0x8] sm:$0xff]
      %v999 = vld [vmem:[%s7 + $0x10] sm:$0xff]
      %v1000 = vld [vmem:[%s7 + $0x18] sm:$0xff]
      %v1001 = vld [vmem:[%s7 + $0x20] sm:$0xff]
      %v1002 = vld [vmem:[%s7 + $0x28] sm:$0xff]
      %v1003 = vld [vmem:[%s7 + $0x30] sm:$0xff]
      %v1004 = vld [vmem:[%s7 + $0x38] sm:$0xff]
      %v1005 = vld [vmem:[%s7 + $0x40] sm:$0xff]
      %v1006 = vld [vmem:[%s7 + $0x48] sm:$0xff]
      %v1007 = vld [vmem:[%s7 + $0x50] sm:$0xff]
      %v1008 = vld [vmem:[%s7 + $0x58] sm:$0xff]
      %v1009 = vld [vmem:[%s7 + $0x60] sm:$0xff]
      %v1010 = vld [vmem:[%s7 + $0x68] sm:$0xff]
      %v1011 = vld [vmem:[%s7 + $0x70] sm:$0xff]
      %v1012 = vld [vmem:[%s7 + $0x78] sm:$0xff]
      %v1013 = vld [vmem:[%s7 + $0x80] sm:$0xff]
      %v1014 = vld [vmem:[%s7 + $0x88] sm:$0xff]
      %v1015 = vld [vmem:[%s7 + $0x90] sm:$0xff]
      %v1016 = vld [vmem:[%s7 + $0x98] sm:$0xff]
      %v1017 = vld [vmem:[%s7 + $0xa0] sm:$0xff]
      %v1018 = vld [vmem:[%s7 + $0xa8] sm:$0xff]
      %v1019 = vld [vmem:[%s7 + $0xb0] sm:$0xff]
      %v1020 = vld [vmem:[%s7 + $0xb8] sm:$0xff]
      %v1021 = vld [vmem:[%s7 + $0xc0] sm:$0xff]
      %v1022 = vld [vmem:[%s7 + $0xc8] sm:$0xff]
      %v1023 = vld [vmem:[%s7 + $0xd0] sm:$0xff]
      %v1024 = vld [vmem:[%s7 + $0xd8] sm:$0xff]
      %v1025 = vld [vmem:[%s7 + $0xe0] sm:$0xff]
      %v1026 = vld [vmem:[%s7 + $0xe8] sm:$0xff]
      %v1027 = vld [vmem:[%s7 + $0xf0] sm:$0xff]
      %v1028 = vld [vmem:[%s7 + $0xf8] sm:$0xff]
      %v1029 = vld [vmem:[%s7 + $0x100] sm:$0xff]
      %v1030 = vld [vmem:[%s7 + $0x108] sm:$0xff]
      %v1031 = vld [vmem:[%s7 + $0x110] sm:$0xff]
      %v1032 = vld [vmem:[%s7 + $0x118] sm:$0xff]
      %v1033 = vld [vmem:[%s7 + $0x120] sm:$0xff]
      %v1034 = vld [vmem:[%s7 + $0x128] sm:$0xff]
      %v1035 = vld [vmem:[%s7 + $0x130] sm:$0xff]
      %v1036 = vld [vmem:[%s7 + $0x138] sm:$0xff]
      %v1037 = vld [vmem:[%s7 + $0x140] sm:$0xff]
      %v1038 = vld [vmem:[%s7 + $0x148] sm:$0xff]
      %v1039 = vld [vmem:[%s7 + $0x150] sm:$0xff]
      %v1040 = vld [vmem:[%s7 + $0x158] sm:$0xff]
      %v1041 = vld [vmem:[%s7 + $0x160] sm:$0xff]
      %v1042 = vld [vmem:[%s7 + $0x168] sm:$0xff]
      %v1043 = vld [vmem:[%s7 + $0x170] sm:$0xff]
      %v1044 = vld [vmem:[%s7 + $0x178] sm:$0xff]
      %1045 = vmatpush.msra.mxu0 %v1042
      %1046 = vmatpush.msra.mxu0 %v1039
      %1047 = vmatpush.msra.mxu0 %v1036
      %1048 = vmatpush.msra.mxu0 %v1033
      %1049 = vmatpush.msra.mxu0 %v1030
      %1050 = vmatpush.msra.mxu0 %v1027
      %1051 = vmatpush.msra.mxu0 %v1024
      %1052 = vmatpush.msra.mxu0 %v1021
      %1053 = vmatpush.msra.mxu0 %v1018
      %1054 = vmatpush.msra.mxu0 %v1015
      %1055 = vmatpush.msra.mxu0 %v1012
      %1056 = vmatpush.msra.mxu0 %v1009
      %1057 = vmatpush.msra.mxu0 %v1006
      %1058 = vmatpush.msra.mxu0 %v1003
      %1059 = vmatpush.msra.mxu0 %v1000
      %1060 = vmatpush.msra.mxu0 %v997
      %1061 = vmatmul.f32.gmra.mxu0 %v667
      %v1062 = vpop.f32.mrf.mxu0
      %v1063 = vadd.f32 0.0, %v1062
      %1064 = vdwg.mxu0
      %1065 = vmatpush.msra.mxu0 %v1043
      %1066 = vmatpush.msra.mxu0 %v1040
      %1067 = vmatpush.msra.mxu0 %v1037
      %1068 = vmatpush.msra.mxu0 %v1034
      %1069 = vmatpush.msra.mxu0 %v1031
      %1070 = vmatpush.msra.mxu0 %v1028
      %1071 = vmatpush.msra.mxu0 %v1025
      %1072 = vmatpush.msra.mxu0 %v1022
      %1073 = vmatpush.msra.mxu0 %v1019
      %1074 = vmatpush.msra.mxu0 %v1016
      %1075 = vmatpush.msra.mxu0 %v1013
      %1076 = vmatpush.msra.mxu0 %v1010
      %1077 = vmatpush.msra.mxu0 %v1007
      %1078 = vmatpush.msra.mxu0 %v1004
      %1079 = vmatpush.msra.mxu0 %v1001
      %1080 = vmatpush.msra.mxu0 %v998
      %1081 = vmatmul.f32.gmra.mxu0 %v667
      %v1082 = vpop.f32.mrf.mxu0
      %v1083 = vadd.f32 0.0, %v1082
      %1084 = vdwg.mxu0
      %1085 = vmatpush.msra.mxu0 %v1044
      %1086 = vmatpush.msra.mxu0 %v1041
      %1087 = vmatpush.msra.mxu0 %v1038
      %1088 = vmatpush.msra.mxu0 %v1035
      %1089 = vmatpush.msra.mxu0 %v1032
      %1090 = vmatpush.msra.mxu0 %v1029
      %1091 = vmatpush.msra.mxu0 %v1026
      %1092 = vmatpush.msra.mxu0 %v1023
      %1093 = vmatpush.msra.mxu0 %v1020
      %1094 = vmatpush.msra.mxu0 %v1017
      %1095 = vmatpush.msra.mxu0 %v1014
      %1096 = vmatpush.msra.mxu0 %v1011
      %1097 = vmatpush.msra.mxu0 %v1008
      %1098 = vmatpush.msra.mxu0 %v1005
      %1099 = vmatpush.msra.mxu0 %v1002
      %1100 = vmatpush.msra.mxu0 %v999
      %1101 = vmatmul.f32.gmra.mxu0 %v667
      %v1102 = vpop.f32.mrf.mxu0
      %v1103 = vadd.f32 0.0, %v1102
      %1104 = vdwg.mxu0
      %v1105 = vadd.f32 %v968, %v1063
      %v1106 = vmul.f32 %v1105, 0.5
      %v1107 = vtanh.pop %v1106
      %v1108 = vadd.f32 %v1107, 1.0
      %v1109 = vmul.f32 %v1108, 0.5
      %v1110 = vadd.f32 %v981, %v1083
      %v1111 = vmul.f32 %v1110, 0.5
      %v1112 = vtanh.pop %v1111
      %v1113 = vadd.f32 %v1112, 1.0
      %v1114 = vmul.f32 %v1113, 0.5
      %v1115 = vadd.f32 %v1103, %v402
      %v1116 = vmul.f32 %v1109, %v1115
      %v1117 = vadd.f32 %v994, %v1116
      %v1118 = vtanh.pop %v1117
      %v1119 = vsub.f32 1.0, %v1114
      %v1120 = vmul.f32 %v1119, %v1118
      %v1121 = vmul.f32 %v1114, %v667
      %v1122 = vadd.f32 %v1120, %v1121
      %1123 = vst [vmem:[%s386] sm:$0xff] %v1122
      %s1124 = scalar_lea.vmem [#allocation2], 24
      %v1125 = vld [vmem:[%s1124] sm:$0xff]
      %v1126 = vld [vmem:[%s1124 + $0x8] sm:$0xff]
      %v1127 = vld [vmem:[%s1124 + $0x10] sm:$0xff]
      %v1128 = vld [vmem:[%s3] sm:$0xff]
      %v1129 = vld [vmem:[%s3 + $0x8] sm:$0xff]
      %v1130 = vld [vmem:[%s3 + $0x10] sm:$0xff]
      %v1131 = vld [vmem:[%s3 + $0x18] sm:$0xff]
      %v1132 = vld [vmem:[%s3 + $0x20] sm:$0xff]
      %v1133 = vld [vmem:[%s3 + $0x28] sm:$0xff]
      %v1134 = vld [vmem:[%s3 + $0x30] sm:$0xff]
      %v1135 = vld [vmem:[%s3 + $0x38] sm:$0xff]
      %v1136 = vld [vmem:[%s3 + $0x40] sm:$0xff]
      %v1137 = vld [vmem:[%s3 + $0x48] sm:$0xff]
      %v1138 = vld [vmem:[%s3 + $0x50] sm:$0xff]
      %v1139 = vld [vmem:[%s3 + $0x58] sm:$0xff]
      %v1140 = vld [vmem:[%s3 + $0x60] sm:$0xff]
      %v1141 = vld [vmem:[%s3 + $0x68] sm:$0xff]
      %v1142 = vld [vmem:[%s3 + $0x70] sm:$0xff]
      %v1143 = vld [vmem:[%s3 + $0x78] sm:$0xff]
      %v1144 = vld [vmem:[%s3 + $0x80] sm:$0xff]
      %v1145 = vld [vmem:[%s3 + $0x88] sm:$0xff]
      %v1146 = vld [vmem:[%s3 + $0x90] sm:$0xff]
      %v1147 = vld [vmem:[%s3 + $0x98] sm:$0xff]
      %v1148 = vld [vmem:[%s3 + $0xa0] sm:$0xff]
      %v1149 = vld [vmem:[%s3 + $0xa8] sm:$0xff]
      %v1150 = vld [vmem:[%s3 + $0xb0] sm:$0xff]
      %v1151 = vld [vmem:[%s3 + $0xb8] sm:$0xff]
      %v1152 = vld [vmem:[%s3 + $0xc0] sm:$0xff]
      %v1153 = vld [vmem:[%s3 + $0xc8] sm:$0xff]
      %v1154 = vld [vmem:[%s3 + $0xd0] sm:$0xff]
      %v1155 = vld [vmem:[%s3 + $0xd8] sm:$0xff]
      %v1156 = vld [vmem:[%s3 + $0xe0] sm:$0xff]
      %v1157 = vld [vmem:[%s3 + $0xe8] sm:$0xff]
      %v1158 = vld [vmem:[%s3 + $0xf0] sm:$0xff]
      %v1159 = vld [vmem:[%s3 + $0xf8] sm:$0xff]
      %v1160 = vld [vmem:[%s3 + $0x100] sm:$0xff]
      %v1161 = vld [vmem:[%s3 + $0x108] sm:$0xff]
      %v1162 = vld [vmem:[%s3 + $0x110] sm:$0xff]
      %v1163 = vld [vmem:[%s3 + $0x118] sm:$0xff]
      %v1164 = vld [vmem:[%s3 + $0x120] sm:$0xff]
      %v1165 = vld [vmem:[%s3 + $0x128] sm:$0xff]
      %v1166 = vld [vmem:[%s3 + $0x130] sm:$0xff]
      %v1167 = vld [vmem:[%s3 + $0x138] sm:$0xff]
      %v1168 = vld [vmem:[%s3 + $0x140] sm:$0xff]
      %v1169 = vld [vmem:[%s3 + $0x148] sm:$0xff]
      %v1170 = vld [vmem:[%s3 + $0x150] sm:$0xff]
      %v1171 = vld [vmem:[%s3 + $0x158] sm:$0xff]
      %v1172 = vld [vmem:[%s3 + $0x160] sm:$0xff]
      %v1173 = vld [vmem:[%s3 + $0x168] sm:$0xff]
      %v1174 = vld [vmem:[%s3 + $0x170] sm:$0xff]
      %v1175 = vld [vmem:[%s3 + $0x178] sm:$0xff]
      %1176 = vmatpush.msra.mxu0 %v1173
      %1177 = vmatpush.msra.mxu0 %v1170
      %1178 = vmatpush.msra.mxu0 %v1167
      %1179 = vmatpush.msra.mxu0 %v1164
      %1180 = vmatpush.msra.mxu0 %v1161
      %1181 = vmatpush.msra.mxu0 %v1158
      %1182 = vmatpush.msra.mxu0 %v1155
      %1183 = vmatpush.msra.mxu0 %v1152
      %1184 = vmatpush.msra.mxu0 %v1149
      %1185 = vmatpush.msra.mxu0 %v1146
      %1186 = vmatpush.msra.mxu0 %v1143
      %1187 = vmatpush.msra.mxu0 %v1140
      %1188 = vmatpush.msra.mxu0 %v1137
      %1189 = vmatpush.msra.mxu0 %v1134
      %1190 = vmatpush.msra.mxu0 %v1131
      %1191 = vmatpush.msra.mxu0 %v1128
      %1192 = vmatmul.f32.gmra.mxu0 %v796
      %v1193 = vpop.f32.mrf.mxu0
      %v1194 = vadd.f32 0.0, %v1193
      %1195 = vdwg.mxu0
      %1196 = vmatpush.msra.mxu0 %v1174
      %1197 = vmatpush.msra.mxu0 %v1171
      %1198 = vmatpush.msra.mxu0 %v1168
      %1199 = vmatpush.msra.mxu0 %v1165
      %1200 = vmatpush.msra.mxu0 %v1162
      %1201 = vmatpush.msra.mxu0 %v1159
      %1202 = vmatpush.msra.mxu0 %v1156
      %1203 = vmatpush.msra.mxu0 %v1153
      %1204 = vmatpush.msra.mxu0 %v1150
      %1205 = vmatpush.msra.mxu0 %v1147
      %1206 = vmatpush.msra.mxu0 %v1144
      %1207 = vmatpush.msra.mxu0 %v1141
      %1208 = vmatpush.msra.mxu0 %v1138
      %1209 = vmatpush.msra.mxu0 %v1135
      %1210 = vmatpush.msra.mxu0 %v1132
      %1211 = vmatpush.msra.mxu0 %v1129
      %1212 = vmatmul.f32.gmra.mxu0 %v796
      %v1213 = vpop.f32.mrf.mxu0
      %v1214 = vadd.f32 0.0, %v1213
      %1215 = vdwg.mxu0
      %1216 = vmatpush.msra.mxu0 %v1175
      %1217 = vmatpush.msra.mxu0 %v1172
      %1218 = vmatpush.msra.mxu0 %v1169
      %1219 = vmatpush.msra.mxu0 %v1166
      %1220 = vmatpush.msra.mxu0 %v1163
      %1221 = vmatpush.msra.mxu0 %v1160
      %1222 = vmatpush.msra.mxu0 %v1157
      %1223 = vmatpush.msra.mxu0 %v1154
      %1224 = vmatpush.msra.mxu0 %v1151
      %1225 = vmatpush.msra.mxu0 %v1148
      %1226 = vmatpush.msra.mxu0 %v1145
      %1227 = vmatpush.msra.mxu0 %v1142
      %1228 = vmatpush.msra.mxu0 %v1139
      %1229 = vmatpush.msra.mxu0 %v1136
      %1230 = vmatpush.msra.mxu0 %v1133
      %1231 = vmatpush.msra.mxu0 %v1130
      %1232 = vmatmul.f32.gmra.mxu0 %v796
      %v1233 = vpop.f32.mrf.mxu0
      %v1234 = vadd.f32 0.0, %v1233
      %1235 = vdwg.mxu0
      %v1236 = vadd.f32 %v1125, %v1194
      %v1237 = vmul.f32 %v1236, 0.5
      %v1238 = vtanh.pop %v1237
      %v1239 = vadd.f32 %v1238, 1.0
      %v1240 = vmul.f32 %v1239, 0.5
      %v1241 = vadd.f32 %v1126, %v1214
      %v1242 = vmul.f32 %v1241, 0.5
      %v1243 = vtanh.pop %v1242
      %v1244 = vadd.f32 %v1243, 1.0
      %v1245 = vmul.f32 %v1244, 0.5
      %v1246 = vadd.f32 %v1234, %v398
      %v1247 = vmul.f32 %v1240, %v1246
      %v1248 = vadd.f32 %v1127, %v1247
      %v1249 = vtanh.pop %v1248
      %v1250 = vsub.f32 1.0, %v1245
      %v1251 = vmul.f32 %v1250, %v1249
      %v1252 = vmul.f32 %v1245, %v796
      %v1253 = vadd.f32 %v1251, %v1252
      %v1254 = vpack.c.bf16 %v1253, %v1253
      %v1255 = vld [vmem:[%s6] sm:$0xff]
      %v1256 = vld [vmem:[%s6 + $0x8] sm:$0xf]
      %v1257 = vld [vmem:[%s6 + $0xc] sm:$0xff]
      %v1258 = vld [vmem:[%s6 + $0x14] sm:$0xf]
      %v1259 = vld [vmem:[%s6 + $0x18] sm:$0xff]
      %v1260 = vld [vmem:[%s6 + $0x20] sm:$0xf]
      %v1261 = vld [vmem:[%s6 + $0x24] sm:$0xff]
      %v1262 = vld [vmem:[%s6 + $0x2c] sm:$0xf]
      %v1263 = vld [vmem:[%s6 + $0x30] sm:$0xff]
      %v1264 = vld [vmem:[%s6 + $0x38] sm:$0xf]
      %v1265 = vld [vmem:[%s6 + $0x3c] sm:$0xff]
      %v1266 = vld [vmem:[%s6 + $0x44] sm:$0xf]
      %v1267 = vld [vmem:[%s6 + $0x48] sm:$0xff]
      %v1268 = vld [vmem:[%s6 + $0x50] sm:$0xf]
      %v1269 = vld [vmem:[%s6 + $0x54] sm:$0xff]
      %v1270 = vld [vmem:[%s6 + $0x5c] sm:$0xf]
      %v1271 = vld [vmem:[%s6 + $0x60] sm:$0xff]
      %v1272 = vld [vmem:[%s6 + $0x68] sm:$0xf]
      %v1273 = vld [vmem:[%s6 + $0x6c] sm:$0xff]
      %v1274 = vld [vmem:[%s6 + $0x74] sm:$0xf]
      %v1275 = vld [vmem:[%s6 + $0x78] sm:$0xff]
      %v1276 = vld [vmem:[%s6 + $0x80] sm:$0xf]
      %v1277 = vld [vmem:[%s6 + $0x84] sm:$0xff]
      %v1278 = vld [vmem:[%s6 + $0x8c] sm:$0xf]
      %v1279 = vld [vmem:[%s6 + $0x90] sm:$0xff]
      %v1280 = vld [vmem:[%s6 + $0x98] sm:$0xf]
      %v1281 = vld [vmem:[%s6 + $0x9c] sm:$0xff]
      %v1282 = vld [vmem:[%s6 + $0xa4] sm:$0xf]
      %v1283 = vld [vmem:[%s6 + $0xa8] sm:$0xff]
      %v1284 = vld [vmem:[%s6 + $0xb0] sm:$0xf]
      %v1285 = vld [vmem:[%s6 + $0xb4] sm:$0xff]
      %v1286 = vld [vmem:[%s6 + $0xbc] sm:$0xf]
      %v1319 = vunpack.c.l.b16 %v1255
      %v1320 = vunpack.c.h.b16 %v1255
      %v1321 = vunpack.c.l.b16 %v1256
      %v1322 = vunpack.c.l.b16 %v1257
      %v1323 = vunpack.c.h.b16 %v1257
      %v1324 = vunpack.c.l.b16 %v1258
      %v1325 = vunpack.c.l.b16 %v1259
      %v1326 = vunpack.c.h.b16 %v1259
      %v1327 = vunpack.c.l.b16 %v1260
      %v1328 = vunpack.c.l.b16 %v1261
      %v1329 = vunpack.c.h.b16 %v1261
      %v1330 = vunpack.c.l.b16 %v1262
      %v1331 = vunpack.c.l.b16 %v1263
      %v1332 = vunpack.c.h.b16 %v1263
      %v1333 = vunpack.c.l.b16 %v1264
      %v1334 = vunpack.c.l.b16 %v1265
      %v1335 = vunpack.c.h.b16 %v1265
      %v1336 = vunpack.c.l.b16 %v1266
      %v1337 = vunpack.c.l.b16 %v1267
      %v1338 = vunpack.c.h.b16 %v1267
      %v1339 = vunpack.c.l.b16 %v1268
      %v1340 = vunpack.c.l.b16 %v1269
      %v1341 = vunpack.c.h.b16 %v1269
      %v1342 = vunpack.c.l.b16 %v1270
      %v1343 = vunpack.c.l.b16 %v1271
      %v1344 = vunpack.c.h.b16 %v1271
      %v1345 = vunpack.c.l.b16 %v1272
      %v1346 = vunpack.c.l.b16 %v1273
      %v1347 = vunpack.c.h.b16 %v1273
      %v1348 = vunpack.c.l.b16 %v1274
      %v1349 = vunpack.c.l.b16 %v1275
      %v1350 = vunpack.c.h.b16 %v1275
      %v1351 = vunpack.c.l.b16 %v1276
      %v1352 = vunpack.c.l.b16 %v1277
      %v1353 = vunpack.c.h.b16 %v1277
      %v1354 = vunpack.c.l.b16 %v1278
      %v1355 = vunpack.c.l.b16 %v1279
      %v1356 = vunpack.c.h.b16 %v1279
      %v1357 = vunpack.c.l.b16 %v1280
      %v1358 = vunpack.c.l.b16 %v1281
      %v1359 = vunpack.c.h.b16 %v1281
      %v1360 = vunpack.c.l.b16 %v1282
      %v1361 = vunpack.c.l.b16 %v1283
      %v1362 = vunpack.c.h.b16 %v1283
      %v1363 = vunpack.c.l.b16 %v1284
      %v1364 = vunpack.c.l.b16 %v1285
      %v1365 = vunpack.c.h.b16 %v1285
      %v1366 = vunpack.c.l.b16 %v1286
      %v1367 = vpack.c.b16 %v1322, %v1319
      %v1368 = vpack.c.b16 %v1323, %v1320
      %v1369 = vpack.c.b16 %v1324, %v1321
      %v1370 = vpack.c.b16 %v1328, %v1325
      %v1371 = vpack.c.b16 %v1329, %v1326
      %v1372 = vpack.c.b16 %v1330, %v1327
      %v1373 = vpack.c.b16 %v1334, %v1331
      %v1374 = vpack.c.b16 %v1335, %v1332
      %v1375 = vpack.c.b16 %v1336, %v1333
      %v1376 = vpack.c.b16 %v1340, %v1337
      %v1377 = vpack.c.b16 %v1341, %v1338
      %v1378 = vpack.c.b16 %v1342, %v1339
      %v1379 = vpack.c.b16 %v1346, %v1343
      %v1380 = vpack.c.b16 %v1347, %v1344
      %v1381 = vpack.c.b16 %v1348, %v1345
      %v1382 = vpack.c.b16 %v1352, %v1349
      %v1383 = vpack.c.b16 %v1353, %v1350
      %v1384 = vpack.c.b16 %v1354, %v1351
      %v1385 = vpack.c.b16 %v1358, %v1355
      %v1386 = vpack.c.b16 %v1359, %v1356
      %v1387 = vpack.c.b16 %v1360, %v1357
      %v1388 = vpack.c.b16 %v1364, %v1361
      %v1389 = vpack.c.b16 %v1365, %v1362
      %v1390 = vpack.c.b16 %v1366, %v1363
      %1415 = vmatpush.bf16.msra.mxu0 %v1388
      %1416 = vmatpush.bf16.msra.mxu0 %v1385
      %1417 = vmatpush.bf16.msra.mxu0 %v1382
      %1418 = vmatpush.bf16.msra.mxu0 %v1379
      %1419 = vmatpush.bf16.msra.mxu0 %v1376
      %1420 = vmatpush.bf16.msra.mxu0 %v1373
      %1421 = vmatpush.bf16.msra.mxu0 %v1370
      %1422 = vmatpush.bf16.msra.mxu0 %v1367
      %1423 = vmatmul.bf16.gmra.mxu0 %v1254
      %v1424 = vpop.f32.mrf.mxu0
      %v1425 = vadd.f32 %v406, %v1424
      %v1426 = vpop.f32.mrf.mxu0
      %1427 = vdwg.mxu0
      %1428 = vmatpush.bf16.msra.mxu0 %v1389
      %1429 = vmatpush.bf16.msra.mxu0 %v1386
      %1430 = vmatpush.bf16.msra.mxu0 %v1383
      %1431 = vmatpush.bf16.msra.mxu0 %v1380
      %1432 = vmatpush.bf16.msra.mxu0 %v1377
      %1433 = vmatpush.bf16.msra.mxu0 %v1374
      %1434 = vmatpush.bf16.msra.mxu0 %v1371
      %1435 = vmatpush.bf16.msra.mxu0 %v1368
      %1436 = vmatmul.bf16.gmra.mxu0 %v1254
      %v1437 = vpop.f32.mrf.mxu0
      %v1438 = vadd.f32 %v407, %v1437
      %v1439 = vpop.f32.mrf.mxu0
      %1440 = vdwg.mxu0
      %1441 = vmatpush.bf16.msra.mxu0 %v1390
      %1442 = vmatpush.bf16.msra.mxu0 %v1387
      %1443 = vmatpush.bf16.msra.mxu0 %v1384
      %1444 = vmatpush.bf16.msra.mxu0 %v1381
      %1445 = vmatpush.bf16.msra.mxu0 %v1378
      %1446 = vmatpush.bf16.msra.mxu0 %v1375
      %1447 = vmatpush.bf16.msra.mxu0 %v1372
      %1448 = vmatpush.bf16.msra.mxu0 %v1369
      %1449 = vmatmul.bf16.gmra.mxu0 %v1254
      %v1450 = vpop.f32.mrf.mxu0
      %v1451 = vadd.f32 %v408, %v1450
      %v1452 = vpop.f32.mrf.mxu0
      %1453 = vdwg.mxu0
      %v1454 = vld [vmem:[%s7] sm:$0xff]
      %v1455 = vld [vmem:[%s7 + $0x8] sm:$0xff]
      %v1456 = vld [vmem:[%s7 + $0x10] sm:$0xff]
      %v1457 = vld [vmem:[%s7 + $0x18] sm:$0xff]
      %v1458 = vld [vmem:[%s7 + $0x20] sm:$0xff]
      %v1459 = vld [vmem:[%s7 + $0x28] sm:$0xff]
      %v1460 = vld [vmem:[%s7 + $0x30] sm:$0xff]
      %v1461 = vld [vmem:[%s7 + $0x38] sm:$0xff]
      %v1462 = vld [vmem:[%s7 + $0x40] sm:$0xff]
      %v1463 = vld [vmem:[%s7 + $0x48] sm:$0xff]
      %v1464 = vld [vmem:[%s7 + $0x50] sm:$0xff]
      %v1465 = vld [vmem:[%s7 + $0x58] sm:$0xff]
      %v1466 = vld [vmem:[%s7 + $0x60] sm:$0xff]
      %v1467 = vld [vmem:[%s7 + $0x68] sm:$0xff]
      %v1468 = vld [vmem:[%s7 + $0x70] sm:$0xff]
      %v1469 = vld [vmem:[%s7 + $0x78] sm:$0xff]
      %v1470 = vld [vmem:[%s7 + $0x80] sm:$0xff]
      %v1471 = vld [vmem:[%s7 + $0x88] sm:$0xff]
      %v1472 = vld [vmem:[%s7 + $0x90] sm:$0xff]
      %v1473 = vld [vmem:[%s7 + $0x98] sm:$0xff]
      %v1474 = vld [vmem:[%s7 + $0xa0] sm:$0xff]
      %v1475 = vld [vmem:[%s7 + $0xa8] sm:$0xff]
      %v1476 = vld [vmem:[%s7 + $0xb0] sm:$0xff]
      %v1477 = vld [vmem:[%s7 + $0xb8] sm:$0xff]
      %v1478 = vld [vmem:[%s7 + $0xc0] sm:$0xff]
      %v1479 = vld [vmem:[%s7 + $0xc8] sm:$0xff]
      %v1480 = vld [vmem:[%s7 + $0xd0] sm:$0xff]
      %v1481 = vld [vmem:[%s7 + $0xd8] sm:$0xff]
      %v1482 = vld [vmem:[%s7 + $0xe0] sm:$0xff]
      %v1483 = vld [vmem:[%s7 + $0xe8] sm:$0xff]
      %v1484 = vld [vmem:[%s7 + $0xf0] sm:$0xff]
      %v1485 = vld [vmem:[%s7 + $0xf8] sm:$0xff]
      %v1486 = vld [vmem:[%s7 + $0x100] sm:$0xff]
      %v1487 = vld [vmem:[%s7 + $0x108] sm:$0xff]
      %v1488 = vld [vmem:[%s7 + $0x110] sm:$0xff]
      %v1489 = vld [vmem:[%s7 + $0x118] sm:$0xff]
      %v1490 = vld [vmem:[%s7 + $0x120] sm:$0xff]
      %v1491 = vld [vmem:[%s7 + $0x128] sm:$0xff]
      %v1492 = vld [vmem:[%s7 + $0x130] sm:$0xff]
      %v1493 = vld [vmem:[%s7 + $0x138] sm:$0xff]
      %v1494 = vld [vmem:[%s7 + $0x140] sm:$0xff]
      %v1495 = vld [vmem:[%s7 + $0x148] sm:$0xff]
      %v1496 = vld [vmem:[%s7 + $0x150] sm:$0xff]
      %v1497 = vld [vmem:[%s7 + $0x158] sm:$0xff]
      %v1498 = vld [vmem:[%s7 + $0x160] sm:$0xff]
      %v1499 = vld [vmem:[%s7 + $0x168] sm:$0xff]
      %v1500 = vld [vmem:[%s7 + $0x170] sm:$0xff]
      %v1501 = vld [vmem:[%s7 + $0x178] sm:$0xff]
      %1502 = vmatpush.msra.mxu0 %v1499
      %1503 = vmatpush.msra.mxu0 %v1496
      %1504 = vmatpush.msra.mxu0 %v1493
      %1505 = vmatpush.msra.mxu0 %v1490
      %1506 = vmatpush.msra.mxu0 %v1487
      %1507 = vmatpush.msra.mxu0 %v1484
      %1508 = vmatpush.msra.mxu0 %v1481
      %1509 = vmatpush.msra.mxu0 %v1478
      %1510 = vmatpush.msra.mxu0 %v1475
      %1511 = vmatpush.msra.mxu0 %v1472
      %1512 = vmatpush.msra.mxu0 %v1469
      %1513 = vmatpush.msra.mxu0 %v1466
      %1514 = vmatpush.msra.mxu0 %v1463
      %1515 = vmatpush.msra.mxu0 %v1460
      %1516 = vmatpush.msra.mxu0 %v1457
      %1517 = vmatpush.msra.mxu0 %v1454
      %1518 = vmatmul.f32.gmra.mxu0 %v1122
      %v1519 = vpop.f32.mrf.mxu0
      %v1520 = vadd.f32 0.0, %v1519
      %1521 = vdwg.mxu0
      %1522 = vmatpush.msra.mxu0 %v1500
      %1523 = vmatpush.msra.mxu0 %v1497
      %1524 = vmatpush.msra.mxu0 %v1494
      %1525 = vmatpush.msra.mxu0 %v1491
      %1526 = vmatpush.msra.mxu0 %v1488
      %1527 = vmatpush.msra.mxu0 %v1485
      %1528 = vmatpush.msra.mxu0 %v1482
      %1529 = vmatpush.msra.mxu0 %v1479
      %1530 = vmatpush.msra.mxu0 %v1476
      %1531 = vmatpush.msra.mxu0 %v1473
      %1532 = vmatpush.msra.mxu0 %v1470
      %1533 = vmatpush.msra.mxu0 %v1467
      %1534 = vmatpush.msra.mxu0 %v1464
      %1535 = vmatpush.msra.mxu0 %v1461
      %1536 = vmatpush.msra.mxu0 %v1458
      %1537 = vmatpush.msra.mxu0 %v1455
      %1538 = vmatmul.f32.gmra.mxu0 %v1122
      %v1539 = vpop.f32.mrf.mxu0
      %v1540 = vadd.f32 0.0, %v1539
      %1541 = vdwg.mxu0
      %1542 = vmatpush.msra.mxu0 %v1501
      %1543 = vmatpush.msra.mxu0 %v1498
      %1544 = vmatpush.msra.mxu0 %v1495
      %1545 = vmatpush.msra.mxu0 %v1492
      %1546 = vmatpush.msra.mxu0 %v1489
      %1547 = vmatpush.msra.mxu0 %v1486
      %1548 = vmatpush.msra.mxu0 %v1483
      %1549 = vmatpush.msra.mxu0 %v1480
      %1550 = vmatpush.msra.mxu0 %v1477
      %1551 = vmatpush.msra.mxu0 %v1474
      %1552 = vmatpush.msra.mxu0 %v1471
      %1553 = vmatpush.msra.mxu0 %v1468
      %1554 = vmatpush.msra.mxu0 %v1465
      %1555 = vmatpush.msra.mxu0 %v1462
      %1556 = vmatpush.msra.mxu0 %v1459
      %1557 = vmatpush.msra.mxu0 %v1456
      %1558 = vmatmul.f32.gmra.mxu0 %v1122
      %v1559 = vpop.f32.mrf.mxu0
      %v1560 = vadd.f32 0.0, %v1559
      %1561 = vdwg.mxu0
      %v1562 = vadd.f32 %v1425, %v1520
      %v1563 = vmul.f32 %v1562, 0.5
      %v1564 = vtanh.pop %v1563
      %v1565 = vadd.f32 %v1564, 1.0
      %v1566 = vmul.f32 %v1565, 0.5
      %v1567 = vadd.f32 %v1438, %v1540
      %v1568 = vmul.f32 %v1567, 0.5
      %v1569 = vtanh.pop %v1568
      %v1570 = vadd.f32 %v1569, 1.0
      %v1571 = vmul.f32 %v1570, 0.5
      %v1572 = vadd.f32 %v1560, %v402
      %v1573 = vmul.f32 %v1566, %v1572
      %v1574 = vadd.f32 %v1451, %v1573
      %v1575 = vtanh.pop %v1574
      %v1576 = vsub.f32 1.0, %v1571
      %v1577 = vmul.f32 %v1576, %v1575
      %v1578 = vmul.f32 %v1571, %v1122
      %v1579 = vadd.f32 %v1577, %v1578
      %s1580 = scalar_lea.vmem %s386, 8
      %1581 = vst [vmem:[%s1580] sm:$0xff] %v1579
      %s1582 = scalar_lea.vmem [#allocation2], 48
      %v1583 = vld [vmem:[%s1582] sm:$0xff]
      %v1584 = vld [vmem:[%s1582 + $0x8] sm:$0xff]
      %v1585 = vld [vmem:[%s1582 + $0x10] sm:$0xff]
      %v1586 = vld [vmem:[%s3] sm:$0xff]
      %v1587 = vld [vmem:[%s3 + $0x8] sm:$0xff]
      %v1588 = vld [vmem:[%s3 + $0x10] sm:$0xff]
      %v1589 = vld [vmem:[%s3 + $0x18] sm:$0xff]
      %v1590 = vld [vmem:[%s3 + $0x20] sm:$0xff]
      %v1591 = vld [vmem:[%s3 + $0x28] sm:$0xff]
      %v1592 = vld [vmem:[%s3 + $0x30] sm:$0xff]
      %v1593 = vld [vmem:[%s3 + $0x38] sm:$0xff]
      %v1594 = vld [vmem:[%s3 + $0x40] sm:$0xff]
      %v1595 = vld [vmem:[%s3 + $0x48] sm:$0xff]
      %v1596 = vld [vmem:[%s3 + $0x50] sm:$0xff]
      %v1597 = vld [vmem:[%s3 + $0x58] sm:$0xff]
      %v1598 = vld [vmem:[%s3 + $0x60] sm:$0xff]
      %v1599 = vld [vmem:[%s3 + $0x68] sm:$0xff]
      %v1600 = vld [vmem:[%s3 + $0x70] sm:$0xff]
      %v1601 = vld [vmem:[%s3 + $0x78] sm:$0xff]
      %v1602 = vld [vmem:[%s3 + $0x80] sm:$0xff]
      %v1603 = vld [vmem:[%s3 + $0x88] sm:$0xff]
      %v1604 = vld [vmem:[%s3 + $0x90] sm:$0xff]
      %v1605 = vld [vmem:[%s3 + $0x98] sm:$0xff]
      %v1606 = vld [vmem:[%s3 + $0xa0] sm:$0xff]
      %v1607 = vld [vmem:[%s3 + $0xa8] sm:$0xff]
      %v1608 = vld [vmem:[%s3 + $0xb0] sm:$0xff]
      %v1609 = vld [vmem:[%s3 + $0xb8] sm:$0xff]
      %v1610 = vld [vmem:[%s3 + $0xc0] sm:$0xff]
      %v1611 = vld [vmem:[%s3 + $0xc8] sm:$0xff]
      %v1612 = vld [vmem:[%s3 + $0xd0] sm:$0xff]
      %v1613 = vld [vmem:[%s3 + $0xd8] sm:$0xff]
      %v1614 = vld [vmem:[%s3 + $0xe0] sm:$0xff]
      %v1615 = vld [vmem:[%s3 + $0xe8] sm:$0xff]
      %v1616 = vld [vmem:[%s3 + $0xf0] sm:$0xff]
      %v1617 = vld [vmem:[%s3 + $0xf8] sm:$0xff]
      %v1618 = vld [vmem:[%s3 + $0x100] sm:$0xff]
      %v1619 = vld [vmem:[%s3 + $0x108] sm:$0xff]
      %v1620 = vld [vmem:[%s3 + $0x110] sm:$0xff]
      %v1621 = vld [vmem:[%s3 + $0x118] sm:$0xff]
      %v1622 = vld [vmem:[%s3 + $0x120] sm:$0xff]
      %v1623 = vld [vmem:[%s3 + $0x128] sm:$0xff]
      %v1624 = vld [vmem:[%s3 + $0x130] sm:$0xff]
      %v1625 = vld [vmem:[%s3 + $0x138] sm:$0xff]
      %v1626 = vld [vmem:[%s3 + $0x140] sm:$0xff]
      %v1627 = vld [vmem:[%s3 + $0x148] sm:$0xff]
      %v1628 = vld [vmem:[%s3 + $0x150] sm:$0xff]
      %v1629 = vld [vmem:[%s3 + $0x158] sm:$0xff]
      %v1630 = vld [vmem:[%s3 + $0x160] sm:$0xff]
      %v1631 = vld [vmem:[%s3 + $0x168] sm:$0xff]
      %v1632 = vld [vmem:[%s3 + $0x170] sm:$0xff]
      %v1633 = vld [vmem:[%s3 + $0x178] sm:$0xff]
      %1634 = vmatpush.msra.mxu0 %v1631
      %1635 = vmatpush.msra.mxu0 %v1628
      %1636 = vmatpush.msra.mxu0 %v1625
      %1637 = vmatpush.msra.mxu0 %v1622
      %1638 = vmatpush.msra.mxu0 %v1619
      %1639 = vmatpush.msra.mxu0 %v1616
      %1640 = vmatpush.msra.mxu0 %v1613
      %1641 = vmatpush.msra.mxu0 %v1610
      %1642 = vmatpush.msra.mxu0 %v1607
      %1643 = vmatpush.msra.mxu0 %v1604
      %1644 = vmatpush.msra.mxu0 %v1601
      %1645 = vmatpush.msra.mxu0 %v1598
      %1646 = vmatpush.msra.mxu0 %v1595
      %1647 = vmatpush.msra.mxu0 %v1592
      %1648 = vmatpush.msra.mxu0 %v1589
      %1649 = vmatpush.msra.mxu0 %v1586
      %1650 = vmatmul.f32.gmra.mxu0 %v1253
      %v1651 = vpop.f32.mrf.mxu0
      %v1652 = vadd.f32 0.0, %v1651
      %1653 = vdwg.mxu0
      %1654 = vmatpush.msra.mxu0 %v1632
      %1655 = vmatpush.msra.mxu0 %v1629
      %1656 = vmatpush.msra.mxu0 %v1626
      %1657 = vmatpush.msra.mxu0 %v1623
      %1658 = vmatpush.msra.mxu0 %v1620
      %1659 = vmatpush.msra.mxu0 %v1617
      %1660 = vmatpush.msra.mxu0 %v1614
      %1661 = vmatpush.msra.mxu0 %v1611
      %1662 = vmatpush.msra.mxu0 %v1608
      %1663 = vmatpush.msra.mxu0 %v1605
      %1664 = vmatpush.msra.mxu0 %v1602
      %1665 = vmatpush.msra.mxu0 %v1599
      %1666 = vmatpush.msra.mxu0 %v1596
      %1667 = vmatpush.msra.mxu0 %v1593
      %1668 = vmatpush.msra.mxu0 %v1590
      %1669 = vmatpush.msra.mxu0 %v1587
      %1670 = vmatmul.f32.gmra.mxu0 %v1253
      %v1671 = vpop.f32.mrf.mxu0
      %v1672 = vadd.f32 0.0, %v1671
      %1673 = vdwg.mxu0
      %1674 = vmatpush.msra.mxu0 %v1633
      %1675 = vmatpush.msra.mxu0 %v1630
      %1676 = vmatpush.msra.mxu0 %v1627
      %1677 = vmatpush.msra.mxu0 %v1624
      %1678 = vmatpush.msra.mxu0 %v1621
      %1679 = vmatpush.msra.mxu0 %v1618
      %1680 = vmatpush.msra.mxu0 %v1615
      %1681 = vmatpush.msra.mxu0 %v1612
      %1682 = vmatpush.msra.mxu0 %v1609
      %1683 = vmatpush.msra.mxu0 %v1606
      %1684 = vmatpush.msra.mxu0 %v1603
      %1685 = vmatpush.msra.mxu0 %v1600
      %1686 = vmatpush.msra.mxu0 %v1597
      %1687 = vmatpush.msra.mxu0 %v1594
      %1688 = vmatpush.msra.mxu0 %v1591
      %1689 = vmatpush.msra.mxu0 %v1588
      %1690 = vmatmul.f32.gmra.mxu0 %v1253
      %v1691 = vpop.f32.mrf.mxu0
      %v1692 = vadd.f32 0.0, %v1691
      %1693 = vdwg.mxu0
      %v1694 = vadd.f32 %v1583, %v1652
      %v1695 = vmul.f32 %v1694, 0.5
      %v1696 = vtanh.pop %v1695
      %v1697 = vadd.f32 %v1696, 1.0
      %v1698 = vmul.f32 %v1697, 0.5
      %v1699 = vadd.f32 %v1584, %v1672
      %v1700 = vmul.f32 %v1699, 0.5
      %v1701 = vtanh.pop %v1700
      %v1702 = vadd.f32 %v1701, 1.0
      %v1703 = vmul.f32 %v1702, 0.5
      %v1704 = vadd.f32 %v1692, %v398
      %v1705 = vmul.f32 %v1698, %v1704
      %v1706 = vadd.f32 %v1585, %v1705
      %v1707 = vtanh.pop %v1706
      %v1708 = vsub.f32 1.0, %v1703
      %v1709 = vmul.f32 %v1708, %v1707
      %v1710 = vmul.f32 %v1703, %v1253
      %v1711 = vadd.f32 %v1709, %v1710
      %v1712 = vpack.c.bf16 %v1711, %v1711
      %v1713 = vld [vmem:[%s6] sm:$0xff]
      %v1714 = vld [vmem:[%s6 + $0x8] sm:$0xf]
      %v1715 = vld [vmem:[%s6 + $0xc] sm:$0xff]
      %v1716 = vld [vmem:[%s6 + $0x14] sm:$0xf]
      %v1717 = vld [vmem:[%s6 + $0x18] sm:$0xff]
      %v1718 = vld [vmem:[%s6 + $0x20] sm:$0xf]
      %v1719 = vld [vmem:[%s6 + $0x24] sm:$0xff]
      %v1720 = vld [vmem:[%s6 + $0x2c] sm:$0xf]
      %v1721 = vld [vmem:[%s6 + $0x30] sm:$0xff]
      %v1722 = vld [vmem:[%s6 + $0x38] sm:$0xf]
      %v1723 = vld [vmem:[%s6 + $0x3c] sm:$0xff]
      %v1724 = vld [vmem:[%s6 + $0x44] sm:$0xf]
      %v1725 = vld [vmem:[%s6 + $0x48] sm:$0xff]
      %v1726 = vld [vmem:[%s6 + $0x50] sm:$0xf]
      %v1727 = vld [vmem:[%s6 + $0x54] sm:$0xff]
      %v1728 = vld [vmem:[%s6 + $0x5c] sm:$0xf]
      %v1729 = vld [vmem:[%s6 + $0x60] sm:$0xff]
      %v1730 = vld [vmem:[%s6 + $0x68] sm:$0xf]
      %v1731 = vld [vmem:[%s6 + $0x6c] sm:$0xff]
      %v1732 = vld [vmem:[%s6 + $0x74] sm:$0xf]
      %v1733 = vld [vmem:[%s6 + $0x78] sm:$0xff]
      %v1734 = vld [vmem:[%s6 + $0x80] sm:$0xf]
      %v1735 = vld [vmem:[%s6 + $0x84] sm:$0xff]
      %v1736 = vld [vmem:[%s6 + $0x8c] sm:$0xf]
      %v1737 = vld [vmem:[%s6 + $0x90] sm:$0xff]
      %v1738 = vld [vmem:[%s6 + $0x98] sm:$0xf]
      %v1739 = vld [vmem:[%s6 + $0x9c] sm:$0xff]
      %v1740 = vld [vmem:[%s6 + $0xa4] sm:$0xf]
      %v1741 = vld [vmem:[%s6 + $0xa8] sm:$0xff]
      %v1742 = vld [vmem:[%s6 + $0xb0] sm:$0xf]
      %v1743 = vld [vmem:[%s6 + $0xb4] sm:$0xff]
      %v1744 = vld [vmem:[%s6 + $0xbc] sm:$0xf]
      %v1777 = vunpack.c.l.b16 %v1713
      %v1778 = vunpack.c.h.b16 %v1713
      %v1779 = vunpack.c.l.b16 %v1714
      %v1780 = vunpack.c.l.b16 %v1715
      %v1781 = vunpack.c.h.b16 %v1715
      %v1782 = vunpack.c.l.b16 %v1716
      %v1783 = vunpack.c.l.b16 %v1717
      %v1784 = vunpack.c.h.b16 %v1717
      %v1785 = vunpack.c.l.b16 %v1718
      %v1786 = vunpack.c.l.b16 %v1719
      %v1787 = vunpack.c.h.b16 %v1719
      %v1788 = vunpack.c.l.b16 %v1720
      %v1789 = vunpack.c.l.b16 %v1721
      %v1790 = vunpack.c.h.b16 %v1721
      %v1791 = vunpack.c.l.b16 %v1722
      %v1792 = vunpack.c.l.b16 %v1723
      %v1793 = vunpack.c.h.b16 %v1723
      %v1794 = vunpack.c.l.b16 %v1724
      %v1795 = vunpack.c.l.b16 %v1725
      %v1796 = vunpack.c.h.b16 %v1725
      %v1797 = vunpack.c.l.b16 %v1726
      %v1798 = vunpack.c.l.b16 %v1727
      %v1799 = vunpack.c.h.b16 %v1727
      %v1800 = vunpack.c.l.b16 %v1728
      %v1801 = vunpack.c.l.b16 %v1729
      %v1802 = vunpack.c.h.b16 %v1729
      %v1803 = vunpack.c.l.b16 %v1730
      %v1804 = vunpack.c.l.b16 %v1731
      %v1805 = vunpack.c.h.b16 %v1731
      %v1806 = vunpack.c.l.b16 %v1732
      %v1807 = vunpack.c.l.b16 %v1733
      %v1808 = vunpack.c.h.b16 %v1733
      %v1809 = vunpack.c.l.b16 %v1734
      %v1810 = vunpack.c.l.b16 %v1735
      %v1811 = vunpack.c.h.b16 %v1735
      %v1812 = vunpack.c.l.b16 %v1736
      %v1813 = vunpack.c.l.b16 %v1737
      %v1814 = vunpack.c.h.b16 %v1737
      %v1815 = vunpack.c.l.b16 %v1738
      %v1816 = vunpack.c.l.b16 %v1739
      %v1817 = vunpack.c.h.b16 %v1739
      %v1818 = vunpack.c.l.b16 %v1740
      %v1819 = vunpack.c.l.b16 %v1741
      %v1820 = vunpack.c.h.b16 %v1741
      %v1821 = vunpack.c.l.b16 %v1742
      %v1822 = vunpack.c.l.b16 %v1743
      %v1823 = vunpack.c.h.b16 %v1743
      %v1824 = vunpack.c.l.b16 %v1744
      %v1825 = vpack.c.b16 %v1780, %v1777
      %v1826 = vpack.c.b16 %v1781, %v1778
      %v1827 = vpack.c.b16 %v1782, %v1779
      %v1828 = vpack.c.b16 %v1786, %v1783
      %v1829 = vpack.c.b16 %v1787, %v1784
      %v1830 = vpack.c.b16 %v1788, %v1785
      %v1831 = vpack.c.b16 %v1792, %v1789
      %v1832 = vpack.c.b16 %v1793, %v1790
      %v1833 = vpack.c.b16 %v1794, %v1791
      %v1834 = vpack.c.b16 %v1798, %v1795
      %v1835 = vpack.c.b16 %v1799, %v1796
      %v1836 = vpack.c.b16 %v1800, %v1797
      %v1837 = vpack.c.b16 %v1804, %v1801
      %v1838 = vpack.c.b16 %v1805, %v1802
      %v1839 = vpack.c.b16 %v1806, %v1803
      %v1840 = vpack.c.b16 %v1810, %v1807
      %v1841 = vpack.c.b16 %v1811, %v1808
      %v1842 = vpack.c.b16 %v1812, %v1809
      %v1843 = vpack.c.b16 %v1816, %v1813
      %v1844 = vpack.c.b16 %v1817, %v1814
      %v1845 = vpack.c.b16 %v1818, %v1815
      %v1846 = vpack.c.b16 %v1822, %v1819
      %v1847 = vpack.c.b16 %v1823, %v1820
      %v1848 = vpack.c.b16 %v1824, %v1821
      %1873 = vmatpush.bf16.msra.mxu0 %v1846
      %1874 = vmatpush.bf16.msra.mxu0 %v1843
      %1875 = vmatpush.bf16.msra.mxu0 %v1840
      %1876 = vmatpush.bf16.msra.mxu0 %v1837
      %1877 = vmatpush.bf16.msra.mxu0 %v1834
      %1878 = vmatpush.bf16.msra.mxu0 %v1831
      %1879 = vmatpush.bf16.msra.mxu0 %v1828
      %1880 = vmatpush.bf16.msra.mxu0 %v1825
      %1881 = vmatmul.bf16.gmra.mxu0 %v1712
      %v1882 = vpop.f32.mrf.mxu0
      %v1883 = vadd.f32 %v406, %v1882
      %v1884 = vpop.f32.mrf.mxu0
      %1885 = vdwg.mxu0
      %1886 = vmatpush.bf16.msra.mxu0 %v1847
      %1887 = vmatpush.bf16.msra.mxu0 %v1844
      %1888 = vmatpush.bf16.msra.mxu0 %v1841
      %1889 = vmatpush.bf16.msra.mxu0 %v1838
      %1890 = vmatpush.bf16.msra.mxu0 %v1835
      %1891 = vmatpush.bf16.msra.mxu0 %v1832
      %1892 = vmatpush.bf16.msra.mxu0 %v1829
      %1893 = vmatpush.bf16.msra.mxu0 %v1826
      %1894 = vmatmul.bf16.gmra.mxu0 %v1712
      %v1895 = vpop.f32.mrf.mxu0
      %v1896 = vadd.f32 %v407, %v1895
      %v1897 = vpop.f32.mrf.mxu0
      %1898 = vdwg.mxu0
      %1899 = vmatpush.bf16.msra.mxu0 %v1848
      %1900 = vmatpush.bf16.msra.mxu0 %v1845
      %1901 = vmatpush.bf16.msra.mxu0 %v1842
      %1902 = vmatpush.bf16.msra.mxu0 %v1839
      %1903 = vmatpush.bf16.msra.mxu0 %v1836
      %1904 = vmatpush.bf16.msra.mxu0 %v1833
      %1905 = vmatpush.bf16.msra.mxu0 %v1830
      %1906 = vmatpush.bf16.msra.mxu0 %v1827
      %1907 = vmatmul.bf16.gmra.mxu0 %v1712
      %v1908 = vpop.f32.mrf.mxu0
      %v1909 = vadd.f32 %v408, %v1908
      %v1910 = vpop.f32.mrf.mxu0
      %1911 = vdwg.mxu0
      %v1912 = vld [vmem:[%s7] sm:$0xff]
      %v1913 = vld [vmem:[%s7 + $0x8] sm:$0xff]
      %v1914 = vld [vmem:[%s7 + $0x10] sm:$0xff]
      %v1915 = vld [vmem:[%s7 + $0x18] sm:$0xff]
      %v1916 = vld [vmem:[%s7 + $0x20] sm:$0xff]
      %v1917 = vld [vmem:[%s7 + $0x28] sm:$0xff]
      %v1918 = vld [vmem:[%s7 + $0x30] sm:$0xff]
      %v1919 = vld [vmem:[%s7 + $0x38] sm:$0xff]
      %v1920 = vld [vmem:[%s7 + $0x40] sm:$0xff]
      %v1921 = vld [vmem:[%s7 + $0x48] sm:$0xff]
      %v1922 = vld [vmem:[%s7 + $0x50] sm:$0xff]
      %v1923 = vld [vmem:[%s7 + $0x58] sm:$0xff]
      %v1924 = vld [vmem:[%s7 + $0x60] sm:$0xff]
      %v1925 = vld [vmem:[%s7 + $0x68] sm:$0xff]
      %v1926 = vld [vmem:[%s7 + $0x70] sm:$0xff]
      %v1927 = vld [vmem:[%s7 + $0x78] sm:$0xff]
      %v1928 = vld [vmem:[%s7 + $0x80] sm:$0xff]
      %v1929 = vld [vmem:[%s7 + $0x88] sm:$0xff]
      %v1930 = vld [vmem:[%s7 + $0x90] sm:$0xff]
      %v1931 = vld [vmem:[%s7 + $0x98] sm:$0xff]
      %v1932 = vld [vmem:[%s7 + $0xa0] sm:$0xff]
      %v1933 = vld [vmem:[%s7 + $0xa8] sm:$0xff]
      %v1934 = vld [vmem:[%s7 + $0xb0] sm:$0xff]
      %v1935 = vld [vmem:[%s7 + $0xb8] sm:$0xff]
      %v1936 = vld [vmem:[%s7 + $0xc0] sm:$0xff]
      %v1937 = vld [vmem:[%s7 + $0xc8] sm:$0xff]
      %v1938 = vld [vmem:[%s7 + $0xd0] sm:$0xff]
      %v1939 = vld [vmem:[%s7 + $0xd8] sm:$0xff]
      %v1940 = vld [vmem:[%s7 + $0xe0] sm:$0xff]
      %v1941 = vld [vmem:[%s7 + $0xe8] sm:$0xff]
      %v1942 = vld [vmem:[%s7 + $0xf0] sm:$0xff]
      %v1943 = vld [vmem:[%s7 + $0xf8] sm:$0xff]
      %v1944 = vld [vmem:[%s7 + $0x100] sm:$0xff]
      %v1945 = vld [vmem:[%s7 + $0x108] sm:$0xff]
      %v1946 = vld [vmem:[%s7 + $0x110] sm:$0xff]
      %v1947 = vld [vmem:[%s7 + $0x118] sm:$0xff]
      %v1948 = vld [vmem:[%s7 + $0x120] sm:$0xff]
      %v1949 = vld [vmem:[%s7 + $0x128] sm:$0xff]
      %v1950 = vld [vmem:[%s7 + $0x130] sm:$0xff]
      %v1951 = vld [vmem:[%s7 + $0x138] sm:$0xff]
      %v1952 = vld [vmem:[%s7 + $0x140] sm:$0xff]
      %v1953 = vld [vmem:[%s7 + $0x148] sm:$0xff]
      %v1954 = vld [vmem:[%s7 + $0x150] sm:$0xff]
      %v1955 = vld [vmem:[%s7 + $0x158] sm:$0xff]
      %v1956 = vld [vmem:[%s7 + $0x160] sm:$0xff]
      %v1957 = vld [vmem:[%s7 + $0x168] sm:$0xff]
      %v1958 = vld [vmem:[%s7 + $0x170] sm:$0xff]
      %v1959 = vld [vmem:[%s7 + $0x178] sm:$0xff]
      %1960 = vmatpush.msra.mxu0 %v1957
      %1961 = vmatpush.msra.mxu0 %v1954
      %1962 = vmatpush.msra.mxu0 %v1951
      %1963 = vmatpush.msra.mxu0 %v1948
      %1964 = vmatpush.msra.mxu0 %v1945
      %1965 = vmatpush.msra.mxu0 %v1942
      %1966 = vmatpush.msra.mxu0 %v1939
      %1967 = vmatpush.msra.mxu0 %v1936
      %1968 = vmatpush.msra.mxu0 %v1933
      %1969 = vmatpush.msra.mxu0 %v1930
      %1970 = vmatpush.msra.mxu0 %v1927
      %1971 = vmatpush.msra.mxu0 %v1924
      %1972 = vmatpush.msra.mxu0 %v1921
      %1973 = vmatpush.msra.mxu0 %v1918
      %1974 = vmatpush.msra.mxu0 %v1915
      %1975 = vmatpush.msra.mxu0 %v1912
      %1976 = vmatmul.f32.gmra.mxu0 %v1579
      %v1977 = vpop.f32.mrf.mxu0
      %v1978 = vadd.f32 0.0, %v1977
      %1979 = vdwg.mxu0
      %1980 = vmatpush.msra.mxu0 %v1958
      %1981 = vmatpush.msra.mxu0 %v1955
      %1982 = vmatpush.msra.mxu0 %v1952
      %1983 = vmatpush.msra.mxu0 %v1949
      %1984 = vmatpush.msra.mxu0 %v1946
      %1985 = vmatpush.msra.mxu0 %v1943
      %1986 = vmatpush.msra.mxu0 %v1940
      %1987 = vmatpush.msra.mxu0 %v1937
      %1988 = vmatpush.msra.mxu0 %v1934
      %1989 = vmatpush.msra.mxu0 %v1931
      %1990 = vmatpush.msra.mxu0 %v1928
      %1991 = vmatpush.msra.mxu0 %v1925
      %1992 = vmatpush.msra.mxu0 %v1922
      %1993 = vmatpush.msra.mxu0 %v1919
      %1994 = vmatpush.msra.mxu0 %v1916
      %1995 = vmatpush.msra.mxu0 %v1913
      %1996 = vmatmul.f32.gmra.mxu0 %v1579
      %v1997 = vpop.f32.mrf.mxu0
      %v1998 = vadd.f32 0.0, %v1997
      %1999 = vdwg.mxu0
      %2000 = vmatpush.msra.mxu0 %v1959
      %2001 = vmatpush.msra.mxu0 %v1956
      %2002 = vmatpush.msra.mxu0 %v1953
      %2003 = vmatpush.msra.mxu0 %v1950
      %2004 = vmatpush.msra.mxu0 %v1947
      %2005 = vmatpush.msra.mxu0 %v1944
      %2006 = vmatpush.msra.mxu0 %v1941
      %2007 = vmatpush.msra.mxu0 %v1938
      %2008 = vmatpush.msra.mxu0 %v1935
      %2009 = vmatpush.msra.mxu0 %v1932
      %2010 = vmatpush.msra.mxu0 %v1929
      %2011 = vmatpush.msra.mxu0 %v1926
      %2012 = vmatpush.msra.mxu0 %v1923
      %2013 = vmatpush.msra.mxu0 %v1920
      %2014 = vmatpush.msra.mxu0 %v1917
      %2015 = vmatpush.msra.mxu0 %v1914
      %2016 = vmatmul.f32.gmra.mxu0 %v1579
      %v2017 = vpop.f32.mrf.mxu0
      %v2018 = vadd.f32 0.0, %v2017
      %2019 = vdwg.mxu0
      %v2020 = vadd.f32 %v1883, %v1978
      %v2021 = vmul.f32 %v2020, 0.5
      %v2022 = vtanh.pop %v2021
      %v2023 = vadd.f32 %v2022, 1.0
      %v2024 = vmul.f32 %v2023, 0.5
      %v2025 = vadd.f32 %v1896, %v1998
      %v2026 = vmul.f32 %v2025, 0.5
      %v2027 = vtanh.pop %v2026
      %v2028 = vadd.f32 %v2027, 1.0
      %v2029 = vmul.f32 %v2028, 0.5
      %v2030 = vadd.f32 %v2018, %v402
      %v2031 = vmul.f32 %v2024, %v2030
      %v2032 = vadd.f32 %v1909, %v2031
      %v2033 = vtanh.pop %v2032
      %v2034 = vsub.f32 1.0, %v2029
      %v2035 = vmul.f32 %v2034, %v2033
      %v2036 = vmul.f32 %v2029, %v1579
      %v2037 = vadd.f32 %v2035, %v2036
      %s2038 = scalar_lea.vmem %s386, 16
      %2039 = vst [vmem:[%s2038] sm:$0xff] %v2037
      %s2040 = scalar_lea.vmem [#allocation2], 72
      %v2041 = vld [vmem:[%s2040] sm:$0xff]
      %v2042 = vld [vmem:[%s2040 + $0x8] sm:$0xff]
      %v2043 = vld [vmem:[%s2040 + $0x10] sm:$0xff]
      %v2044 = vld [vmem:[%s3] sm:$0xff]
      %v2045 = vld [vmem:[%s3 + $0x8] sm:$0xff]
      %v2046 = vld [vmem:[%s3 + $0x10] sm:$0xff]
      %v2047 = vld [vmem:[%s3 + $0x18] sm:$0xff]
      %v2048 = vld [vmem:[%s3 + $0x20] sm:$0xff]
      %v2049 = vld [vmem:[%s3 + $0x28] sm:$0xff]
      %v2050 = vld [vmem:[%s3 + $0x30] sm:$0xff]
      %v2051 = vld [vmem:[%s3 + $0x38] sm:$0xff]
      %v2052 = vld [vmem:[%s3 + $0x40] sm:$0xff]
      %v2053 = vld [vmem:[%s3 + $0x48] sm:$0xff]
      %v2054 = vld [vmem:[%s3 + $0x50] sm:$0xff]
      %v2055 = vld [vmem:[%s3 + $0x58] sm:$0xff]
      %v2056 = vld [vmem:[%s3 + $0x60] sm:$0xff]
      %v2057 = vld [vmem:[%s3 + $0x68] sm:$0xff]
      %v2058 = vld [vmem:[%s3 + $0x70] sm:$0xff]
      %v2059 = vld [vmem:[%s3 + $0x78] sm:$0xff]
      %v2060 = vld [vmem:[%s3 + $0x80] sm:$0xff]
      %v2061 = vld [vmem:[%s3 + $0x88] sm:$0xff]
      %v2062 = vld [vmem:[%s3 + $0x90] sm:$0xff]
      %v2063 = vld [vmem:[%s3 + $0x98] sm:$0xff]
      %v2064 = vld [vmem:[%s3 + $0xa0] sm:$0xff]
      %v2065 = vld [vmem:[%s3 + $0xa8] sm:$0xff]
      %v2066 = vld [vmem:[%s3 + $0xb0] sm:$0xff]
      %v2067 = vld [vmem:[%s3 + $0xb8] sm:$0xff]
      %v2068 = vld [vmem:[%s3 + $0xc0] sm:$0xff]
      %v2069 = vld [vmem:[%s3 + $0xc8] sm:$0xff]
      %v2070 = vld [vmem:[%s3 + $0xd0] sm:$0xff]
      %v2071 = vld [vmem:[%s3 + $0xd8] sm:$0xff]
      %v2072 = vld [vmem:[%s3 + $0xe0] sm:$0xff]
      %v2073 = vld [vmem:[%s3 + $0xe8] sm:$0xff]
      %v2074 = vld [vmem:[%s3 + $0xf0] sm:$0xff]
      %v2075 = vld [vmem:[%s3 + $0xf8] sm:$0xff]
      %v2076 = vld [vmem:[%s3 + $0x100] sm:$0xff]
      %v2077 = vld [vmem:[%s3 + $0x108] sm:$0xff]
      %v2078 = vld [vmem:[%s3 + $0x110] sm:$0xff]
      %v2079 = vld [vmem:[%s3 + $0x118] sm:$0xff]
      %v2080 = vld [vmem:[%s3 + $0x120] sm:$0xff]
      %v2081 = vld [vmem:[%s3 + $0x128] sm:$0xff]
      %v2082 = vld [vmem:[%s3 + $0x130] sm:$0xff]
      %v2083 = vld [vmem:[%s3 + $0x138] sm:$0xff]
      %v2084 = vld [vmem:[%s3 + $0x140] sm:$0xff]
      %v2085 = vld [vmem:[%s3 + $0x148] sm:$0xff]
      %v2086 = vld [vmem:[%s3 + $0x150] sm:$0xff]
      %v2087 = vld [vmem:[%s3 + $0x158] sm:$0xff]
      %v2088 = vld [vmem:[%s3 + $0x160] sm:$0xff]
      %v2089 = vld [vmem:[%s3 + $0x168] sm:$0xff]
      %v2090 = vld [vmem:[%s3 + $0x170] sm:$0xff]
      %v2091 = vld [vmem:[%s3 + $0x178] sm:$0xff]
      %2092 = vmatpush.msra.mxu0 %v2089
      %2093 = vmatpush.msra.mxu0 %v2086
      %2094 = vmatpush.msra.mxu0 %v2083
      %2095 = vmatpush.msra.mxu0 %v2080
      %2096 = vmatpush.msra.mxu0 %v2077
      %2097 = vmatpush.msra.mxu0 %v2074
      %2098 = vmatpush.msra.mxu0 %v2071
      %2099 = vmatpush.msra.mxu0 %v2068
      %2100 = vmatpush.msra.mxu0 %v2065
      %2101 = vmatpush.msra.mxu0 %v2062
      %2102 = vmatpush.msra.mxu0 %v2059
      %2103 = vmatpush.msra.mxu0 %v2056
      %2104 = vmatpush.msra.mxu0 %v2053
      %2105 = vmatpush.msra.mxu0 %v2050
      %2106 = vmatpush.msra.mxu0 %v2047
      %2107 = vmatpush.msra.mxu0 %v2044
      %2108 = vmatmul.f32.gmra.mxu0 %v1711
      %v2109 = vpop.f32.mrf.mxu0
      %v2110 = vadd.f32 0.0, %v2109
      %2111 = vdwg.mxu0
      %2112 = vmatpush.msra.mxu0 %v2090
      %2113 = vmatpush.msra.mxu0 %v2087
      %2114 = vmatpush.msra.mxu0 %v2084
      %2115 = vmatpush.msra.mxu0 %v2081
      %2116 = vmatpush.msra.mxu0 %v2078
      %2117 = vmatpush.msra.mxu0 %v2075
      %2118 = vmatpush.msra.mxu0 %v2072
      %2119 = vmatpush.msra.mxu0 %v2069
      %2120 = vmatpush.msra.mxu0 %v2066
      %2121 = vmatpush.msra.mxu0 %v2063
      %2122 = vmatpush.msra.mxu0 %v2060
      %2123 = vmatpush.msra.mxu0 %v2057
      %2124 = vmatpush.msra.mxu0 %v2054
      %2125 = vmatpush.msra.mxu0 %v2051
      %2126 = vmatpush.msra.mxu0 %v2048
      %2127 = vmatpush.msra.mxu0 %v2045
      %2128 = vmatmul.f32.gmra.mxu0 %v1711
      %v2129 = vpop.f32.mrf.mxu0
      %v2130 = vadd.f32 0.0, %v2129
      %2131 = vdwg.mxu0
      %2132 = vmatpush.msra.mxu0 %v2091
      %2133 = vmatpush.msra.mxu0 %v2088
      %2134 = vmatpush.msra.mxu0 %v2085
      %2135 = vmatpush.msra.mxu0 %v2082
      %2136 = vmatpush.msra.mxu0 %v2079
      %2137 = vmatpush.msra.mxu0 %v2076
      %2138 = vmatpush.msra.mxu0 %v2073
      %2139 = vmatpush.msra.mxu0 %v2070
      %2140 = vmatpush.msra.mxu0 %v2067
      %2141 = vmatpush.msra.mxu0 %v2064
      %2142 = vmatpush.msra.mxu0 %v2061
      %2143 = vmatpush.msra.mxu0 %v2058
      %2144 = vmatpush.msra.mxu0 %v2055
      %2145 = vmatpush.msra.mxu0 %v2052
      %2146 = vmatpush.msra.mxu0 %v2049
      %2147 = vmatpush.msra.mxu0 %v2046
      %2148 = vmatmul.f32.gmra.mxu0 %v1711
      %v2149 = vpop.f32.mrf.mxu0
      %v2150 = vadd.f32 0.0, %v2149
      %2151 = vdwg.mxu0
      %v2152 = vadd.f32 %v2041, %v2110
      %v2153 = vmul.f32 %v2152, 0.5
      %v2154 = vtanh.pop %v2153
      %v2155 = vadd.f32 %v2154, 1.0
      %v2156 = vmul.f32 %v2155, 0.5
      %v2157 = vadd.f32 %v2042, %v2130
      %v2158 = vmul.f32 %v2157, 0.5
      %v2159 = vtanh.pop %v2158
      %v2160 = vadd.f32 %v2159, 1.0
      %v2161 = vmul.f32 %v2160, 0.5
      %v2162 = vadd.f32 %v2150, %v398
      %v2163 = vmul.f32 %v2156, %v2162
      %v2164 = vadd.f32 %v2043, %v2163
      %v2165 = vtanh.pop %v2164
      %v2166 = vsub.f32 1.0, %v2161
      %v2167 = vmul.f32 %v2166, %v2165
      %v2168 = vmul.f32 %v2161, %v1711
      %v2169 = vadd.f32 %v2167, %v2168
      %v2170 = vpack.c.bf16 %v2169, %v2169
      %v2171 = vld [vmem:[%s6] sm:$0xff]
      %v2172 = vld [vmem:[%s6 + $0x8] sm:$0xf]
      %v2173 = vld [vmem:[%s6 + $0xc] sm:$0xff]
      %v2174 = vld [vmem:[%s6 + $0x14] sm:$0xf]
      %v2175 = vld [vmem:[%s6 + $0x18] sm:$0xff]
      %v2176 = vld [vmem:[%s6 + $0x20] sm:$0xf]
      %v2177 = vld [vmem:[%s6 + $0x24] sm:$0xff]
      %v2178 = vld [vmem:[%s6 + $0x2c] sm:$0xf]
      %v2179 = vld [vmem:[%s6 + $0x30] sm:$0xff]
      %v2180 = vld [vmem:[%s6 + $0x38] sm:$0xf]
      %v2181 = vld [vmem:[%s6 + $0x3c] sm:$0xff]
      %v2182 = vld [vmem:[%s6 + $0x44] sm:$0xf]
      %v2183 = vld [vmem:[%s6 + $0x48] sm:$0xff]
      %v2184 = vld [vmem:[%s6 + $0x50] sm:$0xf]
      %v2185 = vld [vmem:[%s6 + $0x54] sm:$0xff]
      %v2186 = vld [vmem:[%s6 + $0x5c] sm:$0xf]
      %v2187 = vld [vmem:[%s6 + $0x60] sm:$0xff]
      %v2188 = vld [vmem:[%s6 + $0x68] sm:$0xf]
      %v2189 = vld [vmem:[%s6 + $0x6c] sm:$0xff]
      %v2190 = vld [vmem:[%s6 + $0x74] sm:$0xf]
      %v2191 = vld [vmem:[%s6 + $0x78] sm:$0xff]
      %v2192 = vld [vmem:[%s6 + $0x80] sm:$0xf]
      %v2193 = vld [vmem:[%s6 + $0x84] sm:$0xff]
      %v2194 = vld [vmem:[%s6 + $0x8c] sm:$0xf]
      %v2195 = vld [vmem:[%s6 + $0x90] sm:$0xff]
      %v2196 = vld [vmem:[%s6 + $0x98] sm:$0xf]
      %v2197 = vld [vmem:[%s6 + $0x9c] sm:$0xff]
      %v2198 = vld [vmem:[%s6 + $0xa4] sm:$0xf]
      %v2199 = vld [vmem:[%s6 + $0xa8] sm:$0xff]
      %v2200 = vld [vmem:[%s6 + $0xb0] sm:$0xf]
      %v2201 = vld [vmem:[%s6 + $0xb4] sm:$0xff]
      %v2202 = vld [vmem:[%s6 + $0xbc] sm:$0xf]
      %v2235 = vunpack.c.l.b16 %v2171
      %v2236 = vunpack.c.h.b16 %v2171
      %v2237 = vunpack.c.l.b16 %v2172
      %v2238 = vunpack.c.l.b16 %v2173
      %v2239 = vunpack.c.h.b16 %v2173
      %v2240 = vunpack.c.l.b16 %v2174
      %v2241 = vunpack.c.l.b16 %v2175
      %v2242 = vunpack.c.h.b16 %v2175
      %v2243 = vunpack.c.l.b16 %v2176
      %v2244 = vunpack.c.l.b16 %v2177
      %v2245 = vunpack.c.h.b16 %v2177
      %v2246 = vunpack.c.l.b16 %v2178
      %v2247 = vunpack.c.l.b16 %v2179
      %v2248 = vunpack.c.h.b16 %v2179
      %v2249 = vunpack.c.l.b16 %v2180
      %v2250 = vunpack.c.l.b16 %v2181
      %v2251 = vunpack.c.h.b16 %v2181
      %v2252 = vunpack.c.l.b16 %v2182
      %v2253 = vunpack.c.l.b16 %v2183
      %v2254 = vunpack.c.h.b16 %v2183
      %v2255 = vunpack.c.l.b16 %v2184
      %v2256 = vunpack.c.l.b16 %v2185
      %v2257 = vunpack.c.h.b16 %v2185
      %v2258 = vunpack.c.l.b16 %v2186
      %v2259 = vunpack.c.l.b16 %v2187
      %v2260 = vunpack.c.h.b16 %v2187
      %v2261 = vunpack.c.l.b16 %v2188
      %v2262 = vunpack.c.l.b16 %v2189
      %v2263 = vunpack.c.h.b16 %v2189
      %v2264 = vunpack.c.l.b16 %v2190
      %v2265 = vunpack.c.l.b16 %v2191
      %v2266 = vunpack.c.h.b16 %v2191
      %v2267 = vunpack.c.l.b16 %v2192
      %v2268 = vunpack.c.l.b16 %v2193
      %v2269 = vunpack.c.h.b16 %v2193
      %v2270 = vunpack.c.l.b16 %v2194
      %v2271 = vunpack.c.l.b16 %v2195
      %v2272 = vunpack.c.h.b16 %v2195
      %v2273 = vunpack.c.l.b16 %v2196
      %v2274 = vunpack.c.l.b16 %v2197
      %v2275 = vunpack.c.h.b16 %v2197
      %v2276 = vunpack.c.l.b16 %v2198
      %v2277 = vunpack.c.l.b16 %v2199
      %v2278 = vunpack.c.h.b16 %v2199
      %v2279 = vunpack.c.l.b16 %v2200
      %v2280 = vunpack.c.l.b16 %v2201
      %v2281 = vunpack.c.h.b16 %v2201
      %v2282 = vunpack.c.l.b16 %v2202
      %v2283 = vpack.c.b16 %v2238, %v2235
      %v2284 = vpack.c.b16 %v2239, %v2236
      %v2285 = vpack.c.b16 %v2240, %v2237
      %v2286 = vpack.c.b16 %v2244, %v2241
      %v2287 = vpack.c.b16 %v2245, %v2242
      %v2288 = vpack.c.b16 %v2246, %v2243
      %v2289 = vpack.c.b16 %v2250, %v2247
      %v2290 = vpack.c.b16 %v2251, %v2248
      %v2291 = vpack.c.b16 %v2252, %v2249
      %v2292 = vpack.c.b16 %v2256, %v2253
      %v2293 = vpack.c.b16 %v2257, %v2254
      %v2294 = vpack.c.b16 %v2258, %v2255
      %v2295 = vpack.c.b16 %v2262, %v2259
      %v2296 = vpack.c.b16 %v2263, %v2260
      %v2297 = vpack.c.b16 %v2264, %v2261
      %v2298 = vpack.c.b16 %v2268, %v2265
      %v2299 = vpack.c.b16 %v2269, %v2266
      %v2300 = vpack.c.b16 %v2270, %v2267
      %v2301 = vpack.c.b16 %v2274, %v2271
      %v2302 = vpack.c.b16 %v2275, %v2272
      %v2303 = vpack.c.b16 %v2276, %v2273
      %v2304 = vpack.c.b16 %v2280, %v2277
      %v2305 = vpack.c.b16 %v2281, %v2278
      %v2306 = vpack.c.b16 %v2282, %v2279
      %2331 = vmatpush.bf16.msra.mxu0 %v2304
      %2332 = vmatpush.bf16.msra.mxu0 %v2301
      %2333 = vmatpush.bf16.msra.mxu0 %v2298
      %2334 = vmatpush.bf16.msra.mxu0 %v2295
      %2335 = vmatpush.bf16.msra.mxu0 %v2292
      %2336 = vmatpush.bf16.msra.mxu0 %v2289
      %2337 = vmatpush.bf16.msra.mxu0 %v2286
      %2338 = vmatpush.bf16.msra.mxu0 %v2283
      %2339 = vmatmul.bf16.gmra.mxu0 %v2170
      %v2340 = vpop.f32.mrf.mxu0
      %v2341 = vadd.f32 %v406, %v2340
      %v2342 = vpop.f32.mrf.mxu0
      %2343 = vdwg.mxu0
      %2344 = vmatpush.bf16.msra.mxu0 %v2305
      %2345 = vmatpush.bf16.msra.mxu0 %v2302
      %2346 = vmatpush.bf16.msra.mxu0 %v2299
      %2347 = vmatpush.bf16.msra.mxu0 %v2296
      %2348 = vmatpush.bf16.msra.mxu0 %v2293
      %2349 = vmatpush.bf16.msra.mxu0 %v2290
      %2350 = vmatpush.bf16.msra.mxu0 %v2287
      %2351 = vmatpush.bf16.msra.mxu0 %v2284
      %2352 = vmatmul.bf16.gmra.mxu0 %v2170
      %v2353 = vpop.f32.mrf.mxu0
      %v2354 = vadd.f32 %v407, %v2353
      %v2355 = vpop.f32.mrf.mxu0
      %2356 = vdwg.mxu0
      %2357 = vmatpush.bf16.msra.mxu0 %v2306
      %2358 = vmatpush.bf16.msra.mxu0 %v2303
      %2359 = vmatpush.bf16.msra.mxu0 %v2300
      %2360 = vmatpush.bf16.msra.mxu0 %v2297
      %2361 = vmatpush.bf16.msra.mxu0 %v2294
      %2362 = vmatpush.bf16.msra.mxu0 %v2291
      %2363 = vmatpush.bf16.msra.mxu0 %v2288
      %2364 = vmatpush.bf16.msra.mxu0 %v2285
      %2365 = vmatmul.bf16.gmra.mxu0 %v2170
      %v2366 = vpop.f32.mrf.mxu0
      %v2367 = vadd.f32 %v408, %v2366
      %v2368 = vpop.f32.mrf.mxu0
      %2369 = vdwg.mxu0
      %v2370 = vld [vmem:[%s7] sm:$0xff]
      %v2371 = vld [vmem:[%s7 + $0x8] sm:$0xff]
      %v2372 = vld [vmem:[%s7 + $0x10] sm:$0xff]
      %v2373 = vld [vmem:[%s7 + $0x18] sm:$0xff]
      %v2374 = vld [vmem:[%s7 + $0x20] sm:$0xff]
      %v2375 = vld [vmem:[%s7 + $0x28] sm:$0xff]
      %v2376 = vld [vmem:[%s7 + $0x30] sm:$0xff]
      %v2377 = vld [vmem:[%s7 + $0x38] sm:$0xff]
      %v2378 = vld [vmem:[%s7 + $0x40] sm:$0xff]
      %v2379 = vld [vmem:[%s7 + $0x48] sm:$0xff]
      %v2380 = vld [vmem:[%s7 + $0x50] sm:$0xff]
      %v2381 = vld [vmem:[%s7 + $0x58] sm:$0xff]
      %v2382 = vld [vmem:[%s7 + $0x60] sm:$0xff]
      %v2383 = vld [vmem:[%s7 + $0x68] sm:$0xff]
      %v2384 = vld [vmem:[%s7 + $0x70] sm:$0xff]
      %v2385 = vld [vmem:[%s7 + $0x78] sm:$0xff]
      %v2386 = vld [vmem:[%s7 + $0x80] sm:$0xff]
      %v2387 = vld [vmem:[%s7 + $0x88] sm:$0xff]
      %v2388 = vld [vmem:[%s7 + $0x90] sm:$0xff]
      %v2389 = vld [vmem:[%s7 + $0x98] sm:$0xff]
      %v2390 = vld [vmem:[%s7 + $0xa0] sm:$0xff]
      %v2391 = vld [vmem:[%s7 + $0xa8] sm:$0xff]
      %v2392 = vld [vmem:[%s7 + $0xb0] sm:$0xff]
      %v2393 = vld [vmem:[%s7 + $0xb8] sm:$0xff]
      %v2394 = vld [vmem:[%s7 + $0xc0] sm:$0xff]
      %v2395 = vld [vmem:[%s7 + $0xc8] sm:$0xff]
      %v2396 = vld [vmem:[%s7 + $0xd0] sm:$0xff]
      %v2397 = vld [vmem:[%s7 + $0xd8] sm:$0xff]
      %v2398 = vld [vmem:[%s7 + $0xe0] sm:$0xff]
      %v2399 = vld [vmem:[%s7 + $0xe8] sm:$0xff]
      %v2400 = vld [vmem:[%s7 + $0xf0] sm:$0xff]
      %v2401 = vld [vmem:[%s7 + $0xf8] sm:$0xff]
      %v2402 = vld [vmem:[%s7 + $0x100] sm:$0xff]
      %v2403 = vld [vmem:[%s7 + $0x108] sm:$0xff]
      %v2404 = vld [vmem:[%s7 + $0x110] sm:$0xff]
      %v2405 = vld [vmem:[%s7 + $0x118] sm:$0xff]
      %v2406 = vld [vmem:[%s7 + $0x120] sm:$0xff]
      %v2407 = vld [vmem:[%s7 + $0x128] sm:$0xff]
      %v2408 = vld [vmem:[%s7 + $0x130] sm:$0xff]
      %v2409 = vld [vmem:[%s7 + $0x138] sm:$0xff]
      %v2410 = vld [vmem:[%s7 + $0x140] sm:$0xff]
      %v2411 = vld [vmem:[%s7 + $0x148] sm:$0xff]
      %v2412 = vld [vmem:[%s7 + $0x150] sm:$0xff]
      %v2413 = vld [vmem:[%s7 + $0x158] sm:$0xff]
      %v2414 = vld [vmem:[%s7 + $0x160] sm:$0xff]
      %v2415 = vld [vmem:[%s7 + $0x168] sm:$0xff]
      %v2416 = vld [vmem:[%s7 + $0x170] sm:$0xff]
      %v2417 = vld [vmem:[%s7 + $0x178] sm:$0xff]
      %2418 = vmatpush.msra.mxu0 %v2415
      %2419 = vmatpush.msra.mxu0 %v2412
      %2420 = vmatpush.msra.mxu0 %v2409
      %2421 = vmatpush.msra.mxu0 %v2406
      %2422 = vmatpush.msra.mxu0 %v2403
      %2423 = vmatpush.msra.mxu0 %v2400
      %2424 = vmatpush.msra.mxu0 %v2397
      %2425 = vmatpush.msra.mxu0 %v2394
      %2426 = vmatpush.msra.mxu0 %v2391
      %2427 = vmatpush.msra.mxu0 %v2388
      %2428 = vmatpush.msra.mxu0 %v2385
      %2429 = vmatpush.msra.mxu0 %v2382
      %2430 = vmatpush.msra.mxu0 %v2379
      %2431 = vmatpush.msra.mxu0 %v2376
      %2432 = vmatpush.msra.mxu0 %v2373
      %2433 = vmatpush.msra.mxu0 %v2370
      %2434 = vmatmul.f32.gmra.mxu0 %v2037
      %v2435 = vpop.f32.mrf.mxu0
      %v2436 = vadd.f32 0.0, %v2435
      %2437 = vdwg.mxu0
      %2438 = vmatpush.msra.mxu0 %v2416
      %2439 = vmatpush.msra.mxu0 %v2413
      %2440 = vmatpush.msra.mxu0 %v2410
      %2441 = vmatpush.msra.mxu0 %v2407
      %2442 = vmatpush.msra.mxu0 %v2404
      %2443 = vmatpush.msra.mxu0 %v2401
      %2444 = vmatpush.msra.mxu0 %v2398
      %2445 = vmatpush.msra.mxu0 %v2395
      %2446 = vmatpush.msra.mxu0 %v2392
      %2447 = vmatpush.msra.mxu0 %v2389
      %2448 = vmatpush.msra.mxu0 %v2386
      %2449 = vmatpush.msra.mxu0 %v2383
      %2450 = vmatpush.msra.mxu0 %v2380
      %2451 = vmatpush.msra.mxu0 %v2377
      %2452 = vmatpush.msra.mxu0 %v2374
      %2453 = vmatpush.msra.mxu0 %v2371
      %2454 = vmatmul.f32.gmra.mxu0 %v2037
      %v2455 = vpop.f32.mrf.mxu0
      %v2456 = vadd.f32 0.0, %v2455
      %2457 = vdwg.mxu0
      %2458 = vmatpush.msra.mxu0 %v2417
      %2459 = vmatpush.msra.mxu0 %v2414
      %2460 = vmatpush.msra.mxu0 %v2411
      %2461 = vmatpush.msra.mxu0 %v2408
      %2462 = vmatpush.msra.mxu0 %v2405
      %2463 = vmatpush.msra.mxu0 %v2402
      %2464 = vmatpush.msra.mxu0 %v2399
      %2465 = vmatpush.msra.mxu0 %v2396
      %2466 = vmatpush.msra.mxu0 %v2393
      %2467 = vmatpush.msra.mxu0 %v2390
      %2468 = vmatpush.msra.mxu0 %v2387
      %2469 = vmatpush.msra.mxu0 %v2384
      %2470 = vmatpush.msra.mxu0 %v2381
      %2471 = vmatpush.msra.mxu0 %v2378
      %2472 = vmatpush.msra.mxu0 %v2375
      %2473 = vmatpush.msra.mxu0 %v2372
      %2474 = vmatmul.f32.gmra.mxu0 %v2037
      %v2475 = vpop.f32.mrf.mxu0
      %v2476 = vadd.f32 0.0, %v2475
      %2477 = vdwg.mxu0
      %v2478 = vadd.f32 %v2341, %v2436
      %v2479 = vmul.f32 %v2478, 0.5
      %v2480 = vtanh.pop %v2479
      %v2481 = vadd.f32 %v2480, 1.0
      %v2482 = vmul.f32 %v2481, 0.5
      %v2483 = vadd.f32 %v2354, %v2456
      %v2484 = vmul.f32 %v2483, 0.5
      %v2485 = vtanh.pop %v2484
      %v2486 = vadd.f32 %v2485, 1.0
      %v2487 = vmul.f32 %v2486, 0.5
      %v2488 = vadd.f32 %v2476, %v402
      %v2489 = vmul.f32 %v2482, %v2488
      %v2490 = vadd.f32 %v2367, %v2489
      %v2491 = vtanh.pop %v2490
      %v2492 = vsub.f32 1.0, %v2487
      %v2493 = vmul.f32 %v2492, %v2491
      %v2494 = vmul.f32 %v2487, %v2037
      %v2495 = vadd.f32 %v2493, %v2494
      %s2496 = scalar_lea.vmem %s386, 24
      %2497 = vst [vmem:[%s2496] sm:$0xff] %v2495
      %2498 = vst [vmem:[%s11] sm:$0xff] %v2169
      %2499 = vst [vmem:[%s666] sm:$0xff] %v2495
      %s2500 = smul.u32 4, %s23
      %p2501 = scmp.lt.s32.totalorder %s2500, 7
      %s2502 = scalar_select %p2501, %s2500, 7
      %s2503 = smul.addr %s2502, 8
      %s2504 = scalar_lea.vmem %s10, %s2503
      // Predicated region
      $region65: #{_lambda_.2} parent=59 // pred_check
        %p2505 = pneg %p256
      $region66: #{_lambda_.2} parent=59 // pred_check_branch
        %2507 = sbr.rel (%p2505) target = $region68
      $region67: #{_lambda_.2} parent=59 // pred_region
        %s2508 = smul.u32 4, %s23
      $region68: #{_lambda_.2} parent=59 // pred_fallthru
        _
      // Predicated region
      $region69: #{_lambda_.2} parent=59 // pred_check
        %p2509 = pneg %p277
      $region70: #{_lambda_.2} parent=59 // pred_check_branch
        %2511 = sbr.rel (%p2509) target = $region72
      $region71: #{_lambda_.2} parent=59 // pred_region
        _
      $region72: #{_lambda_.2} parent=59 // pred_fallthru
        _
      // Predicated region
      $region73: #{_lambda_.2} parent=59 // pred_check
        %p2512 = pneg %p277
      $region74: #{_lambda_.2} parent=59 // pred_check_branch
        %2514 = sbr.rel (%p2512) target = $region76
      $region75: #{_lambda_.2} parent=59 // pred_region
        _
      $region76: #{_lambda_.2} parent=59 // pred_fallthru
        _
    $region60: #{_lambda_.2} parent=5 // pred_fallthru
      _
    %p2515 = scmp.le.s32.totalorder 2, %s18
    // Predicated region
    $region77: #{_lambda_.2} parent=5 // pred_check
      %p2516 = pneg %p2515
    $region78: #{_lambda_.2} parent=5 // pred_check_branch
      %2518 = sbr.rel (%p2516) target = $region80
    $region79: #{_lambda_.2} parent=5 // pred_region
      %s2519 = ssub.s32 %s18, 2
      // Predicated region
      $region81: #{_lambda_.2} parent=79 // pred_check
        %p2520 = pneg %p262
      $region82: #{_lambda_.2} parent=79 // pred_check_branch
        %2522 = sbr.rel (%p2520) target = $region84
      $region83: #{_lambda_.2} parent=79 // pred_region
        %s2523 = smul.u32 4, %s24
        %p2524 = scmp.lt.s32.totalorder %s2523, 7
        %s2525 = scalar_select %p2524, %s2523, 7
        %s2526 = smul.addr %s2525, 8
        %s2527 = scalar_lea.vmem %s10, %s2526
      $region84: #{_lambda_.2} parent=79 // pred_fallthru
        _
    $region80: #{_lambda_.2} parent=5 // pred_fallthru
      _
  $region6: #{_lambda_.2} parent=0 // loop_footer
    %s22 = sadd.s32 1, %s18
  $region7: #{_lambda_.2} parent=0 // loop_footer_branch
    %17 = sbr.rel target = $region3
  $region8: #{_lambda_.2} parent=0 // loop_exit
    _

</llo_original>
